<compile_context>
chip_gen: v6e
topology: v6e:2x2x1
jax: 0.10.0
libtpu: 0.0.40
codegen_flags: <defaults>
</compile_context>

<pallas_src>
import functools
import math

import jax
import jax.numpy as jnp
from jax.experimental import pallas as pl
from jax.experimental.pallas import tpu as pltpu

_BN_EPS = 1e-5
_VMEM_BUDGET = 20 * 1024 * 1024    # budget for double-buffered pipeline blocks
_VMEM_LIMIT = 32 * 1024 * 1024     # scoped-VMEM limit requested from Mosaic

# (ky, dy) pairs per output-row parity for ConvTranspose2d(k=4, s=2, p=1):
# output row oy = 2*m + a gathers input row iy = m + dy through kernel row ky.
_PHASE_PAIRS = {0: ((1, 0), (3, -1)), 1: ((0, 1), (2, 0))}


# ----------------------------------------------------------------------------
# Pallas kernels
# ----------------------------------------------------------------------------
def _gemm_stats_kernel(cols_ref, w_ref, y_ref, psum_ref, psq_ref):
    """BN layers, pass 1: y[p] = w[p] @ cols[p] (f32 MXU accumulate), streamed
    out as bf16.  Per-tile per-channel sum / sum-of-squares are emitted as
    PARTIAL stats (no cross-step accumulation -> all grid axes "parallel")."""
    n_phase = w_ref.shape[0]
    cout = w_ref.shape[1]
    s = jnp.zeros((cout, 1), jnp.float32)
    q = jnp.zeros((cout, 1), jnp.float32)
    for p in range(n_phase):                       # static unroll (1 or 4)
        y = jnp.dot(w_ref[p], cols_ref[p], preferred_element_type=jnp.float32)
        y_ref[p] = y.astype(y_ref.dtype)
        s = s + jnp.sum(y, axis=1, keepdims=True)
        q = q + jnp.sum(y * y, axis=1, keepdims=True)
    psum_ref[0] = s
    psq_ref[0] = q


def _gemm_bias_act_kernel(act, cols_ref, w_ref, b_ref, o_ref):
    """No-BN layer: fused GEMM + bias + activation, streamed output."""
    for p in range(w_ref.shape[0]):                # static unroll (1 or 4)
        y = jnp.dot(w_ref[p], cols_ref[p], preferred_element_type=jnp.float32)
        y = y + b_ref[...]
        if act == "relu":
            y = jnp.maximum(y, 0.0)
        elif act == "tanh":
            y = jnp.tanh(y)
        o_ref[p] = y.astype(o_ref.dtype)


# ----------------------------------------------------------------------------
# Tile planning / pallas_call wrappers
# ----------------------------------------------------------------------------
def _plan_tiles(M, K4, Cout, out_bytes):
    """Pick (tm, phases_per_block).  Prefer phase-collapsed blocks (all 4
    phases per grid step -> 4x fewer steps, weights VMEM-resident) and the
    largest lane-dense M tile whose double-buffered working set fits the VMEM
    budget (keeps v5e's 16 MiB scoped default and v7x's 64 MiB VMEM safe)."""
    tms = [t for t in (1024, 512, 256, 128) if t <= M and M % t == 0] or [M]
    for p_blk in (4, 1):
        for tm in tms:
            cols_b = 2 * p_blk * K4 * tm * 2        # bf16 cols, 2 buffers
            w_b = 2 * p_blk * Cout * K4 * 2         # bf16 weights
            y_b = 2 * p_blk * Cout * tm * out_bytes
            if cols_b + w_b + y_b <= _VMEM_BUDGET:
                return tm, p_blk
    return tms[-1], 1


def _compiler_params(n_axes):
    return pltpu.CompilerParams(
        dimension_semantics=("parallel",) * n_axes,
        vmem_limit_bytes=_VMEM_LIMIT)


def gemm_with_stats(cols4, w4, *, tm, p_blk):
    P, K4, M = cols4.shape
    Cout = w4.shape[1]
    n_i = M // tm
    n_blocks = (P // p_blk) * n_i
    if p_blk == P:                                  # phase-collapsed body
        grid = (n_i,)
        in_specs = [pl.BlockSpec((P, K4, tm), lambda i: (0, 0, i)),
                    pl.BlockSpec((P, Cout, K4), lambda i: (0, 0, 0))]
        out_specs = (pl.BlockSpec((P, Cout, tm), lambda i: (0, 0, i)),
                     pl.BlockSpec((1, Cout, 1), lambda i: (i, 0, 0)),
                     pl.BlockSpec((1, Cout, 1), lambda i: (i, 0, 0)))
    else:                                           # one phase per grid step
        grid = (P, n_i)
        in_specs = [pl.BlockSpec((1, K4, tm), lambda p, i: (p, 0, i)),
                    pl.BlockSpec((1, Cout, K4), lambda p, i: (p, 0, 0))]
        out_specs = (pl.BlockSpec((1, Cout, tm), lambda p, i: (p, 0, i)),
                     pl.BlockSpec((1, Cout, 1), lambda p, i: (p * n_i + i, 0, 0)),
                     pl.BlockSpec((1, Cout, 1), lambda p, i: (p * n_i + i, 0, 0)))
    return pl.pallas_call(
        _gemm_stats_kernel,
        out_shape=(jax.ShapeDtypeStruct((P, Cout, M), jnp.bfloat16),
                   jax.ShapeDtypeStruct((n_blocks, Cout, 1), jnp.float32),
                   jax.ShapeDtypeStruct((n_blocks, Cout, 1), jnp.float32)),
        grid=grid, in_specs=in_specs, out_specs=out_specs,
        compiler_params=_compiler_params(len(grid)),
    )(cols4, w4)


def gemm_bias_act(cols4, w4, b, *, act, tm, p_blk, out_dtype):
    P, K4, M = cols4.shape
    Cout = w4.shape[1]
    n_i = M // tm
    if p_blk == P:
        grid = (n_i,)
        in_specs = [pl.BlockSpec((P, K4, tm), lambda i: (0, 0, i)),
                    pl.BlockSpec((P, Cout, K4), lambda i: (0, 0, 0)),
                    pl.BlockSpec((Cout, 1), lambda i: (0, 0))]
        out_specs = pl.BlockSpec((P, Cout, tm), lambda i: (0, 0, i))
    else:
        grid = (P, n_i)
        in_specs = [pl.BlockSpec((1, K4, tm), lambda p, i: (p, 0, i)),
                    pl.BlockSpec((1, Cout, K4), lambda p, i: (p, 0, 0)),
                    pl.BlockSpec((Cout, 1), lambda p, i: (0, 0))]
        out_specs = pl.BlockSpec((1, Cout, tm), lambda p, i: (p, 0, i))
    return pl.pallas_call(
        functools.partial(_gemm_bias_act_kernel, act),
        out_shape=jax.ShapeDtypeStruct((P, Cout, M), out_dtype),
        grid=grid, in_specs=in_specs, out_specs=out_specs,
        compiler_params=_compiler_params(len(grid)),
    )(cols4, w4, b.reshape(Cout, 1))


# ----------------------------------------------------------------------------
# Layout glue (plain JAX): phase-cols build, weight prepack, phase assembly
# ----------------------------------------------------------------------------
def build_phase_cols(x_cnhw, dtype=jnp.bfloat16):
    """x: (Cin, N, H, W) -> (4, 4*Cin, N*H*W) phase-cols, phases in (a,b) order."""
    Cin, N, H, W = x_cnhw.shape
    xp = jnp.pad(x_cnhw, ((0, 0), (0, 0), (1, 1), (1, 1)))
    M = N * H * W
    phases = []
    for a in (0, 1):
        for b in (0, 1):
            slabs = []
            for _, dy in _PHASE_PAIRS[a]:
                for _, dx in _PHASE_PAIRS[b]:
                    sl = xp[:, :, 1 + dy:1 + dy + H, 1 + dx:1 + dx + W]
                    slabs.append(sl.reshape(Cin, M))
            phases.append(jnp.concatenate(slabs, axis=0))
    return jnp.stack(phases, axis=0).astype(dtype)


def prepack_dconv_weight(w_t, dtype=jnp.bfloat16):
    """PyTorch ConvTranspose2d weight (Cin, Cout, 4, 4) -> (4, Cout, 4*Cin)."""
    phases = []
    for a in (0, 1):
        for b in (0, 1):
            blocks = []
            for ky, _ in _PHASE_PAIRS[a]:
                for kx, _ in _PHASE_PAIRS[b]:
                    blocks.append(w_t[:, :, ky, kx].T)          # (Cout, Cin)
            phases.append(jnp.concatenate(blocks, axis=1))      # (Cout, 4*Cin)
    return jnp.stack(phases, axis=0).astype(dtype)


def assemble_phases(y4, N, H, W):
    """(4, Cout, N*H*W) phase outputs -> (Cout, N, 2H, 2W)."""
    Cout = y4.shape[1]
    p = y4.reshape(2, 2, Cout, N, H, W)
    t = jnp.transpose(p, (2, 3, 4, 0, 5, 1))       # (Cout, N, H, 2, W, 2)
    return t.reshape(Cout, N, 2 * H, 2 * W)


def _layer_fallback(cols4, w4, b, gamma, beta, *, use_bn, act):
    """Plain-XLA path for tiny-M layers where Pallas overhead dominates."""
    y = jnp.einsum("pck,pkm->pcm", w4, cols4,
                   preferred_element_type=jnp.float32)
    if use_bn:
        mean = jnp.mean(y, axis=(0, 2), keepdims=True)
        var = jnp.mean(jnp.square(y - mean), axis=(0, 2), keepdims=True)
        y = (y - mean) * jax.lax.rsqrt(var + _BN_EPS)
        y = y * gamma.reshape(1, -1, 1) + beta.reshape(1, -1, 1)
    else:
        y = y + b.reshape(1, -1, 1)
    return jnp.maximum(y, 0.0) if act == "relu" else jnp.tanh(y)


# ----------------------------------------------------------------------------
# One ConvTranspose2d(k=4,s=2,p=1) [+ BatchNorm] [+ activation] layer
# ----------------------------------------------------------------------------
def conv_transpose_layer(x_cnhw, lp, *, use_bn, act, out_dtype=jnp.bfloat16):
    Cin, N, H, W = x_cnhw.shape
    w4 = lp["w4"]
    Cout, K4 = w4.shape[1], w4.shape[2]
    M = N * H * W
    cols4 = build_phase_cols(x_cnhw)

    if M % 128 == 0:                                  # Pallas path
        if use_bn:
            tm, p_blk = _plan_tiles(M, K4, Cout, 2)   # bf16 streamed output
            y4, psum, psq = gemm_with_stats(cols4, w4, tm=tm, p_blk=p_blk)
            cnt = 4.0 * M                             # = N*Ho*Wo per channel
            # TODO(synk): single-pass E[y^2]-E[y]^2 variance can cancel for
            # very large M with |mean| >> std; a shifted / two-pass variance
            # would be more robust.
            mean = jnp.sum(psum, axis=0)[:, 0] / cnt
            var = jnp.maximum(jnp.sum(psq, axis=0)[:, 0] / cnt - mean * mean, 0.0)
            scale = lp["gamma"] * jax.lax.rsqrt(var + _BN_EPS)
            shift = lp["beta"] - mean * scale
            # BN scale/shift + activation run in XLA so they fuse with the
            # assemble/pad/cols layout glue (no standalone Pallas pass-2).
            y = (y4.astype(jnp.float32) * scale[None, :, None]
                 + shift[None, :, None])
            y4 = (jnp.maximum(y, 0.0) if act == "relu"
                  else jnp.tanh(y)).astype(jnp.bfloat16)
        else:
            out_bytes = jnp.dtype(out_dtype).itemsize
            tm, p_blk = _plan_tiles(M, K4, Cout, out_bytes)
            y4 = gemm_bias_act(cols4, w4, lp["b"], act=act, tm=tm,
                               p_blk=p_blk, out_dtype=out_dtype)
    else:                                             # tiny-M fallback (XLA)
        y4 = _layer_fallback(cols4, w4, lp.get("b"), lp.get("gamma"),
                             lp.get("beta"), use_bn=use_bn, act=act)
    return assemble_phases(y4, N, H, W)


# ----------------------------------------------------------------------------
# Full DataGenerator forward (z -> NCHW image (N, 3, 64, 64))
# ----------------------------------------------------------------------------
def data_generator_forward(params, z):
    N = z.shape[0]
    fc_wt, fc_b = params["fc_wt"], params["fc_b"]     # (z_size, F), (F,)
    F = fc_wt.shape[1]
    out = z @ fc_wt + fc_b                            # tiny GEMM -> XLA

    # view(-1, conv_dim*16, 2, 2) (NCHW), then to C-major (C, N, H, W).
    x = out.reshape(N, F // 4, 2, 2).transpose(1, 0, 2, 3)

    cfg = (("dconv1", True, "relu"), ("dconv2", True, "relu"),
           ("dconv3", True, "relu"), ("dconv4", True, "tanh"),
           ("dconv5", False, "tanh"))
    for name, use_bn, act in cfg:
        is_last = name == "dconv5"
        x = conv_transpose_layer(
            x, params[name], use_bn=use_bn, act=act,
            out_dtype=jnp.float32 if is_last else jnp.bfloat16)
    return x.astype(jnp.float32).transpose(1, 0, 2, 3)   # NCHW (N, 3, 64, 64)


# ----------------------------------------------------------------------------
# Deterministic parameter init (PyTorch-like fan-in uniform; BN = ones/zeros),
# with one-time weight prepacking into the per-phase MXU layout.
# ----------------------------------------------------------------------------
def init_params(key, z_size, conv_dim):
    keys = iter(jax.random.split(key, 16))

    def uniform(rng, shape, bound):
        return jax.random.uniform(rng, shape, jnp.float32, -bound, bound)

    params = {}
    F = conv_dim * 16 * 2 * 2
    bnd = 1.0 / math.sqrt(z_size)
    params["fc_wt"] = uniform(next(keys), (z_size, F), bnd)   # prepacked (w.T)
    params["fc_b"] = uniform(next(keys), (F,), bnd)

    channels = [(conv_dim * 16, conv_dim * 8), (conv_dim * 8, conv_dim * 4),
                (conv_dim * 4, conv_dim * 2), (conv_dim * 2, conv_dim),
                (conv_dim, 3)]
    for idx, (cin, cout) in enumerate(channels, start=1):
        bound = 1.0 / math.sqrt(cin * 16)
        w_t = uniform(next(keys), (cin, cout, 4, 4), bound)   # torch layout
        lp = {"w4": prepack_dconv_weight(w_t)}
        if idx < 5:
            # Conv bias omitted: exactly cancelled by the training-mode
            # BatchNorm mean subtraction that follows (forward-equivalent).
            lp["gamma"] = jnp.ones((cout,), jnp.float32)
            lp["beta"] = jnp.zeros((cout,), jnp.float32)
        else:
            lp["b"] = uniform(next(keys), (cout,), bound)
        params[f"dconv{idx}"] = lp
    return params


if __name__ == "__main__":
    z_size, conv_dim, batch = 32, 4, 2
    key = jax.random.PRNGKey(0)
    pkey, zkey = jax.random.split(key)

    params = init_params(pkey, z_size, conv_dim)
    z = jax.random.normal(zkey, (batch, z_size), jnp.float32)

    fwd = jax.jit(data_generator_forward)
    out = jax.block_until_ready(fwd(params, z))

    assert out.shape == (batch, 3, 64, 64), out.shape
    assert bool(jnp.all(jnp.isfinite(out)))
    # TODO(synk): BatchNorm running_mean/running_var buffer updates (training
    # side effect, not part of the forward output) are not modeled.
    print("KERNEL_OK")
</pallas_src>

<mosaic_0001>
module attributes {stable_mosaic.version = 11 : i64} {
  func.func @_gemm_stats_kernel(%arg0: i32, %arg1: memref<4x64x128xbf16, #tpu.memory_space<vmem>>, %arg2: memref<4x8x64xbf16, #tpu.memory_space<vmem>>, %arg3: memref<4x8x128xbf16, #tpu.memory_space<vmem>>, %arg4: memref<1x8x1xf32, #tpu.memory_space<vmem>>, %arg5: memref<1x8x1xf32, #tpu.memory_space<vmem>>) attributes {dimension_semantics = [#tpu.dimension_semantics<parallel>], iteration_bounds = array<i64: 1>, scalar_prefetch = 0 : i64, scratch_operands = 0 : i64, tpu.core_type = #tpu.core_type<tc>, window_params = [{transform_indices = @transform_0, window_bounds = array<i64: 4, 64, 128>}, {pipeline_mode = #tpu.pipeline_mode<synchronous>, transform_indices = @transform_1, window_bounds = array<i64: 4, 8, 64>}, {transform_indices = @transform_2, window_bounds = array<i64: 4, 8, 128>}, {transform_indices = @transform_3, window_bounds = array<i64: 1, 8, 1>}, {transform_indices = @transform_4, window_bounds = array<i64: 1, 8, 1>}]} {
    %cst = arith.constant 0.000000e+00 : f32
    %0 = vector.broadcast %cst : f32 to vector<8x1xf32>
    %cst_0 = arith.constant 0.000000e+00 : f32
    %1 = vector.broadcast %cst_0 : f32 to vector<8x1xf32>
    %c0 = arith.constant 0 : index
    %c0_1 = arith.constant 0 : index
    %c0_2 = arith.constant 0 : index
    %2 = vector.load %arg2[%c0, %c0_1, %c0_2] : memref<4x8x64xbf16, #tpu.memory_space<vmem>>, vector<1x8x64xbf16>
    %3 = vector.shape_cast %2 : vector<1x8x64xbf16> to vector<8x64xbf16>
    %c0_3 = arith.constant 0 : index
    %c0_4 = arith.constant 0 : index
    %c0_5 = arith.constant 0 : index
    %4 = vector.load %arg1[%c0_3, %c0_4, %c0_5] : memref<4x64x128xbf16, #tpu.memory_space<vmem>>, vector<1x64x128xbf16>
    %5 = vector.shape_cast %4 : vector<1x64x128xbf16> to vector<64x128xbf16>
    %cst_6 = arith.constant dense<0.000000e+00> : vector<8x128xf32>
    %6 = tpu.matmul %3, %5, %cst_6 {dimension_numbers = #tpu.dot_dimension_numbers<[1], [0], [0], [1], [0, 0, 1, 1], [], []>} : vector<8x64xbf16>, vector<64x128xbf16>, vector<8x128xf32> -> vector<8x128xf32>
    %7 = arith.truncf %6 : vector<8x128xf32> to vector<8x128xbf16>
    %c0_7 = arith.constant 0 : index
    %c0_8 = arith.constant 0 : index
    %c0_9 = arith.constant 0 : index
    %8 = vector.load %arg3[%c0_7, %c0_8, %c0_9] : memref<4x8x128xbf16, #tpu.memory_space<vmem>>, vector<1x8x128xbf16>
    %9 = vector.shape_cast %8 : vector<1x8x128xbf16> to vector<8x128xbf16>
    %10 = vector.shape_cast %7 : vector<8x128xbf16> to vector<1x8x128xbf16>
    tpu.vector_store %arg3[%c0_7, %c0_8, %c0_9], %10 {strides = array<i32>} : memref<4x8x128xbf16, #tpu.memory_space<vmem>>, vector<1x8x128xbf16>,
    %cst_10 = arith.constant dense<0.000000e+00> : vector<8xf32>
    %11 = vector.multi_reduction <add>, %6, %cst_10 [1] : vector<8x128xf32> to vector<8xf32>
    %12 = vector.shape_cast %11 : vector<8xf32> to vector<8x1xf32>
    %13 = arith.addf %0, %12 : vector<8x1xf32>
    %14 = arith.mulf %6, %6 : vector<8x128xf32>
    %cst_11 = arith.constant dense<0.000000e+00> : vector<8xf32>
    %15 = vector.multi_reduction <add>, %14, %cst_11 [1] : vector<8x128xf32> to vector<8xf32>
    %16 = vector.shape_cast %15 : vector<8xf32> to vector<8x1xf32>
    %17 = arith.addf %1, %16 : vector<8x1xf32>
    %c1 = arith.constant 1 : index
    %c0_12 = arith.constant 0 : index
    %c0_13 = arith.constant 0 : index
    %18 = vector.load %arg2[%c1, %c0_12, %c0_13] : memref<4x8x64xbf16, #tpu.memory_space<vmem>>, vector<1x8x64xbf16>
    %19 = vector.shape_cast %18 : vector<1x8x64xbf16> to vector<8x64xbf16>
    %c1_14 = arith.constant 1 : index
    %c0_15 = arith.constant 0 : index
    %c0_16 = arith.constant 0 : index
    %20 = vector.load %arg1[%c1_14, %c0_15, %c0_16] : memref<4x64x128xbf16, #tpu.memory_space<vmem>>, vector<1x64x128xbf16>
    %21 = vector.shape_cast %20 : vector<1x64x128xbf16> to vector<64x128xbf16>
    %cst_17 = arith.constant dense<0.000000e+00> : vector<8x128xf32>
    %22 = tpu.matmul %19, %21, %cst_17 {dimension_numbers = #tpu.dot_dimension_numbers<[1], [0], [0], [1], [0, 0, 1, 1], [], []>} : vector<8x64xbf16>, vector<64x128xbf16>, vector<8x128xf32> -> vector<8x128xf32>
    %23 = arith.truncf %22 : vector<8x128xf32> to vector<8x128xbf16>
    %c1_18 = arith.constant 1 : index
    %c0_19 = arith.constant 0 : index
    %c0_20 = arith.constant 0 : index
    %24 = vector.load %arg3[%c1_18, %c0_19, %c0_20] : memref<4x8x128xbf16, #tpu.memory_space<vmem>>, vector<1x8x128xbf16>
    %25 = vector.shape_cast %24 : vector<1x8x128xbf16> to vector<8x128xbf16>
    %26 = vector.shape_cast %23 : vector<8x128xbf16> to vector<1x8x128xbf16>
    tpu.vector_store %arg3[%c1_18, %c0_19, %c0_20], %26 {strides = array<i32>} : memref<4x8x128xbf16, #tpu.memory_space<vmem>>, vector<1x8x128xbf16>,
    %cst_21 = arith.constant dense<0.000000e+00> : vector<8xf32>
    %27 = vector.multi_reduction <add>, %22, %cst_21 [1] : vector<8x128xf32> to vector<8xf32>
    %28 = vector.shape_cast %27 : vector<8xf32> to vector<8x1xf32>
    %29 = arith.addf %13, %28 : vector<8x1xf32>
    %30 = arith.mulf %22, %22 : vector<8x128xf32>
    %cst_22 = arith.constant dense<0.000000e+00> : vector<8xf32>
    %31 = vector.multi_reduction <add>, %30, %cst_22 [1] : vector<8x128xf32> to vector<8xf32>
    %32 = vector.shape_cast %31 : vector<8xf32> to vector<8x1xf32>
    %33 = arith.addf %17, %32 : vector<8x1xf32>
    %c2 = arith.constant 2 : index
    %c0_23 = arith.constant 0 : index
    %c0_24 = arith.constant 0 : index
    %34 = vector.load %arg2[%c2, %c0_23, %c0_24] : memref<4x8x64xbf16, #tpu.memory_space<vmem>>, vector<1x8x64xbf16>
    %35 = vector.shape_cast %34 : vector<1x8x64xbf16> to vector<8x64xbf16>
    %c2_25 = arith.constant 2 : index
    %c0_26 = arith.constant 0 : index
    %c0_27 = arith.constant 0 : index
    %36 = vector.load %arg1[%c2_25, %c0_26, %c0_27] : memref<4x64x128xbf16, #tpu.memory_space<vmem>>, vector<1x64x128xbf16>
    %37 = vector.shape_cast %36 : vector<1x64x128xbf16> to vector<64x128xbf16>
    %cst_28 = arith.constant dense<0.000000e+00> : vector<8x128xf32>
    %38 = tpu.matmul %35, %37, %cst_28 {dimension_numbers = #tpu.dot_dimension_numbers<[1], [0], [0], [1], [0, 0, 1, 1], [], []>} : vector<8x64xbf16>, vector<64x128xbf16>, vector<8x128xf32> -> vector<8x128xf32>
    %39 = arith.truncf %38 : vector<8x128xf32> to vector<8x128xbf16>
    %c2_29 = arith.constant 2 : index
    %c0_30 = arith.constant 0 : index
    %c0_31 = arith.constant 0 : index
    %40 = vector.load %arg3[%c2_29, %c0_30, %c0_31] : memref<4x8x128xbf16, #tpu.memory_space<vmem>>, vector<1x8x128xbf16>
    %41 = vector.shape_cast %40 : vector<1x8x128xbf16> to vector<8x128xbf16>
    %42 = vector.shape_cast %39 : vector<8x128xbf16> to vector<1x8x128xbf16>
    tpu.vector_store %arg3[%c2_29, %c0_30, %c0_31], %42 {strides = array<i32>} : memref<4x8x128xbf16, #tpu.memory_space<vmem>>, vector<1x8x128xbf16>,
    %cst_32 = arith.constant dense<0.000000e+00> : vector<8xf32>
    %43 = vector.multi_reduction <add>, %38, %cst_32 [1] : vector<8x128xf32> to vector<8xf32>
    %44 = vector.shape_cast %43 : vector<8xf32> to vector<8x1xf32>
    %45 = arith.addf %29, %44 : vector<8x1xf32>
    %46 = arith.mulf %38, %38 : vector<8x128xf32>
    %cst_33 = arith.constant dense<0.000000e+00> : vector<8xf32>
    %47 = vector.multi_reduction <add>, %46, %cst_33 [1] : vector<8x128xf32> to vector<8xf32>
    %48 = vector.shape_cast %47 : vector<8xf32> to vector<8x1xf32>
    %49 = arith.addf %33, %48 : vector<8x1xf32>
    %c3 = arith.constant 3 : index
    %c0_34 = arith.constant 0 : index
    %c0_35 = arith.constant 0 : index
    %50 = vector.load %arg2[%c3, %c0_34, %c0_35] : memref<4x8x64xbf16, #tpu.memory_space<vmem>>, vector<1x8x64xbf16>
    %51 = vector.shape_cast %50 : vector<1x8x64xbf16> to vector<8x64xbf16>
    %c3_36 = arith.constant 3 : index
    %c0_37 = arith.constant 0 : index
    %c0_38 = arith.constant 0 : index
    %52 = vector.load %arg1[%c3_36, %c0_37, %c0_38] : memref<4x64x128xbf16, #tpu.memory_space<vmem>>, vector<1x64x128xbf16>
    %53 = vector.shape_cast %52 : vector<1x64x128xbf16> to vector<64x128xbf16>
    %cst_39 = arith.constant dense<0.000000e+00> : vector<8x128xf32>
    %54 = tpu.matmul %51, %53, %cst_39 {dimension_numbers = #tpu.dot_dimension_numbers<[1], [0], [0], [1], [0, 0, 1, 1], [], []>} : vector<8x64xbf16>, vector<64x128xbf16>, vector<8x128xf32> -> vector<8x128xf32>
    %55 = arith.truncf %54 : vector<8x128xf32> to vector<8x128xbf16>
    %c3_40 = arith.constant 3 : index
    %c0_41 = arith.constant 0 : index
    %c0_42 = arith.constant 0 : index
    %56 = vector.load %arg3[%c3_40, %c0_41, %c0_42] : memref<4x8x128xbf16, #tpu.memory_space<vmem>>, vector<1x8x128xbf16>
    %57 = vector.shape_cast %56 : vector<1x8x128xbf16> to vector<8x128xbf16>
    %58 = vector.shape_cast %55 : vector<8x128xbf16> to vector<1x8x128xbf16>
    tpu.vector_store %arg3[%c3_40, %c0_41, %c0_42], %58 {strides = array<i32>} : memref<4x8x128xbf16, #tpu.memory_space<vmem>>, vector<1x8x128xbf16>,
    %cst_43 = arith.constant dense<0.000000e+00> : vector<8xf32>
    %59 = vector.multi_reduction <add>, %54, %cst_43 [1] : vector<8x128xf32> to vector<8xf32>
    %60 = vector.shape_cast %59 : vector<8xf32> to vector<8x1xf32>
    %61 = arith.addf %45, %60 : vector<8x1xf32>
    %62 = arith.mulf %54, %54 : vector<8x128xf32>
    %cst_44 = arith.constant dense<0.000000e+00> : vector<8xf32>
    %63 = vector.multi_reduction <add>, %62, %cst_44 [1] : vector<8x128xf32> to vector<8xf32>
    %64 = vector.shape_cast %63 : vector<8xf32> to vector<8x1xf32>
    %65 = arith.addf %49, %64 : vector<8x1xf32>
    %c0_45 = arith.constant 0 : index
    %c0_46 = arith.constant 0 : index
    %c0_47 = arith.constant 0 : index
    %66 = vector.load %arg4[%c0_45, %c0_46, %c0_47] : memref<1x8x1xf32, #tpu.memory_space<vmem>>, vector<1x8x1xf32>
    %67 = vector.shape_cast %66 : vector<1x8x1xf32> to vector<8x1xf32>
    %68 = vector.shape_cast %61 : vector<8x1xf32> to vector<1x8x1xf32>
    tpu.vector_store %arg4[%c0_45, %c0_46, %c0_47], %68 {strides = array<i32>} : memref<1x8x1xf32, #tpu.memory_space<vmem>>, vector<1x8x1xf32>,
    %c0_48 = arith.constant 0 : index
    %c0_49 = arith.constant 0 : index
    %c0_50 = arith.constant 0 : index
    %69 = vector.load %arg5[%c0_48, %c0_49, %c0_50] : memref<1x8x1xf32, #tpu.memory_space<vmem>>, vector<1x8x1xf32>
    %70 = vector.shape_cast %69 : vector<1x8x1xf32> to vector<8x1xf32>
    %71 = vector.shape_cast %65 : vector<8x1xf32> to vector<1x8x1xf32>
    tpu.vector_store %arg5[%c0_48, %c0_49, %c0_50], %71 {strides = array<i32>} : memref<1x8x1xf32, #tpu.memory_space<vmem>>, vector<1x8x1xf32>,
    return
  }
  func.func @transform_0(%arg0: i32) -> (i32, i32, i32) {
    %c0_i32 = arith.constant 0 : i32
    %c0_i32_0 = arith.constant 0 : i32
    %c0_i32_1 = arith.constant 0 : i32
    return %c0_i32, %c0_i32_0, %arg0 : i32, i32, i32
  }
  func.func @transform_1(%arg0: i32) -> (i32, i32, i32) {
    %c0_i32 = arith.constant 0 : i32
    %c0_i32_0 = arith.constant 0 : i32
    %c0_i32_1 = arith.constant 0 : i32
    %c0_i32_2 = arith.constant 0 : i32
    return %c0_i32, %c0_i32_0, %c0_i32_1 : i32, i32, i32
  }
  func.func @transform_2(%arg0: i32) -> (i32, i32, i32) {
    %c0_i32 = arith.constant 0 : i32
    %c0_i32_0 = arith.constant 0 : i32
    %c0_i32_1 = arith.constant 0 : i32
    return %c0_i32, %c0_i32_0, %arg0 : i32, i32, i32
  }
  func.func @transform_3(%arg0: i32) -> (i32, i32, i32) {
    %c0_i32 = arith.constant 0 : i32
    %c0_i32_0 = arith.constant 0 : i32
    %c0_i32_1 = arith.constant 0 : i32
    return %arg0, %c0_i32, %c0_i32_0 : i32, i32, i32
  }
  func.func @transform_4(%arg0: i32) -> (i32, i32, i32) {
    %c0_i32 = arith.constant 0 : i32
    %c0_i32_0 = arith.constant 0 : i32
    %c0_i32_1 = arith.constant 0 : i32
    return %arg0, %c0_i32, %c0_i32_0 : i32, i32, i32
  }
}

module attributes {stable_mosaic.version = 11 : i64} {
  func.func @_gemm_stats_kernel(%arg0: i32, %arg1: memref<4x32x512xbf16, #tpu.memory_space<vmem>>, %arg2: memref<4x4x32xbf16, #tpu.memory_space<vmem>>, %arg3: memref<4x4x512xbf16, #tpu.memory_space<vmem>>, %arg4: memref<1x4x1xf32, #tpu.memory_space<vmem>>, %arg5: memref<1x4x1xf32, #tpu.memory_space<vmem>>) attributes {dimension_semantics = [#tpu.dimension_semantics<parallel>], iteration_bounds = array<i64: 1>, scalar_prefetch = 0 : i64, scratch_operands = 0 : i64, tpu.core_type = #tpu.core_type<tc>, window_params = [{transform_indices = @transform_0, window_bounds = array<i64: 4, 32, 512>}, {pipeline_mode = #tpu.pipeline_mode<synchronous>, transform_indices = @transform_1, window_bounds = array<i64: 4, 4, 32>}, {transform_indices = @transform_2, window_bounds = array<i64: 4, 4, 512>}, {transform_indices = @transform_3, window_bounds = array<i64: 1, 4, 1>}, {transform_indices = @transform_4, window_bounds = array<i64: 1, 4, 1>}]} {
    %cst = arith.constant 0.000000e+00 : f32
    %0 = vector.broadcast %cst : f32 to vector<4x1xf32>
    %cst_0 = arith.constant 0.000000e+00 : f32
    %1 = vector.broadcast %cst_0 : f32 to vector<4x1xf32>
    %c0 = arith.constant 0 : index
    %c0_1 = arith.constant 0 : index
    %c0_2 = arith.constant 0 : index
    %2 = vector.load %arg2[%c0, %c0_1, %c0_2] : memref<4x4x32xbf16, #tpu.memory_space<vmem>>, vector<1x4x32xbf16>
    %3 = vector.shape_cast %2 : vector<1x4x32xbf16> to vector<4x32xbf16>
    %c0_3 = arith.constant 0 : index
    %c0_4 = arith.constant 0 : index
    %c0_5 = arith.constant 0 : index
    %4 = vector.load %arg1[%c0_3, %c0_4, %c0_5] : memref<4x32x512xbf16, #tpu.memory_space<vmem>>, vector<1x32x512xbf16>
    %5 = vector.shape_cast %4 : vector<1x32x512xbf16> to vector<32x512xbf16>
    %cst_6 = arith.constant dense<0.000000e+00> : vector<4x512xf32>
    %6 = tpu.matmul %3, %5, %cst_6 {dimension_numbers = #tpu.dot_dimension_numbers<[1], [0], [0], [1], [0, 0, 1, 1], [], []>} : vector<4x32xbf16>, vector<32x512xbf16>, vector<4x512xf32> -> vector<4x512xf32>
    %7 = arith.truncf %6 : vector<4x512xf32> to vector<4x512xbf16>
    %c0_7 = arith.constant 0 : index
    %c0_8 = arith.constant 0 : index
    %c0_9 = arith.constant 0 : index
    %8 = vector.load %arg3[%c0_7, %c0_8, %c0_9] : memref<4x4x512xbf16, #tpu.memory_space<vmem>>, vector<1x4x512xbf16>
    %9 = vector.shape_cast %8 : vector<1x4x512xbf16> to vector<4x512xbf16>
    %10 = vector.shape_cast %7 : vector<4x512xbf16> to vector<1x4x512xbf16>
    tpu.vector_store %arg3[%c0_7, %c0_8, %c0_9], %10 {strides = array<i32>} : memref<4x4x512xbf16, #tpu.memory_space<vmem>>, vector<1x4x512xbf16>,
    %cst_10 = arith.constant dense<0.000000e+00> : vector<4xf32>
    %11 = vector.multi_reduction <add>, %6, %cst_10 [1] : vector<4x512xf32> to vector<4xf32>
    %12 = vector.shape_cast %11 : vector<4xf32> to vector<4x1xf32>
    %13 = arith.addf %0, %12 : vector<4x1xf32>
    %14 = arith.mulf %6, %6 : vector<4x512xf32>
    %cst_11 = arith.constant dense<0.000000e+00> : vector<4xf32>
    %15 = vector.multi_reduction <add>, %14, %cst_11 [1] : vector<4x512xf32> to vector<4xf32>
    %16 = vector.shape_cast %15 : vector<4xf32> to vector<4x1xf32>
    %17 = arith.addf %1, %16 : vector<4x1xf32>
    %c1 = arith.constant 1 : index
    %c0_12 = arith.constant 0 : index
    %c0_13 = arith.constant 0 : index
    %18 = vector.load %arg2[%c1, %c0_12, %c0_13] : memref<4x4x32xbf16, #tpu.memory_space<vmem>>, vector<1x4x32xbf16>
    %19 = vector.shape_cast %18 : vector<1x4x32xbf16> to vector<4x32xbf16>
    %c1_14 = arith.constant 1 : index
    %c0_15 = arith.constant 0 : index
    %c0_16 = arith.constant 0 : index
    %20 = vector.load %arg1[%c1_14, %c0_15, %c0_16] : memref<4x32x512xbf16, #tpu.memory_space<vmem>>, vector<1x32x512xbf16>
    %21 = vector.shape_cast %20 : vector<1x32x512xbf16> to vector<32x512xbf16>
    %cst_17 = arith.constant dense<0.000000e+00> : vector<4x512xf32>
    %22 = tpu.matmul %19, %21, %cst_17 {dimension_numbers = #tpu.dot_dimension_numbers<[1], [0], [0], [1], [0, 0, 1, 1], [], []>} : vector<4x32xbf16>, vector<32x512xbf16>, vector<4x512xf32> -> vector<4x512xf32>
    %23 = arith.truncf %22 : vector<4x512xf32> to vector<4x512xbf16>
    %c1_18 = arith.constant 1 : index
    %c0_19 = arith.constant 0 : index
    %c0_20 = arith.constant 0 : index
    %24 = vector.load %arg3[%c1_18, %c0_19, %c0_20] : memref<4x4x512xbf16, #tpu.memory_space<vmem>>, vector<1x4x512xbf16>
    %25 = vector.shape_cast %24 : vector<1x4x512xbf16> to vector<4x512xbf16>
    %26 = vector.shape_cast %23 : vector<4x512xbf16> to vector<1x4x512xbf16>
    tpu.vector_store %arg3[%c1_18, %c0_19, %c0_20], %26 {strides = array<i32>} : memref<4x4x512xbf16, #tpu.memory_space<vmem>>, vector<1x4x512xbf16>,
    %cst_21 = arith.constant dense<0.000000e+00> : vector<4xf32>
    %27 = vector.multi_reduction <add>, %22, %cst_21 [1] : vector<4x512xf32> to vector<4xf32>
    %28 = vector.shape_cast %27 : vector<4xf32> to vector<4x1xf32>
    %29 = arith.addf %13, %28 : vector<4x1xf32>
    %30 = arith.mulf %22, %22 : vector<4x512xf32>
    %cst_22 = arith.constant dense<0.000000e+00> : vector<4xf32>
    %31 = vector.multi_reduction <add>, %30, %cst_22 [1] : vector<4x512xf32> to vector<4xf32>
    %32 = vector.shape_cast %31 : vector<4xf32> to vector<4x1xf32>
    %33 = arith.addf %17, %32 : vector<4x1xf32>
    %c2 = arith.constant 2 : index
    %c0_23 = arith.constant 0 : index
    %c0_24 = arith.constant 0 : index
    %34 = vector.load %arg2[%c2, %c0_23, %c0_24] : memref<4x4x32xbf16, #tpu.memory_space<vmem>>, vector<1x4x32xbf16>
    %35 = vector.shape_cast %34 : vector<1x4x32xbf16> to vector<4x32xbf16>
    %c2_25 = arith.constant 2 : index
    %c0_26 = arith.constant 0 : index
    %c0_27 = arith.constant 0 : index
    %36 = vector.load %arg1[%c2_25, %c0_26, %c0_27] : memref<4x32x512xbf16, #tpu.memory_space<vmem>>, vector<1x32x512xbf16>
    %37 = vector.shape_cast %36 : vector<1x32x512xbf16> to vector<32x512xbf16>
    %cst_28 = arith.constant dense<0.000000e+00> : vector<4x512xf32>
    %38 = tpu.matmul %35, %37, %cst_28 {dimension_numbers = #tpu.dot_dimension_numbers<[1], [0], [0], [1], [0, 0, 1, 1], [], []>} : vector<4x32xbf16>, vector<32x512xbf16>, vector<4x512xf32> -> vector<4x512xf32>
    %39 = arith.truncf %38 : vector<4x512xf32> to vector<4x512xbf16>
    %c2_29 = arith.constant 2 : index
    %c0_30 = arith.constant 0 : index
    %c0_31 = arith.constant 0 : index
    %40 = vector.load %arg3[%c2_29, %c0_30, %c0_31] : memref<4x4x512xbf16, #tpu.memory_space<vmem>>, vector<1x4x512xbf16>
    %41 = vector.shape_cast %40 : vector<1x4x512xbf16> to vector<4x512xbf16>
    %42 = vector.shape_cast %39 : vector<4x512xbf16> to vector<1x4x512xbf16>
    tpu.vector_store %arg3[%c2_29, %c0_30, %c0_31], %42 {strides = array<i32>} : memref<4x4x512xbf16, #tpu.memory_space<vmem>>, vector<1x4x512xbf16>,
    %cst_32 = arith.constant dense<0.000000e+00> : vector<4xf32>
    %43 = vector.multi_reduction <add>, %38, %cst_32 [1] : vector<4x512xf32> to vector<4xf32>
    %44 = vector.shape_cast %43 : vector<4xf32> to vector<4x1xf32>
    %45 = arith.addf %29, %44 : vector<4x1xf32>
    %46 = arith.mulf %38, %38 : vector<4x512xf32>
    %cst_33 = arith.constant dense<0.000000e+00> : vector<4xf32>
    %47 = vector.multi_reduction <add>, %46, %cst_33 [1] : vector<4x512xf32> to vector<4xf32>
    %48 = vector.shape_cast %47 : vector<4xf32> to vector<4x1xf32>
    %49 = arith.addf %33, %48 : vector<4x1xf32>
    %c3 = arith.constant 3 : index
    %c0_34 = arith.constant 0 : index
    %c0_35 = arith.constant 0 : index
    %50 = vector.load %arg2[%c3, %c0_34, %c0_35] : memref<4x4x32xbf16, #tpu.memory_space<vmem>>, vector<1x4x32xbf16>
    %51 = vector.shape_cast %50 : vector<1x4x32xbf16> to vector<4x32xbf16>
    %c3_36 = arith.constant 3 : index
    %c0_37 = arith.constant 0 : index
    %c0_38 = arith.constant 0 : index
    %52 = vector.load %arg1[%c3_36, %c0_37, %c0_38] : memref<4x32x512xbf16, #tpu.memory_space<vmem>>, vector<1x32x512xbf16>
    %53 = vector.shape_cast %52 : vector<1x32x512xbf16> to vector<32x512xbf16>
    %cst_39 = arith.constant dense<0.000000e+00> : vector<4x512xf32>
    %54 = tpu.matmul %51, %53, %cst_39 {dimension_numbers = #tpu.dot_dimension_numbers<[1], [0], [0], [1], [0, 0, 1, 1], [], []>} : vector<4x32xbf16>, vector<32x512xbf16>, vector<4x512xf32> -> vector<4x512xf32>
    %55 = arith.truncf %54 : vector<4x512xf32> to vector<4x512xbf16>
    %c3_40 = arith.constant 3 : index
    %c0_41 = arith.constant 0 : index
    %c0_42 = arith.constant 0 : index
    %56 = vector.load %arg3[%c3_40, %c0_41, %c0_42] : memref<4x4x512xbf16, #tpu.memory_space<vmem>>, vector<1x4x512xbf16>
    %57 = vector.shape_cast %56 : vector<1x4x512xbf16> to vector<4x512xbf16>
    %58 = vector.shape_cast %55 : vector<4x512xbf16> to vector<1x4x512xbf16>
    tpu.vector_store %arg3[%c3_40, %c0_41, %c0_42], %58 {strides = array<i32>} : memref<4x4x512xbf16, #tpu.memory_space<vmem>>, vector<1x4x512xbf16>,
    %cst_43 = arith.constant dense<0.000000e+00> : vector<4xf32>
    %59 = vector.multi_reduction <add>, %54, %cst_43 [1] : vector<4x512xf32> to vector<4xf32>
    %60 = vector.shape_cast %59 : vector<4xf32> to vector<4x1xf32>
    %61 = arith.addf %45, %60 : vector<4x1xf32>
    %62 = arith.mulf %54, %54 : vector<4x512xf32>
    %cst_44 = arith.constant dense<0.000000e+00> : vector<4xf32>
    %63 = vector.multi_reduction <add>, %62, %cst_44 [1] : vector<4x512xf32> to vector<4xf32>
    %64 = vector.shape_cast %63 : vector<4xf32> to vector<4x1xf32>
    %65 = arith.addf %49, %64 : vector<4x1xf32>
    %c0_45 = arith.constant 0 : index
    %c0_46 = arith.constant 0 : index
    %c0_47 = arith.constant 0 : index
    %66 = vector.load %arg4[%c0_45, %c0_46, %c0_47] : memref<1x4x1xf32, #tpu.memory_space<vmem>>, vector<1x4x1xf32>
    %67 = vector.shape_cast %66 : vector<1x4x1xf32> to vector<4x1xf32>
    %68 = vector.shape_cast %61 : vector<4x1xf32> to vector<1x4x1xf32>
    tpu.vector_store %arg4[%c0_45, %c0_46, %c0_47], %68 {strides = array<i32>} : memref<1x4x1xf32, #tpu.memory_space<vmem>>, vector<1x4x1xf32>,
    %c0_48 = arith.constant 0 : index
    %c0_49 = arith.constant 0 : index
    %c0_50 = arith.constant 0 : index
    %69 = vector.load %arg5[%c0_48, %c0_49, %c0_50] : memref<1x4x1xf32, #tpu.memory_space<vmem>>, vector<1x4x1xf32>
    %70 = vector.shape_cast %69 : vector<1x4x1xf32> to vector<4x1xf32>
    %71 = vector.shape_cast %65 : vector<4x1xf32> to vector<1x4x1xf32>
    tpu.vector_store %arg5[%c0_48, %c0_49, %c0_50], %71 {strides = array<i32>} : memref<1x4x1xf32, #tpu.memory_space<vmem>>, vector<1x4x1xf32>,
    return
  }
  func.func @transform_0(%arg0: i32) -> (i32, i32, i32) {
    %c0_i32 = arith.constant 0 : i32
    %c0_i32_0 = arith.constant 0 : i32
    %c0_i32_1 = arith.constant 0 : i32
    return %c0_i32, %c0_i32_0, %arg0 : i32, i32, i32
  }
  func.func @transform_1(%arg0: i32) -> (i32, i32, i32) {
    %c0_i32 = arith.constant 0 : i32
    %c0_i32_0 = arith.constant 0 : i32
    %c0_i32_1 = arith.constant 0 : i32
    %c0_i32_2 = arith.constant 0 : i32
    return %c0_i32, %c0_i32_0, %c0_i32_1 : i32, i32, i32
  }
  func.func @transform_2(%arg0: i32) -> (i32, i32, i32) {
    %c0_i32 = arith.constant 0 : i32
    %c0_i32_0 = arith.constant 0 : i32
    %c0_i32_1 = arith.constant 0 : i32
    return %c0_i32, %c0_i32_0, %arg0 : i32, i32, i32
  }
  func.func @transform_3(%arg0: i32) -> (i32, i32, i32) {
    %c0_i32 = arith.constant 0 : i32
    %c0_i32_0 = arith.constant 0 : i32
    %c0_i32_1 = arith.constant 0 : i32
    return %arg0, %c0_i32, %c0_i32_0 : i32, i32, i32
  }
  func.func @transform_4(%arg0: i32) -> (i32, i32, i32) {
    %c0_i32 = arith.constant 0 : i32
    %c0_i32_0 = arith.constant 0 : i32
    %c0_i32_1 = arith.constant 0 : i32
    return %arg0, %c0_i32, %c0_i32_0 : i32, i32, i32
  }
}

module attributes {stable_mosaic.version = 11 : i64} {
  func.func @_gemm_bias_act_kernel(%arg0: i32, %arg1: memref<4x16x1024xbf16, #tpu.memory_space<vmem>>, %arg2: memref<4x3x16xbf16, #tpu.memory_space<vmem>>, %arg3: memref<3x1xf32, #tpu.memory_space<vmem>>, %arg4: memref<4x3x1024xf32, #tpu.memory_space<vmem>>) attributes {dimension_semantics = [#tpu.dimension_semantics<parallel>], iteration_bounds = array<i64: 2>, scalar_prefetch = 0 : i64, scratch_operands = 0 : i64, tpu.core_type = #tpu.core_type<tc>, window_params = [{transform_indices = @transform_0, window_bounds = array<i64: 4, 16, 1024>}, {pipeline_mode = #tpu.pipeline_mode<synchronous>, transform_indices = @transform_1, window_bounds = array<i64: 4, 3, 16>}, {pipeline_mode = #tpu.pipeline_mode<synchronous>, transform_indices = @transform_2, window_bounds = array<i64: 3, 1>}, {transform_indices = @transform_3, window_bounds = array<i64: 4, 3, 1024>}]} {
    %c0 = arith.constant 0 : index
    %c0_0 = arith.constant 0 : index
    %c0_1 = arith.constant 0 : index
    %0 = vector.load %arg2[%c0, %c0_0, %c0_1] : memref<4x3x16xbf16, #tpu.memory_space<vmem>>, vector<1x3x16xbf16>
    %1 = vector.shape_cast %0 : vector<1x3x16xbf16> to vector<3x16xbf16>
    %c0_2 = arith.constant 0 : index
    %c0_3 = arith.constant 0 : index
    %c0_4 = arith.constant 0 : index
    %2 = vector.load %arg1[%c0_2, %c0_3, %c0_4] : memref<4x16x1024xbf16, #tpu.memory_space<vmem>>, vector<1x16x1024xbf16>
    %3 = vector.shape_cast %2 : vector<1x16x1024xbf16> to vector<16x1024xbf16>
    %cst = arith.constant dense<0.000000e+00> : vector<3x1024xf32>
    %4 = tpu.matmul %1, %3, %cst {dimension_numbers = #tpu.dot_dimension_numbers<[1], [0], [0], [1], [0, 0, 1, 1], [], []>} : vector<3x16xbf16>, vector<16x1024xbf16>, vector<3x1024xf32> -> vector<3x1024xf32>
    %c0_5 = arith.constant 0 : index
    %c0_6 = arith.constant 0 : index
    %5 = vector.load %arg3[%c0_5, %c0_6] : memref<3x1xf32, #tpu.memory_space<vmem>>, vector<3x1xf32>
    %6 = vector.broadcast %5 : vector<3x1xf32> to vector<3x1024xf32>
    %7 = arith.addf %4, %6 : vector<3x1024xf32>
    %8 = math.tanh %7 : vector<3x1024xf32>
    %c0_7 = arith.constant 0 : index
    %c0_8 = arith.constant 0 : index
    %c0_9 = arith.constant 0 : index
    %9 = vector.load %arg4[%c0_7, %c0_8, %c0_9] : memref<4x3x1024xf32, #tpu.memory_space<vmem>>, vector<1x3x1024xf32>
    %10 = vector.shape_cast %9 : vector<1x3x1024xf32> to vector<3x1024xf32>
    %11 = vector.shape_cast %8 : vector<3x1024xf32> to vector<1x3x1024xf32>
    tpu.vector_store %arg4[%c0_7, %c0_8, %c0_9], %11 {strides = array<i32>} : memref<4x3x1024xf32, #tpu.memory_space<vmem>>, vector<1x3x1024xf32>,
    %c1 = arith.constant 1 : index
    %c0_10 = arith.constant 0 : index
    %c0_11 = arith.constant 0 : index
    %12 = vector.load %arg2[%c1, %c0_10, %c0_11] : memref<4x3x16xbf16, #tpu.memory_space<vmem>>, vector<1x3x16xbf16>
    %13 = vector.shape_cast %12 : vector<1x3x16xbf16> to vector<3x16xbf16>
    %c1_12 = arith.constant 1 : index
    %c0_13 = arith.constant 0 : index
    %c0_14 = arith.constant 0 : index
    %14 = vector.load %arg1[%c1_12, %c0_13, %c0_14] : memref<4x16x1024xbf16, #tpu.memory_space<vmem>>, vector<1x16x1024xbf16>
    %15 = vector.shape_cast %14 : vector<1x16x1024xbf16> to vector<16x1024xbf16>
    %cst_15 = arith.constant dense<0.000000e+00> : vector<3x1024xf32>
    %16 = tpu.matmul %13, %15, %cst_15 {dimension_numbers = #tpu.dot_dimension_numbers<[1], [0], [0], [1], [0, 0, 1, 1], [], []>} : vector<3x16xbf16>, vector<16x1024xbf16>, vector<3x1024xf32> -> vector<3x1024xf32>
    %c0_16 = arith.constant 0 : index
    %c0_17 = arith.constant 0 : index
    %17 = vector.load %arg3[%c0_16, %c0_17] : memref<3x1xf32, #tpu.memory_space<vmem>>, vector<3x1xf32>
    %18 = vector.broadcast %17 : vector<3x1xf32> to vector<3x1024xf32>
    %19 = arith.addf %16, %18 : vector<3x1024xf32>
    %20 = math.tanh %19 : vector<3x1024xf32>
    %c1_18 = arith.constant 1 : index
    %c0_19 = arith.constant 0 : index
    %c0_20 = arith.constant 0 : index
    %21 = vector.load %arg4[%c1_18, %c0_19, %c0_20] : memref<4x3x1024xf32, #tpu.memory_space<vmem>>, vector<1x3x1024xf32>
    %22 = vector.shape_cast %21 : vector<1x3x1024xf32> to vector<3x1024xf32>
    %23 = vector.shape_cast %20 : vector<3x1024xf32> to vector<1x3x1024xf32>
    tpu.vector_store %arg4[%c1_18, %c0_19, %c0_20], %23 {strides = array<i32>} : memref<4x3x1024xf32, #tpu.memory_space<vmem>>, vector<1x3x1024xf32>,
    %c2 = arith.constant 2 : index
    %c0_21 = arith.constant 0 : index
    %c0_22 = arith.constant 0 : index
    %24 = vector.load %arg2[%c2, %c0_21, %c0_22] : memref<4x3x16xbf16, #tpu.memory_space<vmem>>, vector<1x3x16xbf16>
    %25 = vector.shape_cast %24 : vector<1x3x16xbf16> to vector<3x16xbf16>
    %c2_23 = arith.constant 2 : index
    %c0_24 = arith.constant 0 : index
    %c0_25 = arith.constant 0 : index
    %26 = vector.load %arg1[%c2_23, %c0_24, %c0_25] : memref<4x16x1024xbf16, #tpu.memory_space<vmem>>, vector<1x16x1024xbf16>
    %27 = vector.shape_cast %26 : vector<1x16x1024xbf16> to vector<16x1024xbf16>
    %cst_26 = arith.constant dense<0.000000e+00> : vector<3x1024xf32>
    %28 = tpu.matmul %25, %27, %cst_26 {dimension_numbers = #tpu.dot_dimension_numbers<[1], [0], [0], [1], [0, 0, 1, 1], [], []>} : vector<3x16xbf16>, vector<16x1024xbf16>, vector<3x1024xf32> -> vector<3x1024xf32>
    %c0_27 = arith.constant 0 : index
    %c0_28 = arith.constant 0 : index
    %29 = vector.load %arg3[%c0_27, %c0_28] : memref<3x1xf32, #tpu.memory_space<vmem>>, vector<3x1xf32>
    %30 = vector.broadcast %29 : vector<3x1xf32> to vector<3x1024xf32>
    %31 = arith.addf %28, %30 : vector<3x1024xf32>
    %32 = math.tanh %31 : vector<3x1024xf32>
    %c2_29 = arith.constant 2 : index
    %c0_30 = arith.constant 0 : index
    %c0_31 = arith.constant 0 : index
    %33 = vector.load %arg4[%c2_29, %c0_30, %c0_31] : memref<4x3x1024xf32, #tpu.memory_space<vmem>>, vector<1x3x1024xf32>
    %34 = vector.shape_cast %33 : vector<1x3x1024xf32> to vector<3x1024xf32>
    %35 = vector.shape_cast %32 : vector<3x1024xf32> to vector<1x3x1024xf32>
    tpu.vector_store %arg4[%c2_29, %c0_30, %c0_31], %35 {strides = array<i32>} : memref<4x3x1024xf32, #tpu.memory_space<vmem>>, vector<1x3x1024xf32>,
    %c3 = arith.constant 3 : index
    %c0_32 = arith.constant 0 : index
    %c0_33 = arith.constant 0 : index
    %36 = vector.load %arg2[%c3, %c0_32, %c0_33] : memref<4x3x16xbf16, #tpu.memory_space<vmem>>, vector<1x3x16xbf16>
    %37 = vector.shape_cast %36 : vector<1x3x16xbf16> to vector<3x16xbf16>
    %c3_34 = arith.constant 3 : index
    %c0_35 = arith.constant 0 : index
    %c0_36 = arith.constant 0 : index
    %38 = vector.load %arg1[%c3_34, %c0_35, %c0_36] : memref<4x16x1024xbf16, #tpu.memory_space<vmem>>, vector<1x16x1024xbf16>
    %39 = vector.shape_cast %38 : vector<1x16x1024xbf16> to vector<16x1024xbf16>
    %cst_37 = arith.constant dense<0.000000e+00> : vector<3x1024xf32>
    %40 = tpu.matmul %37, %39, %cst_37 {dimension_numbers = #tpu.dot_dimension_numbers<[1], [0], [0], [1], [0, 0, 1, 1], [], []>} : vector<3x16xbf16>, vector<16x1024xbf16>, vector<3x1024xf32> -> vector<3x1024xf32>
    %c0_38 = arith.constant 0 : index
    %c0_39 = arith.constant 0 : index
    %41 = vector.load %arg3[%c0_38, %c0_39] : memref<3x1xf32, #tpu.memory_space<vmem>>, vector<3x1xf32>
    %42 = vector.broadcast %41 : vector<3x1xf32> to vector<3x1024xf32>
    %43 = arith.addf %40, %42 : vector<3x1024xf32>
    %44 = math.tanh %43 : vector<3x1024xf32>
    %c3_40 = arith.constant 3 : index
    %c0_41 = arith.constant 0 : index
    %c0_42 = arith.constant 0 : index
    %45 = vector.load %arg4[%c3_40, %c0_41, %c0_42] : memref<4x3x1024xf32, #tpu.memory_space<vmem>>, vector<1x3x1024xf32>
    %46 = vector.shape_cast %45 : vector<1x3x1024xf32> to vector<3x1024xf32>
    %47 = vector.shape_cast %44 : vector<3x1024xf32> to vector<1x3x1024xf32>
    tpu.vector_store %arg4[%c3_40, %c0_41, %c0_42], %47 {strides = array<i32>} : memref<4x3x1024xf32, #tpu.memory_space<vmem>>, vector<1x3x1024xf32>,
    return
  }
  func.func @transform_0(%arg0: i32) -> (i32, i32, i32) {
    %c0_i32 = arith.constant 0 : i32
    %c0_i32_0 = arith.constant 0 : i32
    %c0_i32_1 = arith.constant 0 : i32
    return %c0_i32, %c0_i32_0, %arg0 : i32, i32, i32
  }
  func.func @transform_1(%arg0: i32) -> (i32, i32, i32) {
    %c0_i32 = arith.constant 0 : i32
    %c0_i32_0 = arith.constant 0 : i32
    %c0_i32_1 = arith.constant 0 : i32
    %c0_i32_2 = arith.constant 0 : i32
    return %c0_i32, %c0_i32_0, %c0_i32_1 : i32, i32, i32
  }
  func.func @transform_2(%arg0: i32) -> (i32, i32) {
    %c0_i32 = arith.constant 0 : i32
    %c0_i32_0 = arith.constant 0 : i32
    %c0_i32_1 = arith.constant 0 : i32
    return %c0_i32, %c0_i32_0 : i32, i32
  }
  func.func @transform_3(%arg0: i32) -> (i32, i32, i32) {
    %c0_i32 = arith.constant 0 : i32
    %c0_i32_0 = arith.constant 0 : i32
    %c0_i32_1 = arith.constant 0 : i32
    return %c0_i32, %c0_i32_0, %arg0 : i32, i32, i32
  }
}

</mosaic_0001>

<llo_original>
// kernel: data_generator_forward.3
$region0: #{data_generator_forward.3}
  #allocation0 [shape = 'u32[]', space=smem, size = 0x4, offset = 0x4, fixed_abs, tag = 'smem constant byte address 0x4 - core index']
  #allocation1 [shape = 'u32[144,128]{1,0:T(1,128)}', space=vmem, size = 0x12000, scoped, tag = 'internal scratch']
  %s0 = inlined_call_operand.vmem [shape: bf16[4,64,128], index: 0, kind: input, shape index: {}]
  %s1 = inlined_call_operand.hbm [shape: bf16[4,8,64], index: 1, kind: input, shape index: {}]
  %s2 = inlined_call_operand.vmem [shape: bf16[4,8,128], index: 2, kind: output, shape index: {0}]
  %s3 = inlined_call_operand.vmem [shape: f32[1,8,1], index: 3, kind: output, shape index: {1}]
  %s4 = inlined_call_operand.vmem [shape: f32[1,8,1], index: 4, kind: output, shape index: {2}]
  %5 = xla_tuple %s2, %s3, %s4
  %s6 = sld [smem:[#allocation0]]
  $region38: #{data_generator_forward.3} parent=0
    _
  %s8 = ssub.s32 1, %s6
  %s9 = scalar_select 0, %s8, %s6
  $region1: #{data_generator_forward.3} parent=0
    #allocation2 [shape = 'u8[8192]{0}', space=vmem, size = 0x2000, scoped, tag = 'input window, operand 1, single buffered']
    #allocation3 [shape = 's32[1]{0}', space=sflag, size = 0x4, scoped, tag = 'scoped memory for data_generator_forward.3']
    %10 = vsyncpa [#allocation3], 0
    // Predicated region
    $region2: #{data_generator_forward.3} parent=1 // pred_check
      _
    $region3: #{data_generator_forward.3} parent=1 // pred_check_branch
      %12 = sbr.rel (0) target = $region5
    $region4: #{data_generator_forward.3} parent=1 // pred_region
      _
    $region5: #{data_generator_forward.3} parent=1 // pred_fallthru
      _
    // Predicated region
    $region6: #{data_generator_forward.3} parent=1 // pred_check
      _
    $region7: #{data_generator_forward.3} parent=1 // pred_check_branch
      %14 = sbr.rel (0) target = $region9
    $region8: #{data_generator_forward.3} parent=1 // pred_region
      %s16 = ssub.s32 256, 256
      %17 = vsyncadd [#allocation3], %s16
      %s18 = sshll.u32 [#allocation2], 4
      %s19 = int_to_ptr.vmem [resolvable:$true] %s18
      %24 = dma.hbm_to_vmem [thread:$0]  %s1, 256, %s19, [#allocation3], 64, 64, 4
    $region9: #{data_generator_forward.3} parent=1 // pred_fallthru
      _
    // Predicated region
    $region10: #{data_generator_forward.3} parent=1 // pred_check
      _
    $region11: #{data_generator_forward.3} parent=1 // pred_check_branch
      %26 = sbr.rel (0) target = $region13
    $region12: #{data_generator_forward.3} parent=1 // pred_region
      %27 = dma.done [#allocation3], 256
    $region13: #{data_generator_forward.3} parent=1 // pred_fallthru
      _
    %v29 = vld [vmem:[#allocation2] sm:$0xf]
    %v30 = vld [vmem:[%s0] sm:$0xf]
    %v31 = vld [vmem:[%s0 + $0x4] sm:$0xf]
    %v32 = vld [vmem:[%s0 + $0x8] sm:$0xf]
    %v33 = vld [vmem:[%s0 + $0xc] sm:$0xf]
    %v34 = vld [vmem:[%s0 + $0x10] sm:$0xf]
    %v35 = vld [vmem:[%s0 + $0x14] sm:$0xf]
    %v36 = vld [vmem:[%s0 + $0x18] sm:$0xf]
    %v37 = vld [vmem:[%s0 + $0x1c] sm:$0xf]
    %v46 = vunpack.c.l.b16 %v30
    %v47 = vunpack.c.l.b16 %v31
    %v48 = vunpack.c.l.b16 %v32
    %v49 = vunpack.c.l.b16 %v33
    %v50 = vunpack.c.l.b16 %v34
    %v51 = vunpack.c.l.b16 %v35
    %v52 = vunpack.c.l.b16 %v36
    %v53 = vunpack.c.l.b16 %v37
    %v54 = vpack.c.b16 %v47, %v46
    %v55 = vpack.c.b16 %v49, %v48
    %v56 = vpack.c.b16 %v51, %v50
    %v57 = vpack.c.b16 %v53, %v52
    %vm62 = vcmask 523264
    %v64 = vsel %vm62, %v29, 0
    %66 = vmatprep.subr.bf16.mxu0 0
    %67 = vmatpush1.bf16.msra.mxu0 0
    %68 = vmatprep.subr.bf16.mxu0 0
    %69 = vmatpush1.bf16.msra.mxu0 0
    %70 = vmatprep.subr.bf16.mxu0 0
    %71 = vmatpush1.bf16.msra.mxu0 0
    %72 = vmatprep.subr.bf16.mxu0 0
    %73 = vmatpush1.bf16.msra.mxu0 0
    %74 = vmatprep.subr.bf16.mxu0 0
    %75 = vmatpush1.bf16.msra.mxu0 %v57
    %76 = vmatprep.subr.bf16.mxu0 0
    %77 = vmatpush1.bf16.msra.mxu0 %v56
    %78 = vmatprep.subr.bf16.mxu0 0
    %79 = vmatpush1.bf16.msra.mxu0 %v55
    %80 = vmatprep.subr.bf16.mxu0 0
    %81 = vmatpush1.bf16.msra.mxu0 %v54
    %82 = vmatprep.subr.bf16.mxu0 0
    %83 = vmatpush2.bf16.msra.mxu0 0
    %84 = vmatprep.subr.bf16.mxu0 0
    %85 = vmatpush2.bf16.msra.mxu0 0
    %86 = vmatprep.subr.bf16.mxu0 0
    %87 = vmatpush2.bf16.msra.mxu0 0
    %88 = vmatprep.subr.bf16.mxu0 0
    %89 = vmatpush2.bf16.msra.mxu0 0
    %90 = vmatprep.subr.bf16.mxu0 0
    %91 = vmatpush2.bf16.msra.mxu0 0
    %92 = vmatprep.subr.bf16.mxu0 0
    %93 = vmatpush2.bf16.msra.mxu0 0
    %94 = vmatprep.subr.bf16.mxu0 0
    %95 = vmatpush2.bf16.msra.mxu0 0
    %96 = vmatprep.subr.bf16.mxu0 0
    %97 = vmatpush2.bf16.msra.mxu0 0
    %98 = vmatprep.mubr.bf16.mxu0 0
    %99 = vmatmul.mubr.bf16.gmra.mxu0 %v64
    %v100 = vpop.f32.mrf.mxu0
    %v101 = vadd.f32 0.0, %v100
    %v102 = vpop.f32.mrf.mxu0
    %v103 = vpop.f32.mrf.mxu0
    %v104 = vpop.f32.mrf.mxu0
    %105 = vdwg.mxu0
    %v106 = vpack.c.bf16 %v101, %v101
    %107 = vst [vmem:[%s2] sm:$0xf] %v106
    %108 = vadd.xlane.f32.xlu0 %v101
    %v109 = vpop.xlane.xlu0 %108
    %v110 = vadd.f32 %v109, 0.0
    %v111 = vmul.f32 %v101, %v101
    %112 = vadd.xlane.f32.xlu0 %v111
    %v113 = vpop.xlane.xlu0 %112
    %v114 = vadd.f32 %v113, 0.0
    %s115 = scalar_lea.vmem [#allocation2], 4
    %v116 = vld [vmem:[%s115] sm:$0xf]
    %s117 = scalar_lea.vmem %s0, 32
    %v118 = vld [vmem:[%s117] sm:$0xf]
    %v119 = vld [vmem:[%s117 + $0x4] sm:$0xf]
    %v120 = vld [vmem:[%s117 + $0x8] sm:$0xf]
    %v121 = vld [vmem:[%s117 + $0xc] sm:$0xf]
    %v122 = vld [vmem:[%s117 + $0x10] sm:$0xf]
    %v123 = vld [vmem:[%s117 + $0x14] sm:$0xf]
    %v124 = vld [vmem:[%s117 + $0x18] sm:$0xf]
    %v125 = vld [vmem:[%s117 + $0x1c] sm:$0xf]
    %v134 = vunpack.c.l.b16 %v118
    %v135 = vunpack.c.l.b16 %v119
    %v136 = vunpack.c.l.b16 %v120
    %v137 = vunpack.c.l.b16 %v121
    %v138 = vunpack.c.l.b16 %v122
    %v139 = vunpack.c.l.b16 %v123
    %v140 = vunpack.c.l.b16 %v124
    %v141 = vunpack.c.l.b16 %v125
    %v142 = vpack.c.b16 %v135, %v134
    %v143 = vpack.c.b16 %v137, %v136
    %v144 = vpack.c.b16 %v139, %v138
    %v145 = vpack.c.b16 %v141, %v140
    %v151 = vsel %vm62, %v116, 0
    %153 = vmatprep.subr.bf16.mxu0 0
    %154 = vmatpush1.bf16.msra.mxu0 0
    %155 = vmatprep.subr.bf16.mxu0 0
    %156 = vmatpush1.bf16.msra.mxu0 0
    %157 = vmatprep.subr.bf16.mxu0 0
    %158 = vmatpush1.bf16.msra.mxu0 0
    %159 = vmatprep.subr.bf16.mxu0 0
    %160 = vmatpush1.bf16.msra.mxu0 0
    %161 = vmatprep.subr.bf16.mxu0 0
    %162 = vmatpush1.bf16.msra.mxu0 %v145
    %163 = vmatprep.subr.bf16.mxu0 0
    %164 = vmatpush1.bf16.msra.mxu0 %v144
    %165 = vmatprep.subr.bf16.mxu0 0
    %166 = vmatpush1.bf16.msra.mxu0 %v143
    %167 = vmatprep.subr.bf16.mxu0 0
    %168 = vmatpush1.bf16.msra.mxu0 %v142
    %169 = vmatprep.subr.bf16.mxu0 0
    %170 = vmatpush2.bf16.msra.mxu0 0
    %171 = vmatprep.subr.bf16.mxu0 0
    %172 = vmatpush2.bf16.msra.mxu0 0
    %173 = vmatprep.subr.bf16.mxu0 0
    %174 = vmatpush2.bf16.msra.mxu0 0
    %175 = vmatprep.subr.bf16.mxu0 0
    %176 = vmatpush2.bf16.msra.mxu0 0
    %177 = vmatprep.subr.bf16.mxu0 0
    %178 = vmatpush2.bf16.msra.mxu0 0
    %179 = vmatprep.subr.bf16.mxu0 0
    %180 = vmatpush2.bf16.msra.mxu0 0
    %181 = vmatprep.subr.bf16.mxu0 0
    %182 = vmatpush2.bf16.msra.mxu0 0
    %183 = vmatprep.subr.bf16.mxu0 0
    %184 = vmatpush2.bf16.msra.mxu0 0
    %185 = vmatprep.mubr.bf16.mxu0 0
    %186 = vmatmul.mubr.bf16.gmra.mxu0 %v151
    %v187 = vpop.f32.mrf.mxu0
    %v188 = vadd.f32 0.0, %v187
    %v189 = vpop.f32.mrf.mxu0
    %v190 = vpop.f32.mrf.mxu0
    %v191 = vpop.f32.mrf.mxu0
    %192 = vdwg.mxu0
    %v193 = vpack.c.bf16 %v188, %v188
    %s194 = scalar_lea.vmem %s2, 4
    %195 = vst [vmem:[%s194] sm:$0xf] %v193
    %196 = vadd.xlane.f32.xlu0 %v188
    %v197 = vpop.xlane.xlu0 %196
    %v198 = vadd.f32 %v110, %v197
    %v199 = vmul.f32 %v188, %v188
    %200 = vadd.xlane.f32.xlu0 %v199
    %v201 = vpop.xlane.xlu0 %200
    %v202 = vadd.f32 %v114, %v201
    %s203 = scalar_lea.vmem [#allocation2], 8
    %v204 = vld [vmem:[%s203] sm:$0xf]
    %s205 = scalar_lea.vmem %s0, 64
    %v206 = vld [vmem:[%s205] sm:$0xf]
    %v207 = vld [vmem:[%s205 + $0x4] sm:$0xf]
    %v208 = vld [vmem:[%s205 + $0x8] sm:$0xf]
    %v209 = vld [vmem:[%s205 + $0xc] sm:$0xf]
    %v210 = vld [vmem:[%s205 + $0x10] sm:$0xf]
    %v211 = vld [vmem:[%s205 + $0x14] sm:$0xf]
    %v212 = vld [vmem:[%s205 + $0x18] sm:$0xf]
    %v213 = vld [vmem:[%s205 + $0x1c] sm:$0xf]
    %v222 = vunpack.c.l.b16 %v206
    %v223 = vunpack.c.l.b16 %v207
    %v224 = vunpack.c.l.b16 %v208
    %v225 = vunpack.c.l.b16 %v209
    %v226 = vunpack.c.l.b16 %v210
    %v227 = vunpack.c.l.b16 %v211
    %v228 = vunpack.c.l.b16 %v212
    %v229 = vunpack.c.l.b16 %v213
    %v230 = vpack.c.b16 %v223, %v222
    %v231 = vpack.c.b16 %v225, %v224
    %v232 = vpack.c.b16 %v227, %v226
    %v233 = vpack.c.b16 %v229, %v228
    %v239 = vsel %vm62, %v204, 0
    %241 = vmatprep.subr.bf16.mxu0 0
    %242 = vmatpush1.bf16.msra.mxu0 0
    %243 = vmatprep.subr.bf16.mxu0 0
    %244 = vmatpush1.bf16.msra.mxu0 0
    %245 = vmatprep.subr.bf16.mxu0 0
    %246 = vmatpush1.bf16.msra.mxu0 0
    %247 = vmatprep.subr.bf16.mxu0 0
    %248 = vmatpush1.bf16.msra.mxu0 0
    %249 = vmatprep.subr.bf16.mxu0 0
    %250 = vmatpush1.bf16.msra.mxu0 %v233
    %251 = vmatprep.subr.bf16.mxu0 0
    %252 = vmatpush1.bf16.msra.mxu0 %v232
    %253 = vmatprep.subr.bf16.mxu0 0
    %254 = vmatpush1.bf16.msra.mxu0 %v231
    %255 = vmatprep.subr.bf16.mxu0 0
    %256 = vmatpush1.bf16.msra.mxu0 %v230
    %257 = vmatprep.subr.bf16.mxu0 0
    %258 = vmatpush2.bf16.msra.mxu0 0
    %259 = vmatprep.subr.bf16.mxu0 0
    %260 = vmatpush2.bf16.msra.mxu0 0
    %261 = vmatprep.subr.bf16.mxu0 0
    %262 = vmatpush2.bf16.msra.mxu0 0
    %263 = vmatprep.subr.bf16.mxu0 0
    %264 = vmatpush2.bf16.msra.mxu0 0
    %265 = vmatprep.subr.bf16.mxu0 0
    %266 = vmatpush2.bf16.msra.mxu0 0
    %267 = vmatprep.subr.bf16.mxu0 0
    %268 = vmatpush2.bf16.msra.mxu0 0
    %269 = vmatprep.subr.bf16.mxu0 0
    %270 = vmatpush2.bf16.msra.mxu0 0
    %271 = vmatprep.subr.bf16.mxu0 0
    %272 = vmatpush2.bf16.msra.mxu0 0
    %273 = vmatprep.mubr.bf16.mxu0 0
    %274 = vmatmul.mubr.bf16.gmra.mxu0 %v239
    %v275 = vpop.f32.mrf.mxu0
    %v276 = vadd.f32 0.0, %v275
    %v277 = vpop.f32.mrf.mxu0
    %v278 = vpop.f32.mrf.mxu0
    %v279 = vpop.f32.mrf.mxu0
    %280 = vdwg.mxu0
    %v281 = vpack.c.bf16 %v276, %v276
    %s282 = scalar_lea.vmem %s2, 8
    %283 = vst [vmem:[%s282] sm:$0xf] %v281
    %284 = vadd.xlane.f32.xlu0 %v276
    %v285 = vpop.xlane.xlu0 %284
    %v286 = vadd.f32 %v198, %v285
    %v287 = vmul.f32 %v276, %v276
    %288 = vadd.xlane.f32.xlu0 %v287
    %v289 = vpop.xlane.xlu0 %288
    %v290 = vadd.f32 %v202, %v289
    %s291 = scalar_lea.vmem [#allocation2], 12
    %v292 = vld [vmem:[%s291] sm:$0xf]
    %s293 = scalar_lea.vmem %s0, 96
    %v294 = vld [vmem:[%s293] sm:$0xf]
    %v295 = vld [vmem:[%s293 + $0x4] sm:$0xf]
    %v296 = vld [vmem:[%s293 + $0x8] sm:$0xf]
    %v297 = vld [vmem:[%s293 + $0xc] sm:$0xf]
    %v298 = vld [vmem:[%s293 + $0x10] sm:$0xf]
    %v299 = vld [vmem:[%s293 + $0x14] sm:$0xf]
    %v300 = vld [vmem:[%s293 + $0x18] sm:$0xf]
    %v301 = vld [vmem:[%s293 + $0x1c] sm:$0xf]
    %v310 = vunpack.c.l.b16 %v294
    %v311 = vunpack.c.l.b16 %v295
    %v312 = vunpack.c.l.b16 %v296
    %v313 = vunpack.c.l.b16 %v297
    %v314 = vunpack.c.l.b16 %v298
    %v315 = vunpack.c.l.b16 %v299
    %v316 = vunpack.c.l.b16 %v300
    %v317 = vunpack.c.l.b16 %v301
    %v318 = vpack.c.b16 %v311, %v310
    %v319 = vpack.c.b16 %v313, %v312
    %v320 = vpack.c.b16 %v315, %v314
    %v321 = vpack.c.b16 %v317, %v316
    %v327 = vsel %vm62, %v292, 0
    %329 = vmatprep.subr.bf16.mxu0 0
    %330 = vmatpush1.bf16.msra.mxu0 0
    %331 = vmatprep.subr.bf16.mxu0 0
    %332 = vmatpush1.bf16.msra.mxu0 0
    %333 = vmatprep.subr.bf16.mxu0 0
    %334 = vmatpush1.bf16.msra.mxu0 0
    %335 = vmatprep.subr.bf16.mxu0 0
    %336 = vmatpush1.bf16.msra.mxu0 0
    %337 = vmatprep.subr.bf16.mxu0 0
    %338 = vmatpush1.bf16.msra.mxu0 %v321
    %339 = vmatprep.subr.bf16.mxu0 0
    %340 = vmatpush1.bf16.msra.mxu0 %v320
    %341 = vmatprep.subr.bf16.mxu0 0
    %342 = vmatpush1.bf16.msra.mxu0 %v319
    %343 = vmatprep.subr.bf16.mxu0 0
    %344 = vmatpush1.bf16.msra.mxu0 %v318
    %345 = vmatprep.subr.bf16.mxu0 0
    %346 = vmatpush2.bf16.msra.mxu0 0
    %347 = vmatprep.subr.bf16.mxu0 0
    %348 = vmatpush2.bf16.msra.mxu0 0
    %349 = vmatprep.subr.bf16.mxu0 0
    %350 = vmatpush2.bf16.msra.mxu0 0
    %351 = vmatprep.subr.bf16.mxu0 0
    %352 = vmatpush2.bf16.msra.mxu0 0
    %353 = vmatprep.subr.bf16.mxu0 0
    %354 = vmatpush2.bf16.msra.mxu0 0
    %355 = vmatprep.subr.bf16.mxu0 0
    %356 = vmatpush2.bf16.msra.mxu0 0
    %357 = vmatprep.subr.bf16.mxu0 0
    %358 = vmatpush2.bf16.msra.mxu0 0
    %359 = vmatprep.subr.bf16.mxu0 0
    %360 = vmatpush2.bf16.msra.mxu0 0
    %361 = vmatprep.mubr.bf16.mxu0 0
    %362 = vmatmul.mubr.bf16.gmra.mxu0 %v327
    %v363 = vpop.f32.mrf.mxu0
    %v364 = vadd.f32 0.0, %v363
    %v365 = vpop.f32.mrf.mxu0
    %v366 = vpop.f32.mrf.mxu0
    %v367 = vpop.f32.mrf.mxu0
    %368 = vdwg.mxu0
    %v369 = vpack.c.bf16 %v364, %v364
    %s370 = scalar_lea.vmem %s2, 12
    %371 = vst [vmem:[%s370] sm:$0xf] %v369
    %372 = vadd.xlane.f32.xlu0 %v364
    %v373 = vpop.xlane.xlu0 %372
    %v374 = vadd.f32 %v286, %v373
    %v375 = vmul.f32 %v364, %v364
    %376 = vadd.xlane.f32.xlu0 %v375
    %v377 = vpop.xlane.xlu0 %376
    %v378 = vadd.f32 %v290, %v377
    %vm379 = vcmask 7168
    %380 = vst.msk [vmem:[%s3] sm:$0xff] %vm379, %v374
    %381 = vst.msk [vmem:[%s4] sm:$0xff] %vm379, %v378
    // Predicated region
    $region14: #{data_generator_forward.3} parent=1 // pred_check
      _
    $region15: #{data_generator_forward.3} parent=1 // pred_check_branch
      %383 = sbr.rel (0) target = $region17
    $region16: #{data_generator_forward.3} parent=1 // pred_region
      _
    $region17: #{data_generator_forward.3} parent=1 // pred_fallthru
      _
    // Predicated region
    $region18: #{data_generator_forward.3} parent=1 // pred_check
      _
    $region19: #{data_generator_forward.3} parent=1 // pred_check_branch
      %385 = sbr.rel (0) target = $region21
    $region20: #{data_generator_forward.3} parent=1 // pred_region
      _
    $region21: #{data_generator_forward.3} parent=1 // pred_fallthru
      _
    // Predicated region
    $region22: #{data_generator_forward.3} parent=1 // pred_check
      _
    $region23: #{data_generator_forward.3} parent=1 // pred_check_branch
      %387 = sbr.rel (0) target = $region25
    $region24: #{data_generator_forward.3} parent=1 // pred_region
      _
    $region25: #{data_generator_forward.3} parent=1 // pred_fallthru
      _
    // Predicated region
    $region26: #{data_generator_forward.3} parent=1 // pred_check
      _
    $region27: #{data_generator_forward.3} parent=1 // pred_check_branch
      %389 = sbr.rel (0) target = $region29
    $region28: #{data_generator_forward.3} parent=1 // pred_region
      _
    $region29: #{data_generator_forward.3} parent=1 // pred_fallthru
      _
    // Predicated region
    $region30: #{data_generator_forward.3} parent=1 // pred_check
      _
    $region31: #{data_generator_forward.3} parent=1 // pred_check_branch
      %391 = sbr.rel (0) target = $region33
    $region32: #{data_generator_forward.3} parent=1 // pred_region
      _
    $region33: #{data_generator_forward.3} parent=1 // pred_fallthru
      _
    // Predicated region
    $region34: #{data_generator_forward.3} parent=1 // pred_check
      _
    $region35: #{data_generator_forward.3} parent=1 // pred_check_branch
      %393 = sbr.rel (0) target = $region37
    $region36: #{data_generator_forward.3} parent=1 // pred_region
      _
    $region37: #{data_generator_forward.3} parent=1 // pred_fallthru
      _
    %394 = vsyncpa [#allocation3], 1

// kernel: data_generator_forward.4
$region0: #{data_generator_forward.4}
  #allocation0 [shape = 'u32[]', space=smem, size = 0x4, offset = 0x4, fixed_abs, tag = 'smem constant byte address 0x4 - core index']
  #allocation1 [shape = 'u32[144,128]{1,0:T(1,128)}', space=vmem, size = 0x12000, scoped, tag = 'internal scratch']
  %s0 = inlined_call_operand.vmem [shape: bf16[4,32,512], index: 0, kind: input, shape index: {}]
  %s1 = inlined_call_operand.hbm [shape: bf16[4,4,32], index: 1, kind: input, shape index: {}]
  %s2 = inlined_call_operand.vmem [shape: bf16[4,4,512], index: 2, kind: output, shape index: {0}]
  %s3 = inlined_call_operand.vmem [shape: f32[1,4,1], index: 3, kind: output, shape index: {1}]
  %s4 = inlined_call_operand.vmem [shape: f32[1,4,1], index: 4, kind: output, shape index: {2}]
  %5 = xla_tuple %s2, %s3, %s4
  %s6 = sld [smem:[#allocation0]]
  $region38: #{data_generator_forward.4} parent=0
    _
  %s8 = ssub.s32 1, %s6
  %s9 = scalar_select 0, %s8, %s6
  $region1: #{data_generator_forward.4} parent=0
    #allocation2 [shape = 'u8[4096]{0}', space=vmem, size = 0x1000, scoped, tag = 'input window, operand 1, single buffered']
    #allocation3 [shape = 's32[1]{0}', space=sflag, size = 0x4, scoped, tag = 'scoped memory for data_generator_forward.4']
    %10 = vsyncpa [#allocation3], 0
    // Predicated region
    $region2: #{data_generator_forward.4} parent=1 // pred_check
      _
    $region3: #{data_generator_forward.4} parent=1 // pred_check_branch
      %12 = sbr.rel (0) target = $region5
    $region4: #{data_generator_forward.4} parent=1 // pred_region
      _
    $region5: #{data_generator_forward.4} parent=1 // pred_fallthru
      _
    // Predicated region
    $region6: #{data_generator_forward.4} parent=1 // pred_check
      _
    $region7: #{data_generator_forward.4} parent=1 // pred_check_branch
      %14 = sbr.rel (0) target = $region9
    $region8: #{data_generator_forward.4} parent=1 // pred_region
      %s16 = ssub.s32 128, 128
      %17 = vsyncadd [#allocation3], %s16
      %s18 = sshll.u32 [#allocation2], 4
      %s19 = int_to_ptr.vmem [resolvable:$true] %s18
      %24 = dma.hbm_to_vmem [thread:$0]  %s1, 128, %s19, [#allocation3], 32, 32, 2
    $region9: #{data_generator_forward.4} parent=1 // pred_fallthru
      _
    // Predicated region
    $region10: #{data_generator_forward.4} parent=1 // pred_check
      _
    $region11: #{data_generator_forward.4} parent=1 // pred_check_branch
      %26 = sbr.rel (0) target = $region13
    $region12: #{data_generator_forward.4} parent=1 // pred_region
      %27 = dma.done [#allocation3], 128
    $region13: #{data_generator_forward.4} parent=1 // pred_fallthru
      _
    %v29 = vld [vmem:[#allocation2] sm:$0x3]
    %v30 = vld [vmem:[%s0] sm:$0xff]
    %v31 = vld [vmem:[%s0 + $0x8] sm:$0xff]
    %v32 = vld [vmem:[%s0 + $0x10] sm:$0xff]
    %v33 = vld [vmem:[%s0 + $0x18] sm:$0xff]
    %v34 = vld [vmem:[%s0 + $0x20] sm:$0xff]
    %v35 = vld [vmem:[%s0 + $0x28] sm:$0xff]
    %v36 = vld [vmem:[%s0 + $0x30] sm:$0xff]
    %v37 = vld [vmem:[%s0 + $0x38] sm:$0xff]
    %v46 = vunpack.c.l.b16 %v30
    %v47 = vunpack.c.h.b16 %v30
    %v48 = vunpack.c.l.b16 %v31
    %v49 = vunpack.c.h.b16 %v31
    %v50 = vunpack.c.l.b16 %v32
    %v51 = vunpack.c.h.b16 %v32
    %v52 = vunpack.c.l.b16 %v33
    %v53 = vunpack.c.h.b16 %v33
    %v54 = vunpack.c.l.b16 %v34
    %v55 = vunpack.c.h.b16 %v34
    %v56 = vunpack.c.l.b16 %v35
    %v57 = vunpack.c.h.b16 %v35
    %v58 = vunpack.c.l.b16 %v36
    %v59 = vunpack.c.h.b16 %v36
    %v60 = vunpack.c.l.b16 %v37
    %v61 = vunpack.c.h.b16 %v37
    %v62 = vpack.c.b16 %v50, %v46
    %v63 = vpack.c.b16 %v51, %v47
    %v64 = vpack.c.b16 %v52, %v48
    %v65 = vpack.c.b16 %v53, %v49
    %v66 = vpack.c.b16 %v58, %v54
    %v67 = vpack.c.b16 %v59, %v55
    %v68 = vpack.c.b16 %v60, %v56
    %v69 = vpack.c.b16 %v61, %v57
    %vm78 = vcmask 261120
    %v80 = vsel %vm78, %v29, 0
    %82 = vmatprep.subr.bf16.mxu0 0
    %83 = vmatpush1.bf16.msra.mxu0 0
    %84 = vmatprep.subr.bf16.mxu0 0
    %85 = vmatpush1.bf16.msra.mxu0 0
    %86 = vmatprep.subr.bf16.mxu0 0
    %87 = vmatpush1.bf16.msra.mxu0 0
    %88 = vmatprep.subr.bf16.mxu0 0
    %89 = vmatpush1.bf16.msra.mxu0 0
    %90 = vmatprep.subr.bf16.mxu0 0
    %91 = vmatpush1.bf16.msra.mxu0 0
    %92 = vmatprep.subr.bf16.mxu0 0
    %93 = vmatpush1.bf16.msra.mxu0 0
    %94 = vmatprep.subr.bf16.mxu0 %v67
    %95 = vmatpush1.bf16.msra.mxu0 %v66
    %96 = vmatprep.subr.bf16.mxu0 %v63
    %97 = vmatpush1.bf16.msra.mxu0 %v62
    %98 = vmatprep.subr.bf16.mxu0 0
    %99 = vmatpush2.bf16.msra.mxu0 0
    %100 = vmatprep.subr.bf16.mxu0 0
    %101 = vmatpush2.bf16.msra.mxu0 0
    %102 = vmatprep.subr.bf16.mxu0 0
    %103 = vmatpush2.bf16.msra.mxu0 0
    %104 = vmatprep.subr.bf16.mxu0 0
    %105 = vmatpush2.bf16.msra.mxu0 0
    %106 = vmatprep.subr.bf16.mxu0 0
    %107 = vmatpush2.bf16.msra.mxu0 0
    %108 = vmatprep.subr.bf16.mxu0 0
    %109 = vmatpush2.bf16.msra.mxu0 0
    %110 = vmatprep.subr.bf16.mxu0 0
    %111 = vmatpush2.bf16.msra.mxu0 0
    %112 = vmatprep.subr.bf16.mxu0 0
    %113 = vmatpush2.bf16.msra.mxu0 0
    %114 = vmatprep.mubr.bf16.mxu0 0
    %115 = vmatmul.mubr.bf16.gmra.mxu0 %v80
    %v116 = vpop.f32.mrf.mxu0
    %v117 = vadd.f32 0.0, %v116
    %v118 = vpop.f32.mrf.mxu0
    %v119 = vadd.f32 0.0, %v118
    %v120 = vpop.f32.mrf.mxu0
    %v121 = vpop.f32.mrf.mxu0
    %122 = vdwg.mxu0
    %123 = vmatprep.subr.bf16.mxu0 0
    %124 = vmatpush1.bf16.msra.mxu0 0
    %125 = vmatprep.subr.bf16.mxu0 0
    %126 = vmatpush1.bf16.msra.mxu0 0
    %127 = vmatprep.subr.bf16.mxu0 0
    %128 = vmatpush1.bf16.msra.mxu0 0
    %129 = vmatprep.subr.bf16.mxu0 0
    %130 = vmatpush1.bf16.msra.mxu0 0
    %131 = vmatprep.subr.bf16.mxu0 0
    %132 = vmatpush1.bf16.msra.mxu0 0
    %133 = vmatprep.subr.bf16.mxu0 0
    %134 = vmatpush1.bf16.msra.mxu0 0
    %135 = vmatprep.subr.bf16.mxu0 %v69
    %136 = vmatpush1.bf16.msra.mxu0 %v68
    %137 = vmatprep.subr.bf16.mxu0 %v65
    %138 = vmatpush1.bf16.msra.mxu0 %v64
    %139 = vmatprep.subr.bf16.mxu0 0
    %140 = vmatpush2.bf16.msra.mxu0 0
    %141 = vmatprep.subr.bf16.mxu0 0
    %142 = vmatpush2.bf16.msra.mxu0 0
    %143 = vmatprep.subr.bf16.mxu0 0
    %144 = vmatpush2.bf16.msra.mxu0 0
    %145 = vmatprep.subr.bf16.mxu0 0
    %146 = vmatpush2.bf16.msra.mxu0 0
    %147 = vmatprep.subr.bf16.mxu0 0
    %148 = vmatpush2.bf16.msra.mxu0 0
    %149 = vmatprep.subr.bf16.mxu0 0
    %150 = vmatpush2.bf16.msra.mxu0 0
    %151 = vmatprep.subr.bf16.mxu0 0
    %152 = vmatpush2.bf16.msra.mxu0 0
    %153 = vmatprep.subr.bf16.mxu0 0
    %154 = vmatpush2.bf16.msra.mxu0 0
    %155 = vmatprep.mubr.bf16.mxu0 0
    %156 = vmatmul.mubr.bf16.gmra.mxu0 %v80
    %v157 = vpop.f32.mrf.mxu0
    %v158 = vadd.f32 0.0, %v157
    %v159 = vpop.f32.mrf.mxu0
    %v160 = vadd.f32 0.0, %v159
    %v161 = vpop.f32.mrf.mxu0
    %v162 = vpop.f32.mrf.mxu0
    %163 = vdwg.mxu0
    %v164 = vpack.c.bf16 %v117, %v117
    %v165 = vpack.c.bf16 %v119, %v119
    %v166 = vpack.c.bf16 %v158, %v158
    %v167 = vpack.c.bf16 %v160, %v160
    %v172 = vcombine.low %v164, %v165
    %v173 = vcombine.low %v166, %v167
    %v175 = vunpack.c.l.s4 1983009808
    %v176 = vunpack.c.0.s8 %v175
    %v177 = vlaneseq
    %v178 = vshrl.u32 %v177, 7
    %v179 = vsub.s32 %v176, %v178
    %v180 = vrot.slane %v172, %v179
    %v182 = vunpack.c.l.s4 1983009808
    %v183 = vunpack.c.0.s8 %v182
    %v184 = vlaneseq
    %v185 = vshrl.u32 %v184, 7
    %v186 = vsub.s32 %v183, %v185
    %v187 = vrot.slane %v173, %v186
    %v188 = vcombine.low %v180, %v187
    %190 = vst [vmem:[%s2] sm:$0xff] %v188
    %vm191 = vcmask 1043456
    %v192 = vsel %vm191, %v117, 0.0
    %v193 = vsel %vm191, %v119, 0.0
    %v194 = vadd.f32 %v192, %v193
    %v195 = vsel %vm191, %v158, 0.0
    %v196 = vadd.f32 %v194, %v195
    %v197 = vsel %vm191, %v160, 0.0
    %v198 = vadd.f32 %v196, %v197
    %199 = vadd.xlane.f32.xlu0 %v198
    %v200 = vpop.xlane.xlu0 %199
    %v201 = vadd.f32 %v200, 0.0
    %v202 = vmul.f32 %v117, %v117
    %v203 = vmul.f32 %v119, %v119
    %v204 = vmul.f32 %v158, %v158
    %v205 = vmul.f32 %v160, %v160
    %v206 = vsel %vm191, %v202, 0.0
    %v207 = vsel %vm191, %v203, 0.0
    %v208 = vadd.f32 %v206, %v207
    %v209 = vsel %vm191, %v204, 0.0
    %v210 = vadd.f32 %v208, %v209
    %v211 = vsel %vm191, %v205, 0.0
    %v212 = vadd.f32 %v210, %v211
    %213 = vadd.xlane.f32.xlu0 %v212
    %v214 = vpop.xlane.xlu0 %213
    %v215 = vadd.f32 %v214, 0.0
    %s216 = scalar_lea.vmem [#allocation2], 2
    %v217 = vld [vmem:[%s216] sm:$0x3]
    %s218 = scalar_lea.vmem %s0, 64
    %v219 = vld [vmem:[%s218] sm:$0xff]
    %v220 = vld [vmem:[%s218 + $0x8] sm:$0xff]
    %v221 = vld [vmem:[%s218 + $0x10] sm:$0xff]
    %v222 = vld [vmem:[%s218 + $0x18] sm:$0xff]
    %v223 = vld [vmem:[%s218 + $0x20] sm:$0xff]
    %v224 = vld [vmem:[%s218 + $0x28] sm:$0xff]
    %v225 = vld [vmem:[%s218 + $0x30] sm:$0xff]
    %v226 = vld [vmem:[%s218 + $0x38] sm:$0xff]
    %v235 = vunpack.c.l.b16 %v219
    %v236 = vunpack.c.h.b16 %v219
    %v237 = vunpack.c.l.b16 %v220
    %v238 = vunpack.c.h.b16 %v220
    %v239 = vunpack.c.l.b16 %v221
    %v240 = vunpack.c.h.b16 %v221
    %v241 = vunpack.c.l.b16 %v222
    %v242 = vunpack.c.h.b16 %v222
    %v243 = vunpack.c.l.b16 %v223
    %v244 = vunpack.c.h.b16 %v223
    %v245 = vunpack.c.l.b16 %v224
    %v246 = vunpack.c.h.b16 %v224
    %v247 = vunpack.c.l.b16 %v225
    %v248 = vunpack.c.h.b16 %v225
    %v249 = vunpack.c.l.b16 %v226
    %v250 = vunpack.c.h.b16 %v226
    %v251 = vpack.c.b16 %v239, %v235
    %v252 = vpack.c.b16 %v240, %v236
    %v253 = vpack.c.b16 %v241, %v237
    %v254 = vpack.c.b16 %v242, %v238
    %v255 = vpack.c.b16 %v247, %v243
    %v256 = vpack.c.b16 %v248, %v244
    %v257 = vpack.c.b16 %v249, %v245
    %v258 = vpack.c.b16 %v250, %v246
    %v268 = vsel %vm78, %v217, 0
    %270 = vmatprep.subr.bf16.mxu0 0
    %271 = vmatpush1.bf16.msra.mxu0 0
    %272 = vmatprep.subr.bf16.mxu0 0
    %273 = vmatpush1.bf16.msra.mxu0 0
    %274 = vmatprep.subr.bf16.mxu0 0
    %275 = vmatpush1.bf16.msra.mxu0 0
    %276 = vmatprep.subr.bf16.mxu0 0
    %277 = vmatpush1.bf16.msra.mxu0 0
    %278 = vmatprep.subr.bf16.mxu0 0
    %279 = vmatpush1.bf16.msra.mxu0 0
    %280 = vmatprep.subr.bf16.mxu0 0
    %281 = vmatpush1.bf16.msra.mxu0 0
    %282 = vmatprep.subr.bf16.mxu0 %v256
    %283 = vmatpush1.bf16.msra.mxu0 %v255
    %284 = vmatprep.subr.bf16.mxu0 %v252
    %285 = vmatpush1.bf16.msra.mxu0 %v251
    %286 = vmatprep.subr.bf16.mxu0 0
    %287 = vmatpush2.bf16.msra.mxu0 0
    %288 = vmatprep.subr.bf16.mxu0 0
    %289 = vmatpush2.bf16.msra.mxu0 0
    %290 = vmatprep.subr.bf16.mxu0 0
    %291 = vmatpush2.bf16.msra.mxu0 0
    %292 = vmatprep.subr.bf16.mxu0 0
    %293 = vmatpush2.bf16.msra.mxu0 0
    %294 = vmatprep.subr.bf16.mxu0 0
    %295 = vmatpush2.bf16.msra.mxu0 0
    %296 = vmatprep.subr.bf16.mxu0 0
    %297 = vmatpush2.bf16.msra.mxu0 0
    %298 = vmatprep.subr.bf16.mxu0 0
    %299 = vmatpush2.bf16.msra.mxu0 0
    %300 = vmatprep.subr.bf16.mxu0 0
    %301 = vmatpush2.bf16.msra.mxu0 0
    %302 = vmatprep.mubr.bf16.mxu0 0
    %303 = vmatmul.mubr.bf16.gmra.mxu0 %v268
    %v304 = vpop.f32.mrf.mxu0
    %v305 = vadd.f32 0.0, %v304
    %v306 = vpop.f32.mrf.mxu0
    %v307 = vadd.f32 0.0, %v306
    %v308 = vpop.f32.mrf.mxu0
    %v309 = vpop.f32.mrf.mxu0
    %310 = vdwg.mxu0
    %311 = vmatprep.subr.bf16.mxu0 0
    %312 = vmatpush1.bf16.msra.mxu0 0
    %313 = vmatprep.subr.bf16.mxu0 0
    %314 = vmatpush1.bf16.msra.mxu0 0
    %315 = vmatprep.subr.bf16.mxu0 0
    %316 = vmatpush1.bf16.msra.mxu0 0
    %317 = vmatprep.subr.bf16.mxu0 0
    %318 = vmatpush1.bf16.msra.mxu0 0
    %319 = vmatprep.subr.bf16.mxu0 0
    %320 = vmatpush1.bf16.msra.mxu0 0
    %321 = vmatprep.subr.bf16.mxu0 0
    %322 = vmatpush1.bf16.msra.mxu0 0
    %323 = vmatprep.subr.bf16.mxu0 %v258
    %324 = vmatpush1.bf16.msra.mxu0 %v257
    %325 = vmatprep.subr.bf16.mxu0 %v254
    %326 = vmatpush1.bf16.msra.mxu0 %v253
    %327 = vmatprep.subr.bf16.mxu0 0
    %328 = vmatpush2.bf16.msra.mxu0 0
    %329 = vmatprep.subr.bf16.mxu0 0
    %330 = vmatpush2.bf16.msra.mxu0 0
    %331 = vmatprep.subr.bf16.mxu0 0
    %332 = vmatpush2.bf16.msra.mxu0 0
    %333 = vmatprep.subr.bf16.mxu0 0
    %334 = vmatpush2.bf16.msra.mxu0 0
    %335 = vmatprep.subr.bf16.mxu0 0
    %336 = vmatpush2.bf16.msra.mxu0 0
    %337 = vmatprep.subr.bf16.mxu0 0
    %338 = vmatpush2.bf16.msra.mxu0 0
    %339 = vmatprep.subr.bf16.mxu0 0
    %340 = vmatpush2.bf16.msra.mxu0 0
    %341 = vmatprep.subr.bf16.mxu0 0
    %342 = vmatpush2.bf16.msra.mxu0 0
    %343 = vmatprep.mubr.bf16.mxu0 0
    %344 = vmatmul.mubr.bf16.gmra.mxu0 %v268
    %v345 = vpop.f32.mrf.mxu0
    %v346 = vadd.f32 0.0, %v345
    %v347 = vpop.f32.mrf.mxu0
    %v348 = vadd.f32 0.0, %v347
    %v349 = vpop.f32.mrf.mxu0
    %v350 = vpop.f32.mrf.mxu0
    %351 = vdwg.mxu0
    %v352 = vpack.c.bf16 %v305, %v305
    %v353 = vpack.c.bf16 %v307, %v307
    %v354 = vpack.c.bf16 %v346, %v346
    %v355 = vpack.c.bf16 %v348, %v348
    %v360 = vcombine.low %v352, %v353
    %v361 = vcombine.low %v354, %v355
    %v363 = vunpack.c.l.s4 1983009808
    %v364 = vunpack.c.0.s8 %v363
    %v365 = vlaneseq
    %v366 = vshrl.u32 %v365, 7
    %v367 = vsub.s32 %v364, %v366
    %v368 = vrot.slane %v360, %v367
    %v370 = vunpack.c.l.s4 1983009808
    %v371 = vunpack.c.0.s8 %v370
    %v372 = vlaneseq
    %v373 = vshrl.u32 %v372, 7
    %v374 = vsub.s32 %v371, %v373
    %v375 = vrot.slane %v361, %v374
    %v376 = vcombine.low %v368, %v375
    %s378 = scalar_lea.vmem %s2, 8
    %379 = vst [vmem:[%s378] sm:$0xff] %v376
    %v380 = vsel %vm191, %v305, 0.0
    %v381 = vsel %vm191, %v307, 0.0
    %v382 = vadd.f32 %v380, %v381
    %v383 = vsel %vm191, %v346, 0.0
    %v384 = vadd.f32 %v382, %v383
    %v385 = vsel %vm191, %v348, 0.0
    %v386 = vadd.f32 %v384, %v385
    %387 = vadd.xlane.f32.xlu0 %v386
    %v388 = vpop.xlane.xlu0 %387
    %v389 = vadd.f32 %v201, %v388
    %v390 = vmul.f32 %v305, %v305
    %v391 = vmul.f32 %v307, %v307
    %v392 = vmul.f32 %v346, %v346
    %v393 = vmul.f32 %v348, %v348
    %v394 = vsel %vm191, %v390, 0.0
    %v395 = vsel %vm191, %v391, 0.0
    %v396 = vadd.f32 %v394, %v395
    %v397 = vsel %vm191, %v392, 0.0
    %v398 = vadd.f32 %v396, %v397
    %v399 = vsel %vm191, %v393, 0.0
    %v400 = vadd.f32 %v398, %v399
    %401 = vadd.xlane.f32.xlu0 %v400
    %v402 = vpop.xlane.xlu0 %401
    %v403 = vadd.f32 %v215, %v402
    %s404 = scalar_lea.vmem [#allocation2], 4
    %v405 = vld [vmem:[%s404] sm:$0x3]
    %s406 = scalar_lea.vmem %s0, 128
    %v407 = vld [vmem:[%s406] sm:$0xff]
    %v408 = vld [vmem:[%s406 + $0x8] sm:$0xff]
    %v409 = vld [vmem:[%s406 + $0x10] sm:$0xff]
    %v410 = vld [vmem:[%s406 + $0x18] sm:$0xff]
    %v411 = vld [vmem:[%s406 + $0x20] sm:$0xff]
    %v412 = vld [vmem:[%s406 + $0x28] sm:$0xff]
    %v413 = vld [vmem:[%s406 + $0x30] sm:$0xff]
    %v414 = vld [vmem:[%s406 + $0x38] sm:$0xff]
    %v423 = vunpack.c.l.b16 %v407
    %v424 = vunpack.c.h.b16 %v407
    %v425 = vunpack.c.l.b16 %v408
    %v426 = vunpack.c.h.b16 %v408
    %v427 = vunpack.c.l.b16 %v409
    %v428 = vunpack.c.h.b16 %v409
    %v429 = vunpack.c.l.b16 %v410
    %v430 = vunpack.c.h.b16 %v410
    %v431 = vunpack.c.l.b16 %v411
    %v432 = vunpack.c.h.b16 %v411
    %v433 = vunpack.c.l.b16 %v412
    %v434 = vunpack.c.h.b16 %v412
    %v435 = vunpack.c.l.b16 %v413
    %v436 = vunpack.c.h.b16 %v413
    %v437 = vunpack.c.l.b16 %v414
    %v438 = vunpack.c.h.b16 %v414
    %v439 = vpack.c.b16 %v427, %v423
    %v440 = vpack.c.b16 %v428, %v424
    %v441 = vpack.c.b16 %v429, %v425
    %v442 = vpack.c.b16 %v430, %v426
    %v443 = vpack.c.b16 %v435, %v431
    %v444 = vpack.c.b16 %v436, %v432
    %v445 = vpack.c.b16 %v437, %v433
    %v446 = vpack.c.b16 %v438, %v434
    %v456 = vsel %vm78, %v405, 0
    %458 = vmatprep.subr.bf16.mxu0 0
    %459 = vmatpush1.bf16.msra.mxu0 0
    %460 = vmatprep.subr.bf16.mxu0 0
    %461 = vmatpush1.bf16.msra.mxu0 0
    %462 = vmatprep.subr.bf16.mxu0 0
    %463 = vmatpush1.bf16.msra.mxu0 0
    %464 = vmatprep.subr.bf16.mxu0 0
    %465 = vmatpush1.bf16.msra.mxu0 0
    %466 = vmatprep.subr.bf16.mxu0 0
    %467 = vmatpush1.bf16.msra.mxu0 0
    %468 = vmatprep.subr.bf16.mxu0 0
    %469 = vmatpush1.bf16.msra.mxu0 0
    %470 = vmatprep.subr.bf16.mxu0 %v444
    %471 = vmatpush1.bf16.msra.mxu0 %v443
    %472 = vmatprep.subr.bf16.mxu0 %v440
    %473 = vmatpush1.bf16.msra.mxu0 %v439
    %474 = vmatprep.subr.bf16.mxu0 0
    %475 = vmatpush2.bf16.msra.mxu0 0
    %476 = vmatprep.subr.bf16.mxu0 0
    %477 = vmatpush2.bf16.msra.mxu0 0
    %478 = vmatprep.subr.bf16.mxu0 0
    %479 = vmatpush2.bf16.msra.mxu0 0
    %480 = vmatprep.subr.bf16.mxu0 0
    %481 = vmatpush2.bf16.msra.mxu0 0
    %482 = vmatprep.subr.bf16.mxu0 0
    %483 = vmatpush2.bf16.msra.mxu0 0
    %484 = vmatprep.subr.bf16.mxu0 0
    %485 = vmatpush2.bf16.msra.mxu0 0
    %486 = vmatprep.subr.bf16.mxu0 0
    %487 = vmatpush2.bf16.msra.mxu0 0
    %488 = vmatprep.subr.bf16.mxu0 0
    %489 = vmatpush2.bf16.msra.mxu0 0
    %490 = vmatprep.mubr.bf16.mxu0 0
    %491 = vmatmul.mubr.bf16.gmra.mxu0 %v456
    %v492 = vpop.f32.mrf.mxu0
    %v493 = vadd.f32 0.0, %v492
    %v494 = vpop.f32.mrf.mxu0
    %v495 = vadd.f32 0.0, %v494
    %v496 = vpop.f32.mrf.mxu0
    %v497 = vpop.f32.mrf.mxu0
    %498 = vdwg.mxu0
    %499 = vmatprep.subr.bf16.mxu0 0
    %500 = vmatpush1.bf16.msra.mxu0 0
    %501 = vmatprep.subr.bf16.mxu0 0
    %502 = vmatpush1.bf16.msra.mxu0 0
    %503 = vmatprep.subr.bf16.mxu0 0
    %504 = vmatpush1.bf16.msra.mxu0 0
    %505 = vmatprep.subr.bf16.mxu0 0
    %506 = vmatpush1.bf16.msra.mxu0 0
    %507 = vmatprep.subr.bf16.mxu0 0
    %508 = vmatpush1.bf16.msra.mxu0 0
    %509 = vmatprep.subr.bf16.mxu0 0
    %510 = vmatpush1.bf16.msra.mxu0 0
    %511 = vmatprep.subr.bf16.mxu0 %v446
    %512 = vmatpush1.bf16.msra.mxu0 %v445
    %513 = vmatprep.subr.bf16.mxu0 %v442
    %514 = vmatpush1.bf16.msra.mxu0 %v441
    %515 = vmatprep.subr.bf16.mxu0 0
    %516 = vmatpush2.bf16.msra.mxu0 0
    %517 = vmatprep.subr.bf16.mxu0 0
    %518 = vmatpush2.bf16.msra.mxu0 0
    %519 = vmatprep.subr.bf16.mxu0 0
    %520 = vmatpush2.bf16.msra.mxu0 0
    %521 = vmatprep.subr.bf16.mxu0 0
    %522 = vmatpush2.bf16.msra.mxu0 0
    %523 = vmatprep.subr.bf16.mxu0 0
    %524 = vmatpush2.bf16.msra.mxu0 0
    %525 = vmatprep.subr.bf16.mxu0 0
    %526 = vmatpush2.bf16.msra.mxu0 0
    %527 = vmatprep.subr.bf16.mxu0 0
    %528 = vmatpush2.bf16.msra.mxu0 0
    %529 = vmatprep.subr.bf16.mxu0 0
    %530 = vmatpush2.bf16.msra.mxu0 0
    %531 = vmatprep.mubr.bf16.mxu0 0
    %532 = vmatmul.mubr.bf16.gmra.mxu0 %v456
    %v533 = vpop.f32.mrf.mxu0
    %v534 = vadd.f32 0.0, %v533
    %v535 = vpop.f32.mrf.mxu0
    %v536 = vadd.f32 0.0, %v535
    %v537 = vpop.f32.mrf.mxu0
    %v538 = vpop.f32.mrf.mxu0
    %539 = vdwg.mxu0
    %v540 = vpack.c.bf16 %v493, %v493
    %v541 = vpack.c.bf16 %v495, %v495
    %v542 = vpack.c.bf16 %v534, %v534
    %v543 = vpack.c.bf16 %v536, %v536
    %v548 = vcombine.low %v540, %v541
    %v549 = vcombine.low %v542, %v543
    %v551 = vunpack.c.l.s4 1983009808
    %v552 = vunpack.c.0.s8 %v551
    %v553 = vlaneseq
    %v554 = vshrl.u32 %v553, 7
    %v555 = vsub.s32 %v552, %v554
    %v556 = vrot.slane %v548, %v555
    %v558 = vunpack.c.l.s4 1983009808
    %v559 = vunpack.c.0.s8 %v558
    %v560 = vlaneseq
    %v561 = vshrl.u32 %v560, 7
    %v562 = vsub.s32 %v559, %v561
    %v563 = vrot.slane %v549, %v562
    %v564 = vcombine.low %v556, %v563
    %s566 = scalar_lea.vmem %s2, 16
    %567 = vst [vmem:[%s566] sm:$0xff] %v564
    %v568 = vsel %vm191, %v493, 0.0
    %v569 = vsel %vm191, %v495, 0.0
    %v570 = vadd.f32 %v568, %v569
    %v571 = vsel %vm191, %v534, 0.0
    %v572 = vadd.f32 %v570, %v571
    %v573 = vsel %vm191, %v536, 0.0
    %v574 = vadd.f32 %v572, %v573
    %575 = vadd.xlane.f32.xlu0 %v574
    %v576 = vpop.xlane.xlu0 %575
    %v577 = vadd.f32 %v389, %v576
    %v578 = vmul.f32 %v493, %v493
    %v579 = vmul.f32 %v495, %v495
    %v580 = vmul.f32 %v534, %v534
    %v581 = vmul.f32 %v536, %v536
    %v582 = vsel %vm191, %v578, 0.0
    %v583 = vsel %vm191, %v579, 0.0
    %v584 = vadd.f32 %v582, %v583
    %v585 = vsel %vm191, %v580, 0.0
    %v586 = vadd.f32 %v584, %v585
    %v587 = vsel %vm191, %v581, 0.0
    %v588 = vadd.f32 %v586, %v587
    %589 = vadd.xlane.f32.xlu0 %v588
    %v590 = vpop.xlane.xlu0 %589
    %v591 = vadd.f32 %v403, %v590
    %s592 = scalar_lea.vmem [#allocation2], 6
    %v593 = vld [vmem:[%s592] sm:$0x3]
    %s594 = scalar_lea.vmem %s0, 192
    %v595 = vld [vmem:[%s594] sm:$0xff]
    %v596 = vld [vmem:[%s594 + $0x8] sm:$0xff]
    %v597 = vld [vmem:[%s594 + $0x10] sm:$0xff]
    %v598 = vld [vmem:[%s594 + $0x18] sm:$0xff]
    %v599 = vld [vmem:[%s594 + $0x20] sm:$0xff]
    %v600 = vld [vmem:[%s594 + $0x28] sm:$0xff]
    %v601 = vld [vmem:[%s594 + $0x30] sm:$0xff]
    %v602 = vld [vmem:[%s594 + $0x38] sm:$0xff]
    %v611 = vunpack.c.l.b16 %v595
    %v612 = vunpack.c.h.b16 %v595
    %v613 = vunpack.c.l.b16 %v596
    %v614 = vunpack.c.h.b16 %v596
    %v615 = vunpack.c.l.b16 %v597
    %v616 = vunpack.c.h.b16 %v597
    %v617 = vunpack.c.l.b16 %v598
    %v618 = vunpack.c.h.b16 %v598
    %v619 = vunpack.c.l.b16 %v599
    %v620 = vunpack.c.h.b16 %v599
    %v621 = vunpack.c.l.b16 %v600
    %v622 = vunpack.c.h.b16 %v600
    %v623 = vunpack.c.l.b16 %v601
    %v624 = vunpack.c.h.b16 %v601
    %v625 = vunpack.c.l.b16 %v602
    %v626 = vunpack.c.h.b16 %v602
    %v627 = vpack.c.b16 %v615, %v611
    %v628 = vpack.c.b16 %v616, %v612
    %v629 = vpack.c.b16 %v617, %v613
    %v630 = vpack.c.b16 %v618, %v614
    %v631 = vpack.c.b16 %v623, %v619
    %v632 = vpack.c.b16 %v624, %v620
    %v633 = vpack.c.b16 %v625, %v621
    %v634 = vpack.c.b16 %v626, %v622
    %v644 = vsel %vm78, %v593, 0
    %646 = vmatprep.subr.bf16.mxu0 0
    %647 = vmatpush1.bf16.msra.mxu0 0
    %648 = vmatprep.subr.bf16.mxu0 0
    %649 = vmatpush1.bf16.msra.mxu0 0
    %650 = vmatprep.subr.bf16.mxu0 0
    %651 = vmatpush1.bf16.msra.mxu0 0
    %652 = vmatprep.subr.bf16.mxu0 0
    %653 = vmatpush1.bf16.msra.mxu0 0
    %654 = vmatprep.subr.bf16.mxu0 0
    %655 = vmatpush1.bf16.msra.mxu0 0
    %656 = vmatprep.subr.bf16.mxu0 0
    %657 = vmatpush1.bf16.msra.mxu0 0
    %658 = vmatprep.subr.bf16.mxu0 %v632
    %659 = vmatpush1.bf16.msra.mxu0 %v631
    %660 = vmatprep.subr.bf16.mxu0 %v628
    %661 = vmatpush1.bf16.msra.mxu0 %v627
    %662 = vmatprep.subr.bf16.mxu0 0
    %663 = vmatpush2.bf16.msra.mxu0 0
    %664 = vmatprep.subr.bf16.mxu0 0
    %665 = vmatpush2.bf16.msra.mxu0 0
    %666 = vmatprep.subr.bf16.mxu0 0
    %667 = vmatpush2.bf16.msra.mxu0 0
    %668 = vmatprep.subr.bf16.mxu0 0
    %669 = vmatpush2.bf16.msra.mxu0 0
    %670 = vmatprep.subr.bf16.mxu0 0
    %671 = vmatpush2.bf16.msra.mxu0 0
    %672 = vmatprep.subr.bf16.mxu0 0
    %673 = vmatpush2.bf16.msra.mxu0 0
    %674 = vmatprep.subr.bf16.mxu0 0
    %675 = vmatpush2.bf16.msra.mxu0 0
    %676 = vmatprep.subr.bf16.mxu0 0
    %677 = vmatpush2.bf16.msra.mxu0 0
    %678 = vmatprep.mubr.bf16.mxu0 0
    %679 = vmatmul.mubr.bf16.gmra.mxu0 %v644
    %v680 = vpop.f32.mrf.mxu0
    %v681 = vadd.f32 0.0, %v680
    %v682 = vpop.f32.mrf.mxu0
    %v683 = vadd.f32 0.0, %v682
    %v684 = vpop.f32.mrf.mxu0
    %v685 = vpop.f32.mrf.mxu0
    %686 = vdwg.mxu0
    %687 = vmatprep.subr.bf16.mxu0 0
    %688 = vmatpush1.bf16.msra.mxu0 0
    %689 = vmatprep.subr.bf16.mxu0 0
    %690 = vmatpush1.bf16.msra.mxu0 0
    %691 = vmatprep.subr.bf16.mxu0 0
    %692 = vmatpush1.bf16.msra.mxu0 0
    %693 = vmatprep.subr.bf16.mxu0 0
    %694 = vmatpush1.bf16.msra.mxu0 0
    %695 = vmatprep.subr.bf16.mxu0 0
    %696 = vmatpush1.bf16.msra.mxu0 0
    %697 = vmatprep.subr.bf16.mxu0 0
    %698 = vmatpush1.bf16.msra.mxu0 0
    %699 = vmatprep.subr.bf16.mxu0 %v634
    %700 = vmatpush1.bf16.msra.mxu0 %v633
    %701 = vmatprep.subr.bf16.mxu0 %v630
    %702 = vmatpush1.bf16.msra.mxu0 %v629
    %703 = vmatprep.subr.bf16.mxu0 0
    %704 = vmatpush2.bf16.msra.mxu0 0
    %705 = vmatprep.subr.bf16.mxu0 0
    %706 = vmatpush2.bf16.msra.mxu0 0
    %707 = vmatprep.subr.bf16.mxu0 0
    %708 = vmatpush2.bf16.msra.mxu0 0
    %709 = vmatprep.subr.bf16.mxu0 0
    %710 = vmatpush2.bf16.msra.mxu0 0
    %711 = vmatprep.subr.bf16.mxu0 0
    %712 = vmatpush2.bf16.msra.mxu0 0
    %713 = vmatprep.subr.bf16.mxu0 0
    %714 = vmatpush2.bf16.msra.mxu0 0
    %715 = vmatprep.subr.bf16.mxu0 0
    %716 = vmatpush2.bf16.msra.mxu0 0
    %717 = vmatprep.subr.bf16.mxu0 0
    %718 = vmatpush2.bf16.msra.mxu0 0
    %719 = vmatprep.mubr.bf16.mxu0 0
    %720 = vmatmul.mubr.bf16.gmra.mxu0 %v644
    %v721 = vpop.f32.mrf.mxu0
    %v722 = vadd.f32 0.0, %v721
    %v723 = vpop.f32.mrf.mxu0
    %v724 = vadd.f32 0.0, %v723
    %v725 = vpop.f32.mrf.mxu0
    %v726 = vpop.f32.mrf.mxu0
    %727 = vdwg.mxu0
    %v728 = vpack.c.bf16 %v681, %v681
    %v729 = vpack.c.bf16 %v683, %v683
    %v730 = vpack.c.bf16 %v722, %v722
    %v731 = vpack.c.bf16 %v724, %v724
    %v736 = vcombine.low %v728, %v729
    %v737 = vcombine.low %v730, %v731
    %v739 = vunpack.c.l.s4 1983009808
    %v740 = vunpack.c.0.s8 %v739
    %v741 = vlaneseq
    %v742 = vshrl.u32 %v741, 7
    %v743 = vsub.s32 %v740, %v742
    %v744 = vrot.slane %v736, %v743
    %v746 = vunpack.c.l.s4 1983009808
    %v747 = vunpack.c.0.s8 %v746
    %v748 = vlaneseq
    %v749 = vshrl.u32 %v748, 7
    %v750 = vsub.s32 %v747, %v749
    %v751 = vrot.slane %v737, %v750
    %v752 = vcombine.low %v744, %v751
    %s754 = scalar_lea.vmem %s2, 24
    %755 = vst [vmem:[%s754] sm:$0xff] %v752
    %v756 = vsel %vm191, %v681, 0.0
    %v757 = vsel %vm191, %v683, 0.0
    %v758 = vadd.f32 %v756, %v757
    %v759 = vsel %vm191, %v722, 0.0
    %v760 = vadd.f32 %v758, %v759
    %v761 = vsel %vm191, %v724, 0.0
    %v762 = vadd.f32 %v760, %v761
    %763 = vadd.xlane.f32.xlu0 %v762
    %v764 = vpop.xlane.xlu0 %763
    %v765 = vadd.f32 %v577, %v764
    %v766 = vmul.f32 %v681, %v681
    %v767 = vmul.f32 %v683, %v683
    %v768 = vmul.f32 %v722, %v722
    %v769 = vmul.f32 %v724, %v724
    %v770 = vsel %vm191, %v766, 0.0
    %v771 = vsel %vm191, %v767, 0.0
    %v772 = vadd.f32 %v770, %v771
    %v773 = vsel %vm191, %v768, 0.0
    %v774 = vadd.f32 %v772, %v773
    %v775 = vsel %vm191, %v769, 0.0
    %v776 = vadd.f32 %v774, %v775
    %777 = vadd.xlane.f32.xlu0 %v776
    %v778 = vpop.xlane.xlu0 %777
    %v779 = vadd.f32 %v591, %v778
    %vm780 = vcmask 3072
    %781 = vst.msk [vmem:[%s3] sm:$0xf] %vm780, %v765
    %782 = vst.msk [vmem:[%s4] sm:$0xf] %vm780, %v779
    // Predicated region
    $region14: #{data_generator_forward.4} parent=1 // pred_check
      _
    $region15: #{data_generator_forward.4} parent=1 // pred_check_branch
      %784 = sbr.rel (0) target = $region17
    $region16: #{data_generator_forward.4} parent=1 // pred_region
      _
    $region17: #{data_generator_forward.4} parent=1 // pred_fallthru
      _
    // Predicated region
    $region18: #{data_generator_forward.4} parent=1 // pred_check
      _
    $region19: #{data_generator_forward.4} parent=1 // pred_check_branch
      %786 = sbr.rel (0) target = $region21
    $region20: #{data_generator_forward.4} parent=1 // pred_region
      _
    $region21: #{data_generator_forward.4} parent=1 // pred_fallthru
      _
    // Predicated region
    $region22: #{data_generator_forward.4} parent=1 // pred_check
      _
    $region23: #{data_generator_forward.4} parent=1 // pred_check_branch
      %788 = sbr.rel (0) target = $region25
    $region24: #{data_generator_forward.4} parent=1 // pred_region
      _
    $region25: #{data_generator_forward.4} parent=1 // pred_fallthru
      _
    // Predicated region
    $region26: #{data_generator_forward.4} parent=1 // pred_check
      _
    $region27: #{data_generator_forward.4} parent=1 // pred_check_branch
      %790 = sbr.rel (0) target = $region29
    $region28: #{data_generator_forward.4} parent=1 // pred_region
      _
    $region29: #{data_generator_forward.4} parent=1 // pred_fallthru
      _
    // Predicated region
    $region30: #{data_generator_forward.4} parent=1 // pred_check
      _
    $region31: #{data_generator_forward.4} parent=1 // pred_check_branch
      %792 = sbr.rel (0) target = $region33
    $region32: #{data_generator_forward.4} parent=1 // pred_region
      _
    $region33: #{data_generator_forward.4} parent=1 // pred_fallthru
      _
    // Predicated region
    $region34: #{data_generator_forward.4} parent=1 // pred_check
      _
    $region35: #{data_generator_forward.4} parent=1 // pred_check_branch
      %794 = sbr.rel (0) target = $region37
    $region36: #{data_generator_forward.4} parent=1 // pred_region
      _
    $region37: #{data_generator_forward.4} parent=1 // pred_fallthru
      _
    %795 = vsyncpa [#allocation3], 1

// kernel: data_generator_forward.5
$region0: #{data_generator_forward.5}
  #allocation0 [shape = 'u32[]', space=smem, size = 0x4, offset = 0x4, fixed_abs, tag = 'smem constant byte address 0x4 - core index']
  #allocation1 [shape = 'u32[144,128]{1,0:T(1,128)}', space=vmem, size = 0x12000, scoped, tag = 'internal scratch']
  %s0 = inlined_call_operand.vmem [shape: bf16[4,16,2048], index: 0, kind: input, shape index: {}]
  %s1 = inlined_call_operand.vmem [shape: bf16[4,3,16], index: 1, kind: input, shape index: {}]
  %s2 = inlined_call_operand.vmem [shape: f32[3,1], index: 2, kind: input, shape index: {}]
  %s3 = inlined_call_operand.vmem [shape: f32[4,3,2048], index: 3, kind: output, shape index: {}]
  %s4 = sld [smem:[#allocation0]]
  $region87: #{data_generator_forward.5} parent=0
    _
  %s6 = ssub.s32 1, %s4
  %s7 = scalar_select 0, %s6, %s4
  $region1: #{data_generator_forward.5} parent=0
    #allocation2 [shape = 'u8[262144]{0}', space=vmem, size = 0x40000, scoped, tag = 'input window, operand 0']
    #allocation3 [shape = 'u8[131072]{0}', space=vmem, size = 0x20000, scoped, tag = 'output window, operand 0']
    loop: start=0, step=1, limit=4
    $region2: #{data_generator_forward.5} parent=1 // loop_pre_header
      _
    $region3: #{data_generator_forward.5} parent=1 // loop_header
      %s9 = sphi 0, %s13
      %p10 = scmp.ge.s32.totalorder %s9, 4
      %s19 = sphi 0, %s21
      %s22 = sphi 0, %s19
      %s23 = sphi 0, %s22
      %s39 = sphi 0, %s23
      %s43 = sphi 0, %s43
      %s45 = sphi 0, %s43
      %s46 = sphi 0, %s45
      %s60 = sphi 0, %s46
      %s64 = sphi 0, %s64
      %s66 = sphi 0, %s64
      %s67 = sphi 0, %s66
      %s81 = sphi 0, %s67
      %s87 = sphi 0, %s89
      %s90 = sphi 0, %s87
      %s91 = sphi 0, %s90
      %s107 = sphi 0, %s91
    $region4: #{data_generator_forward.5} parent=1 // loop_header_branch
      %12 = sbr.rel (%p10) target = $region8
    $region5: #{data_generator_forward.5} parent=1 // loop_body
      %s14 = ssub.s32 %s9, 1
      %s15 = ssub.s32 %s9, 2
      %s16 = sadd.s32 %s9, 1
      %s17 = ssub.s32 %s9, %s16
      %p18 = scmp.eq.s32.totalorder %s17, 0
      %s20 = sadd.s32 %s19, 1
      %s21 = scalar_select %p18, %s19, %s20
      %p24 = pneg %p18
      %p25 = scmp.eq.s32.totalorder %s9, 1
      %p26 = por %p24, %p25
      %p27 = scmp.ne.s32.totalorder %s19, %s22
      %p28 = scmp.eq.s32.totalorder %s9, 0
      %p29 = por %p27, %p28
      %p30 = scmp.ne.s32.totalorder %s19, %s22
      %p31 = scmp.eq.s32.totalorder %s14, 1
      %p32 = por %p30, %p31
      %p33 = scmp.ne.s32.totalorder %s22, %s23
      %p34 = scmp.eq.s32.totalorder %s14, 0
      %p35 = por %p33, %p34
      %p36 = scmp.ne.s32.totalorder %s22, %s23
      %p37 = scmp.eq.s32.totalorder %s15, 1
      %p38 = por %p36, %p37
      %p40 = scmp.ne.s32.totalorder %s23, %s39
      %p41 = scmp.eq.s32.totalorder %s15, 0
      %p42 = por %p40, %p41
      %s44 = sadd.s32 %s43, 1
      %p47 = scmp.eq.s32.totalorder %s9, 1
      %p48 = scmp.ne.s32.totalorder %s43, %s45
      %p49 = scmp.eq.s32.totalorder %s9, 0
      %p50 = por %p48, %p49
      %p51 = scmp.ne.s32.totalorder %s43, %s45
      %p52 = scmp.eq.s32.totalorder %s14, 1
      %p53 = por %p51, %p52
      %p54 = scmp.ne.s32.totalorder %s45, %s46
      %p55 = scmp.eq.s32.totalorder %s14, 0
      %p56 = por %p54, %p55
      %p57 = scmp.ne.s32.totalorder %s45, %s46
      %p58 = scmp.eq.s32.totalorder %s15, 1
      %p59 = por %p57, %p58
      %p61 = scmp.ne.s32.totalorder %s46, %s60
      %p62 = scmp.eq.s32.totalorder %s15, 0
      %p63 = por %p61, %p62
      %s65 = sadd.s32 %s64, 1
      %p68 = scmp.eq.s32.totalorder %s9, 1
      %p69 = scmp.ne.s32.totalorder %s64, %s66
      %p70 = scmp.eq.s32.totalorder %s9, 0
      %p71 = por %p69, %p70
      %p72 = scmp.ne.s32.totalorder %s64, %s66
      %p73 = scmp.eq.s32.totalorder %s14, 1
      %p74 = por %p72, %p73
      %p75 = scmp.ne.s32.totalorder %s66, %s67
      %p76 = scmp.eq.s32.totalorder %s14, 0
      %p77 = por %p75, %p76
      %p78 = scmp.ne.s32.totalorder %s66, %s67
      %p79 = scmp.eq.s32.totalorder %s15, 1
      %p80 = por %p78, %p79
      %p82 = scmp.ne.s32.totalorder %s67, %s81
      %p83 = scmp.eq.s32.totalorder %s15, 0
      %p84 = por %p82, %p83
      %s85 = ssub.s32 %s9, %s16
      %p86 = scmp.eq.s32.totalorder %s85, 0
      %s88 = sadd.s32 %s87, 1
      %s89 = scalar_select %p86, %s87, %s88
      %p92 = pneg %p86
      %p93 = scmp.eq.s32.totalorder %s9, 1
      %p94 = por %p92, %p93
      %p95 = scmp.ne.s32.totalorder %s87, %s90
      %p96 = scmp.eq.s32.totalorder %s9, 0
      %p97 = por %p95, %p96
      %p98 = scmp.ne.s32.totalorder %s87, %s90
      %p99 = scmp.eq.s32.totalorder %s14, 1
      %p100 = por %p98, %p99
      %p101 = scmp.ne.s32.totalorder %s90, %s91
      %p102 = scmp.eq.s32.totalorder %s14, 0
      %p103 = por %p101, %p102
      %p104 = scmp.ne.s32.totalorder %s90, %s91
      %p105 = scmp.eq.s32.totalorder %s15, 1
      %p106 = por %p104, %p105
      %p108 = scmp.ne.s32.totalorder %s91, %s107
      %p109 = scmp.eq.s32.totalorder %s15, 0
      %p110 = por %p108, %p109
      %p111 = scmp.le.s32.totalorder 1, %s9
      %p112 = scmp.lt.s32.totalorder %s9, 3
      %p113 = pnand %p111, %p112
      %p114 = pneg %p113
      // Predicated region
      $region9: #{data_generator_forward.5} parent=5 // pred_check
        _
      $region10: #{data_generator_forward.5} parent=5 // pred_check_branch
        %116 = sbr.rel (%p113) target = $region12
      $region11: #{data_generator_forward.5} parent=5 // pred_region
        %s117 = ssub.s32 %s9, 1
        // Predicated region
        $region13: #{data_generator_forward.5} parent=11 // pred_check
          %p118 = pneg %p56
        $region14: #{data_generator_forward.5} parent=11 // pred_check_branch
          %120 = sbr.rel (%p118) target = $region16
        $region15: #{data_generator_forward.5} parent=11 // pred_region
          _
        $region16: #{data_generator_forward.5} parent=11 // pred_fallthru
          _
        // Predicated region
        $region17: #{data_generator_forward.5} parent=11 // pred_check
          %p121 = pneg %p77
        $region18: #{data_generator_forward.5} parent=11 // pred_check_branch
          %123 = sbr.rel (%p121) target = $region20
        $region19: #{data_generator_forward.5} parent=11 // pred_region
          _
        $region20: #{data_generator_forward.5} parent=11 // pred_fallthru
          _
      $region12: #{data_generator_forward.5} parent=5 // pred_fallthru
        _
      %p124 = scmp.lt.s32.totalorder %s9, 2
      // Predicated region
      $region21: #{data_generator_forward.5} parent=5 // pred_check
        %p125 = pneg %p124
      $region22: #{data_generator_forward.5} parent=5 // pred_check_branch
        %127 = sbr.rel (%p125) target = $region24
      $region23: #{data_generator_forward.5} parent=5 // pred_region
        // Predicated region
        $region25: #{data_generator_forward.5} parent=23 // pred_check
          %p128 = pneg %p29
        $region26: #{data_generator_forward.5} parent=23 // pred_check_branch
          %130 = sbr.rel (%p128) target = $region28
        $region27: #{data_generator_forward.5} parent=23 // pred_region
          %s131 = sand.u32 %s19, 1
          %s132 = sand.u32 %s19, 1
          %s133 = smul.addr %s132, 256
          %s134 = scalar_lea.vmem [#allocation2], %s133
          %s135 = smul.u32 8, %s9
          %s136 = smul.addr %s135, 4
          %s137 = scalar_lea.vmem %s0, %s136
          // Predicated region
          $region29: #{data_generator_forward.5} parent=27 // pred_check
            _
          $region30: #{data_generator_forward.5} parent=27 // pred_check_branch
            %139 = sbr.rel (0) target = $region32
          $region31: #{data_generator_forward.5} parent=27 // pred_region
            // Predicated region
            $region33: #{data_generator_forward.5} parent=31 // pred_check
              _
            $region34: #{data_generator_forward.5} parent=31 // pred_check_branch
              %141 = sbr.rel (0) target = $region36
            $region35: #{data_generator_forward.5} parent=31 // pred_region
              loop: start=0, step=1, limit=1
              $region37: #{data_generator_forward.5} parent=35 // loop_pre_header
                _
              $region38: #{data_generator_forward.5} parent=35 // loop_header
                %s143 = sphi 0, %s147
                %p144 = scmp.ge.s32.totalorder %s143, 1
                %s148 = sphi %s137, %s137
                %s149 = sphi %s134, %s134
              $region39: #{data_generator_forward.5} parent=35 // loop_header_branch
                %146 = sbr.rel (%p144) target = $region43
              $region40: #{data_generator_forward.5} parent=35 // loop_body
                %v150 = vld [vmem:[%s148] sm:$0xff]
                %151 = vst [vmem:[%s149] sm:$0xff] %v150
                %v152 = vld [vmem:[%s148 + $0x8] sm:$0xff]
                %153 = vst [vmem:[%s149 + $0x8] sm:$0xff] %v152
                %v154 = vld [vmem:[%s148 + $0x10] sm:$0xff]
                %155 = vst [vmem:[%s149 + $0x10] sm:$0xff] %v154
                %v156 = vld [vmem:[%s148 + $0x18] sm:$0xff]
                %157 = vst [vmem:[%s149 + $0x18] sm:$0xff] %v156
                %v158 = vld [vmem:[%s148 + $0x40] sm:$0xff]
                %159 = vst [vmem:[%s149 + $0x20] sm:$0xff] %v158
                %v160 = vld [vmem:[%s148 + $0x48] sm:$0xff]
                %161 = vst [vmem:[%s149 + $0x28] sm:$0xff] %v160
                %v162 = vld [vmem:[%s148 + $0x50] sm:$0xff]
                %163 = vst [vmem:[%s149 + $0x30] sm:$0xff] %v162
                %v164 = vld [vmem:[%s148 + $0x58] sm:$0xff]
                %165 = vst [vmem:[%s149 + $0x38] sm:$0xff] %v164
                %v166 = vld [vmem:[%s148 + $0x80] sm:$0xff]
                %167 = vst [vmem:[%s149 + $0x40] sm:$0xff] %v166
                %v168 = vld [vmem:[%s148 + $0x88] sm:$0xff]
                %169 = vst [vmem:[%s149 + $0x48] sm:$0xff] %v168
                %v170 = vld [vmem:[%s148 + $0x90] sm:$0xff]
                %171 = vst [vmem:[%s149 + $0x50] sm:$0xff] %v170
                %v172 = vld [vmem:[%s148 + $0x98] sm:$0xff]
                %173 = vst [vmem:[%s149 + $0x58] sm:$0xff] %v172
                %v174 = vld [vmem:[%s148 + $0xc0] sm:$0xff]
                %175 = vst [vmem:[%s149 + $0x60] sm:$0xff] %v174
                %v176 = vld [vmem:[%s148 + $0xc8] sm:$0xff]
                %177 = vst [vmem:[%s149 + $0x68] sm:$0xff] %v176
                %v178 = vld [vmem:[%s148 + $0xd0] sm:$0xff]
                %179 = vst [vmem:[%s149 + $0x70] sm:$0xff] %v178
                %v180 = vld [vmem:[%s148 + $0xd8] sm:$0xff]
                %181 = vst [vmem:[%s149 + $0x78] sm:$0xff] %v180
                %v182 = vld [vmem:[%s148 + $0x100] sm:$0xff]
                %183 = vst [vmem:[%s149 + $0x80] sm:$0xff] %v182
                %v184 = vld [vmem:[%s148 + $0x108] sm:$0xff]
                %185 = vst [vmem:[%s149 + $0x88] sm:$0xff] %v184
                %v186 = vld [vmem:[%s148 + $0x110] sm:$0xff]
                %187 = vst [vmem:[%s149 + $0x90] sm:$0xff] %v186
                %v188 = vld [vmem:[%s148 + $0x118] sm:$0xff]
                %189 = vst [vmem:[%s149 + $0x98] sm:$0xff] %v188
                %v190 = vld [vmem:[%s148 + $0x140] sm:$0xff]
                %191 = vst [vmem:[%s149 + $0xa0] sm:$0xff] %v190
                %v192 = vld [vmem:[%s148 + $0x148] sm:$0xff]
                %193 = vst [vmem:[%s149 + $0xa8] sm:$0xff] %v192
                %v194 = vld [vmem:[%s148 + $0x150] sm:$0xff]
                %195 = vst [vmem:[%s149 + $0xb0] sm:$0xff] %v194
                %v196 = vld [vmem:[%s148 + $0x158] sm:$0xff]
                %197 = vst [vmem:[%s149 + $0xb8] sm:$0xff] %v196
                %v198 = vld [vmem:[%s148 + $0x180] sm:$0xff]
                %199 = vst [vmem:[%s149 + $0xc0] sm:$0xff] %v198
                %v200 = vld [vmem:[%s148 + $0x188] sm:$0xff]
                %201 = vst [vmem:[%s149 + $0xc8] sm:$0xff] %v200
                %v202 = vld [vmem:[%s148 + $0x190] sm:$0xff]
                %203 = vst [vmem:[%s149 + $0xd0] sm:$0xff] %v202
                %v204 = vld [vmem:[%s148 + $0x198] sm:$0xff]
                %205 = vst [vmem:[%s149 + $0xd8] sm:$0xff] %v204
                %v206 = vld [vmem:[%s148 + $0x1c0] sm:$0xff]
                %207 = vst [vmem:[%s149 + $0xe0] sm:$0xff] %v206
                %v208 = vld [vmem:[%s148 + $0x1c8] sm:$0xff]
                %209 = vst [vmem:[%s149 + $0xe8] sm:$0xff] %v208
                %v210 = vld [vmem:[%s148 + $0x1d0] sm:$0xff]
                %211 = vst [vmem:[%s149 + $0xf0] sm:$0xff] %v210
                %v212 = vld [vmem:[%s148 + $0x1d8] sm:$0xff]
                %213 = vst [vmem:[%s149 + $0xf8] sm:$0xff] %v212
              $region41: #{data_generator_forward.5} parent=35 // loop_footer
                %s147 = sadd.s32 1, %s143
              $region42: #{data_generator_forward.5} parent=35 // loop_footer_branch
                %142 = sbr.rel target = $region38
              $region43: #{data_generator_forward.5} parent=35 // loop_exit
                _
            $region36: #{data_generator_forward.5} parent=31 // pred_fallthru
              _
            // Predicated region
            $region44: #{data_generator_forward.5} parent=31 // pred_check
              _
            $region45: #{data_generator_forward.5} parent=31 // pred_check_branch
              %215 = sbr.rel target = $region47
            $region46: #{data_generator_forward.5} parent=31 // pred_region
              _
            $region47: #{data_generator_forward.5} parent=31 // pred_fallthru
              _
          $region32: #{data_generator_forward.5} parent=27 // pred_fallthru
            _
          %216 = vnop
        $region28: #{data_generator_forward.5} parent=23 // pred_fallthru
          _
      $region24: #{data_generator_forward.5} parent=5 // pred_fallthru
        _
      %p217 = scmp.le.s32.totalorder 1, %s9
      %p218 = scmp.lt.s32.totalorder %s9, 3
      %p219 = pnand %p217, %p218
      %p220 = pneg %p219
      // Predicated region
      $region48: #{data_generator_forward.5} parent=5 // pred_check
        _
      $region49: #{data_generator_forward.5} parent=5 // pred_check_branch
        %222 = sbr.rel (%p219) target = $region51
      $region50: #{data_generator_forward.5} parent=5 // pred_region
        %s223 = ssub.s32 %s9, 1
        %s224 = sand.u32 %s22, 1
        %s225 = sand.u32 %s22, 1
        %s226 = smul.addr %s225, 256
        %s227 = scalar_lea.vmem [#allocation2], %s226
        // Predicated region
        $region52: #{data_generator_forward.5} parent=50 // pred_check
          %p228 = pneg %p35
        $region53: #{data_generator_forward.5} parent=50 // pred_check_branch
          %230 = sbr.rel (%p228) target = $region55
        $region54: #{data_generator_forward.5} parent=50 // pred_region
          _
        $region55: #{data_generator_forward.5} parent=50 // pred_fallthru
          _
        %s231 = sand.u32 %s22, 1
        %s232 = sand.u32 %s22, 1
        %s233 = smul.addr %s232, 256
        %s234 = scalar_lea.vmem [#allocation2], %s233
        %p235 = pneg %p35
        %p236 = pneg %p32
        %p237 = pneg %p56
        %p238 = pneg %p53
        %p239 = pneg %p77
        %p240 = pneg %p74
        %p241 = pneg %p103
        %p242 = pneg %p100
        %s243 = sand.u32 %s90, 1
        %s244 = sand.u32 %s90, 1
        %s245 = smul.addr %s244, 128
        %s246 = scalar_lea.vmem [#allocation3], %s245
        %s247 = smul.u32 8, %s14
        %s248 = smul.u32 8, %s14
        %v250 = vld [vmem:[%s1] sm:$0x3]
        %v251 = vld [vmem:[%s227] sm:$0xff]
        %v252 = vld [vmem:[%s227 + $0x8] sm:$0xff]
        %v253 = vld [vmem:[%s227 + $0x10] sm:$0xff]
        %v254 = vld [vmem:[%s227 + $0x18] sm:$0xff]
        %v255 = vld [vmem:[%s227 + $0x20] sm:$0xff]
        %v256 = vld [vmem:[%s227 + $0x28] sm:$0xff]
        %v257 = vld [vmem:[%s227 + $0x30] sm:$0xff]
        %v258 = vld [vmem:[%s227 + $0x38] sm:$0xff]
        %v259 = vld [vmem:[%s2] sm:$0x7]
        %261 = vset.pattern.permute.xlu0 0
        %262 = vperm.xlu0 %261, %v259
        %v263 = vpop.permute.xlu0 %262
        %v273 = vunpack.c.l.b16 %v251
        %v274 = vunpack.c.h.b16 %v251
        %v275 = vunpack.c.l.b16 %v252
        %v276 = vunpack.c.h.b16 %v252
        %v277 = vunpack.c.l.b16 %v253
        %v278 = vunpack.c.h.b16 %v253
        %v279 = vunpack.c.l.b16 %v254
        %v280 = vunpack.c.h.b16 %v254
        %v281 = vunpack.c.l.b16 %v255
        %v282 = vunpack.c.h.b16 %v255
        %v283 = vunpack.c.l.b16 %v256
        %v284 = vunpack.c.h.b16 %v256
        %v285 = vunpack.c.l.b16 %v257
        %v286 = vunpack.c.h.b16 %v257
        %v287 = vunpack.c.l.b16 %v258
        %v288 = vunpack.c.h.b16 %v258
        %v289 = vpack.c.b16 %v281, %v273
        %v290 = vpack.c.b16 %v282, %v274
        %v291 = vpack.c.b16 %v283, %v275
        %v292 = vpack.c.b16 %v284, %v276
        %v293 = vpack.c.b16 %v285, %v277
        %v294 = vpack.c.b16 %v286, %v278
        %v295 = vpack.c.b16 %v287, %v279
        %v296 = vpack.c.b16 %v288, %v280
        %vm305 = vcmask 130048
        %v307 = vsel %vm305, %v250, 0
        %309 = vmatprep.subr.bf16.mxu0 0
        %310 = vmatpush1.bf16.msra.mxu0 0
        %311 = vmatprep.subr.bf16.mxu0 0
        %312 = vmatpush1.bf16.msra.mxu0 0
        %313 = vmatprep.subr.bf16.mxu0 0
        %314 = vmatpush1.bf16.msra.mxu0 0
        %315 = vmatprep.subr.bf16.mxu0 0
        %316 = vmatpush1.bf16.msra.mxu0 0
        %317 = vmatprep.subr.bf16.mxu0 0
        %318 = vmatpush1.bf16.msra.mxu0 0
        %319 = vmatprep.subr.bf16.mxu0 0
        %320 = vmatpush1.bf16.msra.mxu0 0
        %321 = vmatprep.subr.bf16.mxu0 0
        %322 = vmatpush1.bf16.msra.mxu0 0
        %323 = vmatprep.subr.bf16.mxu0 %v290
        %324 = vmatpush1.bf16.msra.mxu0 %v289
        %325 = vmatprep.subr.bf16.mxu0 0
        %326 = vmatpush2.bf16.msra.mxu0 0
        %327 = vmatprep.subr.bf16.mxu0 0
        %328 = vmatpush2.bf16.msra.mxu0 0
        %329 = vmatprep.subr.bf16.mxu0 0
        %330 = vmatpush2.bf16.msra.mxu0 0
        %331 = vmatprep.subr.bf16.mxu0 0
        %332 = vmatpush2.bf16.msra.mxu0 0
        %333 = vmatprep.subr.bf16.mxu0 0
        %334 = vmatpush2.bf16.msra.mxu0 0
        %335 = vmatprep.subr.bf16.mxu0 0
        %336 = vmatpush2.bf16.msra.mxu0 0
        %337 = vmatprep.subr.bf16.mxu0 0
        %338 = vmatpush2.bf16.msra.mxu0 0
        %339 = vmatprep.subr.bf16.mxu0 0
        %340 = vmatpush2.bf16.msra.mxu0 0
        %341 = vmatprep.mubr.bf16.mxu0 0
        %342 = vmatmul.mubr.bf16.gmra.mxu0 %v307
        %v343 = vpop.f32.mrf.mxu0
        %v344 = vadd.f32 %v263, %v343
        %v345 = vpop.f32.mrf.mxu0
        %v346 = vadd.f32 %v263, %v345
        %v347 = vpop.f32.mrf.mxu0
        %v348 = vpop.f32.mrf.mxu0
        %349 = vdwg.mxu0
        %350 = vmatprep.subr.bf16.mxu0 0
        %351 = vmatpush1.bf16.msra.mxu0 0
        %352 = vmatprep.subr.bf16.mxu0 0
        %353 = vmatpush1.bf16.msra.mxu0 0
        %354 = vmatprep.subr.bf16.mxu0 0
        %355 = vmatpush1.bf16.msra.mxu0 0
        %356 = vmatprep.subr.bf16.mxu0 0
        %357 = vmatpush1.bf16.msra.mxu0 0
        %358 = vmatprep.subr.bf16.mxu0 0
        %359 = vmatpush1.bf16.msra.mxu0 0
        %360 = vmatprep.subr.bf16.mxu0 0
        %361 = vmatpush1.bf16.msra.mxu0 0
        %362 = vmatprep.subr.bf16.mxu0 0
        %363 = vmatpush1.bf16.msra.mxu0 0
        %364 = vmatprep.subr.bf16.mxu0 %v292
        %365 = vmatpush1.bf16.msra.mxu0 %v291
        %366 = vmatprep.subr.bf16.mxu0 0
        %367 = vmatpush2.bf16.msra.mxu0 0
        %368 = vmatprep.subr.bf16.mxu0 0
        %369 = vmatpush2.bf16.msra.mxu0 0
        %370 = vmatprep.subr.bf16.mxu0 0
        %371 = vmatpush2.bf16.msra.mxu0 0
        %372 = vmatprep.subr.bf16.mxu0 0
        %373 = vmatpush2.bf16.msra.mxu0 0
        %374 = vmatprep.subr.bf16.mxu0 0
        %375 = vmatpush2.bf16.msra.mxu0 0
        %376 = vmatprep.subr.bf16.mxu0 0
        %377 = vmatpush2.bf16.msra.mxu0 0
        %378 = vmatprep.subr.bf16.mxu0 0
        %379 = vmatpush2.bf16.msra.mxu0 0
        %380 = vmatprep.subr.bf16.mxu0 0
        %381 = vmatpush2.bf16.msra.mxu0 0
        %382 = vmatprep.mubr.bf16.mxu0 0
        %383 = vmatmul.mubr.bf16.gmra.mxu0 %v307
        %v384 = vpop.f32.mrf.mxu0
        %v385 = vadd.f32 %v263, %v384
        %v386 = vpop.f32.mrf.mxu0
        %v387 = vadd.f32 %v263, %v386
        %v388 = vpop.f32.mrf.mxu0
        %v389 = vpop.f32.mrf.mxu0
        %390 = vdwg.mxu0
        %391 = vmatprep.subr.bf16.mxu0 0
        %392 = vmatpush1.bf16.msra.mxu0 0
        %393 = vmatprep.subr.bf16.mxu0 0
        %394 = vmatpush1.bf16.msra.mxu0 0
        %395 = vmatprep.subr.bf16.mxu0 0
        %396 = vmatpush1.bf16.msra.mxu0 0
        %397 = vmatprep.subr.bf16.mxu0 0
        %398 = vmatpush1.bf16.msra.mxu0 0
        %399 = vmatprep.subr.bf16.mxu0 0
        %400 = vmatpush1.bf16.msra.mxu0 0
        %401 = vmatprep.subr.bf16.mxu0 0
        %402 = vmatpush1.bf16.msra.mxu0 0
        %403 = vmatprep.subr.bf16.mxu0 0
        %404 = vmatpush1.bf16.msra.mxu0 0
        %405 = vmatprep.subr.bf16.mxu0 %v294
        %406 = vmatpush1.bf16.msra.mxu0 %v293
        %407 = vmatprep.subr.bf16.mxu0 0
        %408 = vmatpush2.bf16.msra.mxu0 0
        %409 = vmatprep.subr.bf16.mxu0 0
        %410 = vmatpush2.bf16.msra.mxu0 0
        %411 = vmatprep.subr.bf16.mxu0 0
        %412 = vmatpush2.bf16.msra.mxu0 0
        %413 = vmatprep.subr.bf16.mxu0 0
        %414 = vmatpush2.bf16.msra.mxu0 0
        %415 = vmatprep.subr.bf16.mxu0 0
        %416 = vmatpush2.bf16.msra.mxu0 0
        %417 = vmatprep.subr.bf16.mxu0 0
        %418 = vmatpush2.bf16.msra.mxu0 0
        %419 = vmatprep.subr.bf16.mxu0 0
        %420 = vmatpush2.bf16.msra.mxu0 0
        %421 = vmatprep.subr.bf16.mxu0 0
        %422 = vmatpush2.bf16.msra.mxu0 0
        %423 = vmatprep.mubr.bf16.mxu0 0
        %424 = vmatmul.mubr.bf16.gmra.mxu0 %v307
        %v425 = vpop.f32.mrf.mxu0
        %v426 = vadd.f32 %v263, %v425
        %v427 = vpop.f32.mrf.mxu0
        %v428 = vadd.f32 %v263, %v427
        %v429 = vpop.f32.mrf.mxu0
        %v430 = vpop.f32.mrf.mxu0
        %431 = vdwg.mxu0
        %432 = vmatprep.subr.bf16.mxu0 0
        %433 = vmatpush1.bf16.msra.mxu0 0
        %434 = vmatprep.subr.bf16.mxu0 0
        %435 = vmatpush1.bf16.msra.mxu0 0
        %436 = vmatprep.subr.bf16.mxu0 0
        %437 = vmatpush1.bf16.msra.mxu0 0
        %438 = vmatprep.subr.bf16.mxu0 0
        %439 = vmatpush1.bf16.msra.mxu0 0
        %440 = vmatprep.subr.bf16.mxu0 0
        %441 = vmatpush1.bf16.msra.mxu0 0
        %442 = vmatprep.subr.bf16.mxu0 0
        %443 = vmatpush1.bf16.msra.mxu0 0
        %444 = vmatprep.subr.bf16.mxu0 0
        %445 = vmatpush1.bf16.msra.mxu0 0
        %446 = vmatprep.subr.bf16.mxu0 %v296
        %447 = vmatpush1.bf16.msra.mxu0 %v295
        %448 = vmatprep.subr.bf16.mxu0 0
        %449 = vmatpush2.bf16.msra.mxu0 0
        %450 = vmatprep.subr.bf16.mxu0 0
        %451 = vmatpush2.bf16.msra.mxu0 0
        %452 = vmatprep.subr.bf16.mxu0 0
        %453 = vmatpush2.bf16.msra.mxu0 0
        %454 = vmatprep.subr.bf16.mxu0 0
        %455 = vmatpush2.bf16.msra.mxu0 0
        %456 = vmatprep.subr.bf16.mxu0 0
        %457 = vmatpush2.bf16.msra.mxu0 0
        %458 = vmatprep.subr.bf16.mxu0 0
        %459 = vmatpush2.bf16.msra.mxu0 0
        %460 = vmatprep.subr.bf16.mxu0 0
        %461 = vmatpush2.bf16.msra.mxu0 0
        %462 = vmatprep.subr.bf16.mxu0 0
        %463 = vmatpush2.bf16.msra.mxu0 0
        %464 = vmatprep.mubr.bf16.mxu0 0
        %465 = vmatmul.mubr.bf16.gmra.mxu0 %v307
        %v466 = vpop.f32.mrf.mxu0
        %v467 = vadd.f32 %v263, %v466
        %v468 = vpop.f32.mrf.mxu0
        %v469 = vadd.f32 %v263, %v468
        %v470 = vpop.f32.mrf.mxu0
        %v471 = vpop.f32.mrf.mxu0
        %472 = vdwg.mxu0
        %v473 = vtanh.pop %v344
        %v474 = vtanh.pop %v346
        %v475 = vtanh.pop %v385
        %v476 = vtanh.pop %v387
        %v477 = vtanh.pop %v426
        %v478 = vtanh.pop %v428
        %v479 = vtanh.pop %v467
        %v480 = vtanh.pop %v469
        %v489 = vcombine.low %v473, %v474
        %v490 = vcombine.low %v475, %v476
        %v491 = vcombine.low %v477, %v478
        %v492 = vcombine.low %v479, %v480
        %497 = vst [vmem:[%s246] sm:$0x77] %v489
        %498 = vst [vmem:[%s246 + $0x8] sm:$0x77] %v490
        %499 = vst [vmem:[%s246 + $0x10] sm:$0x77] %v491
        %500 = vst [vmem:[%s246 + $0x18] sm:$0x77] %v492
        %s501 = scalar_lea.vmem %s1, 2
        %v502 = vld [vmem:[%s501] sm:$0x3]
        %s503 = scalar_lea.vmem %s227, 64 [#allocation2]
        %v504 = vld [vmem:[%s503] sm:$0xff]
        %v505 = vld [vmem:[%s503 + $0x8] sm:$0xff]
        %v506 = vld [vmem:[%s503 + $0x10] sm:$0xff]
        %v507 = vld [vmem:[%s503 + $0x18] sm:$0xff]
        %v508 = vld [vmem:[%s503 + $0x20] sm:$0xff]
        %v509 = vld [vmem:[%s503 + $0x28] sm:$0xff]
        %v510 = vld [vmem:[%s503 + $0x30] sm:$0xff]
        %v511 = vld [vmem:[%s503 + $0x38] sm:$0xff]
        %v512 = vld [vmem:[%s2] sm:$0x7]
        %514 = vset.pattern.permute.xlu0 0
        %515 = vperm.xlu0 %514, %v512
        %v516 = vpop.permute.xlu0 %515
        %v526 = vunpack.c.l.b16 %v504
        %v527 = vunpack.c.h.b16 %v504
        %v528 = vunpack.c.l.b16 %v505
        %v529 = vunpack.c.h.b16 %v505
        %v530 = vunpack.c.l.b16 %v506
        %v531 = vunpack.c.h.b16 %v506
        %v532 = vunpack.c.l.b16 %v507
        %v533 = vunpack.c.h.b16 %v507
        %v534 = vunpack.c.l.b16 %v508
        %v535 = vunpack.c.h.b16 %v508
        %v536 = vunpack.c.l.b16 %v509
        %v537 = vunpack.c.h.b16 %v509
        %v538 = vunpack.c.l.b16 %v510
        %v539 = vunpack.c.h.b16 %v510
        %v540 = vunpack.c.l.b16 %v511
        %v541 = vunpack.c.h.b16 %v511
        %v542 = vpack.c.b16 %v534, %v526
        %v543 = vpack.c.b16 %v535, %v527
        %v544 = vpack.c.b16 %v536, %v528
        %v545 = vpack.c.b16 %v537, %v529
        %v546 = vpack.c.b16 %v538, %v530
        %v547 = vpack.c.b16 %v539, %v531
        %v548 = vpack.c.b16 %v540, %v532
        %v549 = vpack.c.b16 %v541, %v533
        %v559 = vsel %vm305, %v502, 0
        %561 = vmatprep.subr.bf16.mxu0 0
        %562 = vmatpush1.bf16.msra.mxu0 0
        %563 = vmatprep.subr.bf16.mxu0 0
        %564 = vmatpush1.bf16.msra.mxu0 0
        %565 = vmatprep.subr.bf16.mxu0 0
        %566 = vmatpush1.bf16.msra.mxu0 0
        %567 = vmatprep.subr.bf16.mxu0 0
        %568 = vmatpush1.bf16.msra.mxu0 0
        %569 = vmatprep.subr.bf16.mxu0 0
        %570 = vmatpush1.bf16.msra.mxu0 0
        %571 = vmatprep.subr.bf16.mxu0 0
        %572 = vmatpush1.bf16.msra.mxu0 0
        %573 = vmatprep.subr.bf16.mxu0 0
        %574 = vmatpush1.bf16.msra.mxu0 0
        %575 = vmatprep.subr.bf16.mxu0 %v543
        %576 = vmatpush1.bf16.msra.mxu0 %v542
        %577 = vmatprep.subr.bf16.mxu0 0
        %578 = vmatpush2.bf16.msra.mxu0 0
        %579 = vmatprep.subr.bf16.mxu0 0
        %580 = vmatpush2.bf16.msra.mxu0 0
        %581 = vmatprep.subr.bf16.mxu0 0
        %582 = vmatpush2.bf16.msra.mxu0 0
        %583 = vmatprep.subr.bf16.mxu0 0
        %584 = vmatpush2.bf16.msra.mxu0 0
        %585 = vmatprep.subr.bf16.mxu0 0
        %586 = vmatpush2.bf16.msra.mxu0 0
        %587 = vmatprep.subr.bf16.mxu0 0
        %588 = vmatpush2.bf16.msra.mxu0 0
        %589 = vmatprep.subr.bf16.mxu0 0
        %590 = vmatpush2.bf16.msra.mxu0 0
        %591 = vmatprep.subr.bf16.mxu0 0
        %592 = vmatpush2.bf16.msra.mxu0 0
        %593 = vmatprep.mubr.bf16.mxu0 0
        %594 = vmatmul.mubr.bf16.gmra.mxu0 %v559
        %v595 = vpop.f32.mrf.mxu0
        %v596 = vadd.f32 %v516, %v595
        %v597 = vpop.f32.mrf.mxu0
        %v598 = vadd.f32 %v516, %v597
        %v599 = vpop.f32.mrf.mxu0
        %v600 = vpop.f32.mrf.mxu0
        %601 = vdwg.mxu0
        %602 = vmatprep.subr.bf16.mxu0 0
        %603 = vmatpush1.bf16.msra.mxu0 0
        %604 = vmatprep.subr.bf16.mxu0 0
        %605 = vmatpush1.bf16.msra.mxu0 0
        %606 = vmatprep.subr.bf16.mxu0 0
        %607 = vmatpush1.bf16.msra.mxu0 0
        %608 = vmatprep.subr.bf16.mxu0 0
        %609 = vmatpush1.bf16.msra.mxu0 0
        %610 = vmatprep.subr.bf16.mxu0 0
        %611 = vmatpush1.bf16.msra.mxu0 0
        %612 = vmatprep.subr.bf16.mxu0 0
        %613 = vmatpush1.bf16.msra.mxu0 0
        %614 = vmatprep.subr.bf16.mxu0 0
        %615 = vmatpush1.bf16.msra.mxu0 0
        %616 = vmatprep.subr.bf16.mxu0 %v545
        %617 = vmatpush1.bf16.msra.mxu0 %v544
        %618 = vmatprep.subr.bf16.mxu0 0
        %619 = vmatpush2.bf16.msra.mxu0 0
        %620 = vmatprep.subr.bf16.mxu0 0
        %621 = vmatpush2.bf16.msra.mxu0 0
        %622 = vmatprep.subr.bf16.mxu0 0
        %623 = vmatpush2.bf16.msra.mxu0 0
        %624 = vmatprep.subr.bf16.mxu0 0
        %625 = vmatpush2.bf16.msra.mxu0 0
        %626 = vmatprep.subr.bf16.mxu0 0
        %627 = vmatpush2.bf16.msra.mxu0 0
        %628 = vmatprep.subr.bf16.mxu0 0
        %629 = vmatpush2.bf16.msra.mxu0 0
        %630 = vmatprep.subr.bf16.mxu0 0
        %631 = vmatpush2.bf16.msra.mxu0 0
        %632 = vmatprep.subr.bf16.mxu0 0
        %633 = vmatpush2.bf16.msra.mxu0 0
        %634 = vmatprep.mubr.bf16.mxu0 0
        %635 = vmatmul.mubr.bf16.gmra.mxu0 %v559
        %v636 = vpop.f32.mrf.mxu0
        %v637 = vadd.f32 %v516, %v636
        %v638 = vpop.f32.mrf.mxu0
        %v639 = vadd.f32 %v516, %v638
        %v640 = vpop.f32.mrf.mxu0
        %v641 = vpop.f32.mrf.mxu0
        %642 = vdwg.mxu0
        %643 = vmatprep.subr.bf16.mxu0 0
        %644 = vmatpush1.bf16.msra.mxu0 0
        %645 = vmatprep.subr.bf16.mxu0 0
        %646 = vmatpush1.bf16.msra.mxu0 0
        %647 = vmatprep.subr.bf16.mxu0 0
        %648 = vmatpush1.bf16.msra.mxu0 0
        %649 = vmatprep.subr.bf16.mxu0 0
        %650 = vmatpush1.bf16.msra.mxu0 0
        %651 = vmatprep.subr.bf16.mxu0 0
        %652 = vmatpush1.bf16.msra.mxu0 0
        %653 = vmatprep.subr.bf16.mxu0 0
        %654 = vmatpush1.bf16.msra.mxu0 0
        %655 = vmatprep.subr.bf16.mxu0 0
        %656 = vmatpush1.bf16.msra.mxu0 0
        %657 = vmatprep.subr.bf16.mxu0 %v547
        %658 = vmatpush1.bf16.msra.mxu0 %v546
        %659 = vmatprep.subr.bf16.mxu0 0
        %660 = vmatpush2.bf16.msra.mxu0 0
        %661 = vmatprep.subr.bf16.mxu0 0
        %662 = vmatpush2.bf16.msra.mxu0 0
        %663 = vmatprep.subr.bf16.mxu0 0
        %664 = vmatpush2.bf16.msra.mxu0 0
        %665 = vmatprep.subr.bf16.mxu0 0
        %666 = vmatpush2.bf16.msra.mxu0 0
        %667 = vmatprep.subr.bf16.mxu0 0
        %668 = vmatpush2.bf16.msra.mxu0 0
        %669 = vmatprep.subr.bf16.mxu0 0
        %670 = vmatpush2.bf16.msra.mxu0 0
        %671 = vmatprep.subr.bf16.mxu0 0
        %672 = vmatpush2.bf16.msra.mxu0 0
        %673 = vmatprep.subr.bf16.mxu0 0
        %674 = vmatpush2.bf16.msra.mxu0 0
        %675 = vmatprep.mubr.bf16.mxu0 0
        %676 = vmatmul.mubr.bf16.gmra.mxu0 %v559
        %v677 = vpop.f32.mrf.mxu0
        %v678 = vadd.f32 %v516, %v677
        %v679 = vpop.f32.mrf.mxu0
        %v680 = vadd.f32 %v516, %v679
        %v681 = vpop.f32.mrf.mxu0
        %v682 = vpop.f32.mrf.mxu0
        %683 = vdwg.mxu0
        %684 = vmatprep.subr.bf16.mxu0 0
        %685 = vmatpush1.bf16.msra.mxu0 0
        %686 = vmatprep.subr.bf16.mxu0 0
        %687 = vmatpush1.bf16.msra.mxu0 0
        %688 = vmatprep.subr.bf16.mxu0 0
        %689 = vmatpush1.bf16.msra.mxu0 0
        %690 = vmatprep.subr.bf16.mxu0 0
        %691 = vmatpush1.bf16.msra.mxu0 0
        %692 = vmatprep.subr.bf16.mxu0 0
        %693 = vmatpush1.bf16.msra.mxu0 0
        %694 = vmatprep.subr.bf16.mxu0 0
        %695 = vmatpush1.bf16.msra.mxu0 0
        %696 = vmatprep.subr.bf16.mxu0 0
        %697 = vmatpush1.bf16.msra.mxu0 0
        %698 = vmatprep.subr.bf16.mxu0 %v549
        %699 = vmatpush1.bf16.msra.mxu0 %v548
        %700 = vmatprep.subr.bf16.mxu0 0
        %701 = vmatpush2.bf16.msra.mxu0 0
        %702 = vmatprep.subr.bf16.mxu0 0
        %703 = vmatpush2.bf16.msra.mxu0 0
        %704 = vmatprep.subr.bf16.mxu0 0
        %705 = vmatpush2.bf16.msra.mxu0 0
        %706 = vmatprep.subr.bf16.mxu0 0
        %707 = vmatpush2.bf16.msra.mxu0 0
        %708 = vmatprep.subr.bf16.mxu0 0
        %709 = vmatpush2.bf16.msra.mxu0 0
        %710 = vmatprep.subr.bf16.mxu0 0
        %711 = vmatpush2.bf16.msra.mxu0 0
        %712 = vmatprep.subr.bf16.mxu0 0
        %713 = vmatpush2.bf16.msra.mxu0 0
        %714 = vmatprep.subr.bf16.mxu0 0
        %715 = vmatpush2.bf16.msra.mxu0 0
        %716 = vmatprep.mubr.bf16.mxu0 0
        %717 = vmatmul.mubr.bf16.gmra.mxu0 %v559
        %v718 = vpop.f32.mrf.mxu0
        %v719 = vadd.f32 %v516, %v718
        %v720 = vpop.f32.mrf.mxu0
        %v721 = vadd.f32 %v516, %v720
        %v722 = vpop.f32.mrf.mxu0
        %v723 = vpop.f32.mrf.mxu0
        %724 = vdwg.mxu0
        %v725 = vtanh.pop %v596
        %v726 = vtanh.pop %v598
        %v727 = vtanh.pop %v637
        %v728 = vtanh.pop %v639
        %v729 = vtanh.pop %v678
        %v730 = vtanh.pop %v680
        %v731 = vtanh.pop %v719
        %v732 = vtanh.pop %v721
        %v741 = vcombine.low %v725, %v726
        %v742 = vcombine.low %v727, %v728
        %v743 = vcombine.low %v729, %v730
        %v744 = vcombine.low %v731, %v732
        %s749 = scalar_lea.vmem %s246, 32 [#allocation3]
        %750 = vst [vmem:[%s749] sm:$0x77] %v741
        %751 = vst [vmem:[%s749 + $0x8] sm:$0x77] %v742
        %752 = vst [vmem:[%s749 + $0x10] sm:$0x77] %v743
        %753 = vst [vmem:[%s749 + $0x18] sm:$0x77] %v744
        %s754 = scalar_lea.vmem %s1, 4
        %v755 = vld [vmem:[%s754] sm:$0x3]
        %s756 = scalar_lea.vmem %s227, 128 [#allocation2]
        %v757 = vld [vmem:[%s756] sm:$0xff]
        %v758 = vld [vmem:[%s756 + $0x8] sm:$0xff]
        %v759 = vld [vmem:[%s756 + $0x10] sm:$0xff]
        %v760 = vld [vmem:[%s756 + $0x18] sm:$0xff]
        %v761 = vld [vmem:[%s756 + $0x20] sm:$0xff]
        %v762 = vld [vmem:[%s756 + $0x28] sm:$0xff]
        %v763 = vld [vmem:[%s756 + $0x30] sm:$0xff]
        %v764 = vld [vmem:[%s756 + $0x38] sm:$0xff]
        %v765 = vld [vmem:[%s2] sm:$0x7]
        %767 = vset.pattern.permute.xlu0 0
        %768 = vperm.xlu0 %767, %v765
        %v769 = vpop.permute.xlu0 %768
        %v779 = vunpack.c.l.b16 %v757
        %v780 = vunpack.c.h.b16 %v757
        %v781 = vunpack.c.l.b16 %v758
        %v782 = vunpack.c.h.b16 %v758
        %v783 = vunpack.c.l.b16 %v759
        %v784 = vunpack.c.h.b16 %v759
        %v785 = vunpack.c.l.b16 %v760
        %v786 = vunpack.c.h.b16 %v760
        %v787 = vunpack.c.l.b16 %v761
        %v788 = vunpack.c.h.b16 %v761
        %v789 = vunpack.c.l.b16 %v762
        %v790 = vunpack.c.h.b16 %v762
        %v791 = vunpack.c.l.b16 %v763
        %v792 = vunpack.c.h.b16 %v763
        %v793 = vunpack.c.l.b16 %v764
        %v794 = vunpack.c.h.b16 %v764
        %v795 = vpack.c.b16 %v787, %v779
        %v796 = vpack.c.b16 %v788, %v780
        %v797 = vpack.c.b16 %v789, %v781
        %v798 = vpack.c.b16 %v790, %v782
        %v799 = vpack.c.b16 %v791, %v783
        %v800 = vpack.c.b16 %v792, %v784
        %v801 = vpack.c.b16 %v793, %v785
        %v802 = vpack.c.b16 %v794, %v786
        %v812 = vsel %vm305, %v755, 0
        %814 = vmatprep.subr.bf16.mxu0 0
        %815 = vmatpush1.bf16.msra.mxu0 0
        %816 = vmatprep.subr.bf16.mxu0 0
        %817 = vmatpush1.bf16.msra.mxu0 0
        %818 = vmatprep.subr.bf16.mxu0 0
        %819 = vmatpush1.bf16.msra.mxu0 0
        %820 = vmatprep.subr.bf16.mxu0 0
        %821 = vmatpush1.bf16.msra.mxu0 0
        %822 = vmatprep.subr.bf16.mxu0 0
        %823 = vmatpush1.bf16.msra.mxu0 0
        %824 = vmatprep.subr.bf16.mxu0 0
        %825 = vmatpush1.bf16.msra.mxu0 0
        %826 = vmatprep.subr.bf16.mxu0 0
        %827 = vmatpush1.bf16.msra.mxu0 0
        %828 = vmatprep.subr.bf16.mxu0 %v796
        %829 = vmatpush1.bf16.msra.mxu0 %v795
        %830 = vmatprep.subr.bf16.mxu0 0
        %831 = vmatpush2.bf16.msra.mxu0 0
        %832 = vmatprep.subr.bf16.mxu0 0
        %833 = vmatpush2.bf16.msra.mxu0 0
        %834 = vmatprep.subr.bf16.mxu0 0
        %835 = vmatpush2.bf16.msra.mxu0 0
        %836 = vmatprep.subr.bf16.mxu0 0
        %837 = vmatpush2.bf16.msra.mxu0 0
        %838 = vmatprep.subr.bf16.mxu0 0
        %839 = vmatpush2.bf16.msra.mxu0 0
        %840 = vmatprep.subr.bf16.mxu0 0
        %841 = vmatpush2.bf16.msra.mxu0 0
        %842 = vmatprep.subr.bf16.mxu0 0
        %843 = vmatpush2.bf16.msra.mxu0 0
        %844 = vmatprep.subr.bf16.mxu0 0
        %845 = vmatpush2.bf16.msra.mxu0 0
        %846 = vmatprep.mubr.bf16.mxu0 0
        %847 = vmatmul.mubr.bf16.gmra.mxu0 %v812
        %v848 = vpop.f32.mrf.mxu0
        %v849 = vadd.f32 %v769, %v848
        %v850 = vpop.f32.mrf.mxu0
        %v851 = vadd.f32 %v769, %v850
        %v852 = vpop.f32.mrf.mxu0
        %v853 = vpop.f32.mrf.mxu0
        %854 = vdwg.mxu0
        %855 = vmatprep.subr.bf16.mxu0 0
        %856 = vmatpush1.bf16.msra.mxu0 0
        %857 = vmatprep.subr.bf16.mxu0 0
        %858 = vmatpush1.bf16.msra.mxu0 0
        %859 = vmatprep.subr.bf16.mxu0 0
        %860 = vmatpush1.bf16.msra.mxu0 0
        %861 = vmatprep.subr.bf16.mxu0 0
        %862 = vmatpush1.bf16.msra.mxu0 0
        %863 = vmatprep.subr.bf16.mxu0 0
        %864 = vmatpush1.bf16.msra.mxu0 0
        %865 = vmatprep.subr.bf16.mxu0 0
        %866 = vmatpush1.bf16.msra.mxu0 0
        %867 = vmatprep.subr.bf16.mxu0 0
        %868 = vmatpush1.bf16.msra.mxu0 0
        %869 = vmatprep.subr.bf16.mxu0 %v798
        %870 = vmatpush1.bf16.msra.mxu0 %v797
        %871 = vmatprep.subr.bf16.mxu0 0
        %872 = vmatpush2.bf16.msra.mxu0 0
        %873 = vmatprep.subr.bf16.mxu0 0
        %874 = vmatpush2.bf16.msra.mxu0 0
        %875 = vmatprep.subr.bf16.mxu0 0
        %876 = vmatpush2.bf16.msra.mxu0 0
        %877 = vmatprep.subr.bf16.mxu0 0
        %878 = vmatpush2.bf16.msra.mxu0 0
        %879 = vmatprep.subr.bf16.mxu0 0
        %880 = vmatpush2.bf16.msra.mxu0 0
        %881 = vmatprep.subr.bf16.mxu0 0
        %882 = vmatpush2.bf16.msra.mxu0 0
        %883 = vmatprep.subr.bf16.mxu0 0
        %884 = vmatpush2.bf16.msra.mxu0 0
        %885 = vmatprep.subr.bf16.mxu0 0
        %886 = vmatpush2.bf16.msra.mxu0 0
        %887 = vmatprep.mubr.bf16.mxu0 0
        %888 = vmatmul.mubr.bf16.gmra.mxu0 %v812
        %v889 = vpop.f32.mrf.mxu0
        %v890 = vadd.f32 %v769, %v889
        %v891 = vpop.f32.mrf.mxu0
        %v892 = vadd.f32 %v769, %v891
        %v893 = vpop.f32.mrf.mxu0
        %v894 = vpop.f32.mrf.mxu0
        %895 = vdwg.mxu0
        %896 = vmatprep.subr.bf16.mxu0 0
        %897 = vmatpush1.bf16.msra.mxu0 0
        %898 = vmatprep.subr.bf16.mxu0 0
        %899 = vmatpush1.bf16.msra.mxu0 0
        %900 = vmatprep.subr.bf16.mxu0 0
        %901 = vmatpush1.bf16.msra.mxu0 0
        %902 = vmatprep.subr.bf16.mxu0 0
        %903 = vmatpush1.bf16.msra.mxu0 0
        %904 = vmatprep.subr.bf16.mxu0 0
        %905 = vmatpush1.bf16.msra.mxu0 0
        %906 = vmatprep.subr.bf16.mxu0 0
        %907 = vmatpush1.bf16.msra.mxu0 0
        %908 = vmatprep.subr.bf16.mxu0 0
        %909 = vmatpush1.bf16.msra.mxu0 0
        %910 = vmatprep.subr.bf16.mxu0 %v800
        %911 = vmatpush1.bf16.msra.mxu0 %v799
        %912 = vmatprep.subr.bf16.mxu0 0
        %913 = vmatpush2.bf16.msra.mxu0 0
        %914 = vmatprep.subr.bf16.mxu0 0
        %915 = vmatpush2.bf16.msra.mxu0 0
        %916 = vmatprep.subr.bf16.mxu0 0
        %917 = vmatpush2.bf16.msra.mxu0 0
        %918 = vmatprep.subr.bf16.mxu0 0
        %919 = vmatpush2.bf16.msra.mxu0 0
        %920 = vmatprep.subr.bf16.mxu0 0
        %921 = vmatpush2.bf16.msra.mxu0 0
        %922 = vmatprep.subr.bf16.mxu0 0
        %923 = vmatpush2.bf16.msra.mxu0 0
        %924 = vmatprep.subr.bf16.mxu0 0
        %925 = vmatpush2.bf16.msra.mxu0 0
        %926 = vmatprep.subr.bf16.mxu0 0
        %927 = vmatpush2.bf16.msra.mxu0 0
        %928 = vmatprep.mubr.bf16.mxu0 0
        %929 = vmatmul.mubr.bf16.gmra.mxu0 %v812
        %v930 = vpop.f32.mrf.mxu0
        %v931 = vadd.f32 %v769, %v930
        %v932 = vpop.f32.mrf.mxu0
        %v933 = vadd.f32 %v769, %v932
        %v934 = vpop.f32.mrf.mxu0
        %v935 = vpop.f32.mrf.mxu0
        %936 = vdwg.mxu0
        %937 = vmatprep.subr.bf16.mxu0 0
        %938 = vmatpush1.bf16.msra.mxu0 0
        %939 = vmatprep.subr.bf16.mxu0 0
        %940 = vmatpush1.bf16.msra.mxu0 0
        %941 = vmatprep.subr.bf16.mxu0 0
        %942 = vmatpush1.bf16.msra.mxu0 0
        %943 = vmatprep.subr.bf16.mxu0 0
        %944 = vmatpush1.bf16.msra.mxu0 0
        %945 = vmatprep.subr.bf16.mxu0 0
        %946 = vmatpush1.bf16.msra.mxu0 0
        %947 = vmatprep.subr.bf16.mxu0 0
        %948 = vmatpush1.bf16.msra.mxu0 0
        %949 = vmatprep.subr.bf16.mxu0 0
        %950 = vmatpush1.bf16.msra.mxu0 0
        %951 = vmatprep.subr.bf16.mxu0 %v802
        %952 = vmatpush1.bf16.msra.mxu0 %v801
        %953 = vmatprep.subr.bf16.mxu0 0
        %954 = vmatpush2.bf16.msra.mxu0 0
        %955 = vmatprep.subr.bf16.mxu0 0
        %956 = vmatpush2.bf16.msra.mxu0 0
        %957 = vmatprep.subr.bf16.mxu0 0
        %958 = vmatpush2.bf16.msra.mxu0 0
        %959 = vmatprep.subr.bf16.mxu0 0
        %960 = vmatpush2.bf16.msra.mxu0 0
        %961 = vmatprep.subr.bf16.mxu0 0
        %962 = vmatpush2.bf16.msra.mxu0 0
        %963 = vmatprep.subr.bf16.mxu0 0
        %964 = vmatpush2.bf16.msra.mxu0 0
        %965 = vmatprep.subr.bf16.mxu0 0
        %966 = vmatpush2.bf16.msra.mxu0 0
        %967 = vmatprep.subr.bf16.mxu0 0
        %968 = vmatpush2.bf16.msra.mxu0 0
        %969 = vmatprep.mubr.bf16.mxu0 0
        %970 = vmatmul.mubr.bf16.gmra.mxu0 %v812
        %v971 = vpop.f32.mrf.mxu0
        %v972 = vadd.f32 %v769, %v971
        %v973 = vpop.f32.mrf.mxu0
        %v974 = vadd.f32 %v769, %v973
        %v975 = vpop.f32.mrf.mxu0
        %v976 = vpop.f32.mrf.mxu0
        %977 = vdwg.mxu0
        %v978 = vtanh.pop %v849
        %v979 = vtanh.pop %v851
        %v980 = vtanh.pop %v890
        %v981 = vtanh.pop %v892
        %v982 = vtanh.pop %v931
        %v983 = vtanh.pop %v933
        %v984 = vtanh.pop %v972
        %v985 = vtanh.pop %v974
        %v994 = vcombine.low %v978, %v979
        %v995 = vcombine.low %v980, %v981
        %v996 = vcombine.low %v982, %v983
        %v997 = vcombine.low %v984, %v985
        %s1002 = scalar_lea.vmem %s246, 64 [#allocation3]
        %1003 = vst [vmem:[%s1002] sm:$0x77] %v994
        %1004 = vst [vmem:[%s1002 + $0x8] sm:$0x77] %v995
        %1005 = vst [vmem:[%s1002 + $0x10] sm:$0x77] %v996
        %1006 = vst [vmem:[%s1002 + $0x18] sm:$0x77] %v997
        %s1007 = scalar_lea.vmem %s1, 6
        %v1008 = vld [vmem:[%s1007] sm:$0x3]
        %s1009 = scalar_lea.vmem %s227, 192 [#allocation2]
        %v1010 = vld [vmem:[%s1009] sm:$0xff]
        %v1011 = vld [vmem:[%s1009 + $0x8] sm:$0xff]
        %v1012 = vld [vmem:[%s1009 + $0x10] sm:$0xff]
        %v1013 = vld [vmem:[%s1009 + $0x18] sm:$0xff]
        %v1014 = vld [vmem:[%s1009 + $0x20] sm:$0xff]
        %v1015 = vld [vmem:[%s1009 + $0x28] sm:$0xff]
        %v1016 = vld [vmem:[%s1009 + $0x30] sm:$0xff]
        %v1017 = vld [vmem:[%s1009 + $0x38] sm:$0xff]
        %v1018 = vld [vmem:[%s2] sm:$0x7]
        %1020 = vset.pattern.permute.xlu0 0
        %1021 = vperm.xlu0 %1020, %v1018
        %v1022 = vpop.permute.xlu0 %1021
        %v1032 = vunpack.c.l.b16 %v1010
        %v1033 = vunpack.c.h.b16 %v1010
        %v1034 = vunpack.c.l.b16 %v1011
        %v1035 = vunpack.c.h.b16 %v1011
        %v1036 = vunpack.c.l.b16 %v1012
        %v1037 = vunpack.c.h.b16 %v1012
        %v1038 = vunpack.c.l.b16 %v1013
        %v1039 = vunpack.c.h.b16 %v1013
        %v1040 = vunpack.c.l.b16 %v1014
        %v1041 = vunpack.c.h.b16 %v1014
        %v1042 = vunpack.c.l.b16 %v1015
        %v1043 = vunpack.c.h.b16 %v1015
        %v1044 = vunpack.c.l.b16 %v1016
        %v1045 = vunpack.c.h.b16 %v1016
        %v1046 = vunpack.c.l.b16 %v1017
        %v1047 = vunpack.c.h.b16 %v1017
        %v1048 = vpack.c.b16 %v1040, %v1032
        %v1049 = vpack.c.b16 %v1041, %v1033
        %v1050 = vpack.c.b16 %v1042, %v1034
        %v1051 = vpack.c.b16 %v1043, %v1035
        %v1052 = vpack.c.b16 %v1044, %v1036
        %v1053 = vpack.c.b16 %v1045, %v1037
        %v1054 = vpack.c.b16 %v1046, %v1038
        %v1055 = vpack.c.b16 %v1047, %v1039
        %v1065 = vsel %vm305, %v1008, 0
        %1067 = vmatprep.subr.bf16.mxu0 0
        %1068 = vmatpush1.bf16.msra.mxu0 0
        %1069 = vmatprep.subr.bf16.mxu0 0
        %1070 = vmatpush1.bf16.msra.mxu0 0
        %1071 = vmatprep.subr.bf16.mxu0 0
        %1072 = vmatpush1.bf16.msra.mxu0 0
        %1073 = vmatprep.subr.bf16.mxu0 0
        %1074 = vmatpush1.bf16.msra.mxu0 0
        %1075 = vmatprep.subr.bf16.mxu0 0
        %1076 = vmatpush1.bf16.msra.mxu0 0
        %1077 = vmatprep.subr.bf16.mxu0 0
        %1078 = vmatpush1.bf16.msra.mxu0 0
        %1079 = vmatprep.subr.bf16.mxu0 0
        %1080 = vmatpush1.bf16.msra.mxu0 0
        %1081 = vmatprep.subr.bf16.mxu0 %v1049
        %1082 = vmatpush1.bf16.msra.mxu0 %v1048
        %1083 = vmatprep.subr.bf16.mxu0 0
        %1084 = vmatpush2.bf16.msra.mxu0 0
        %1085 = vmatprep.subr.bf16.mxu0 0
        %1086 = vmatpush2.bf16.msra.mxu0 0
        %1087 = vmatprep.subr.bf16.mxu0 0
        %1088 = vmatpush2.bf16.msra.mxu0 0
        %1089 = vmatprep.subr.bf16.mxu0 0
        %1090 = vmatpush2.bf16.msra.mxu0 0
        %1091 = vmatprep.subr.bf16.mxu0 0
        %1092 = vmatpush2.bf16.msra.mxu0 0
        %1093 = vmatprep.subr.bf16.mxu0 0
        %1094 = vmatpush2.bf16.msra.mxu0 0
        %1095 = vmatprep.subr.bf16.mxu0 0
        %1096 = vmatpush2.bf16.msra.mxu0 0
        %1097 = vmatprep.subr.bf16.mxu0 0
        %1098 = vmatpush2.bf16.msra.mxu0 0
        %1099 = vmatprep.mubr.bf16.mxu0 0
        %1100 = vmatmul.mubr.bf16.gmra.mxu0 %v1065
        %v1101 = vpop.f32.mrf.mxu0
        %v1102 = vadd.f32 %v1022, %v1101
        %v1103 = vpop.f32.mrf.mxu0
        %v1104 = vadd.f32 %v1022, %v1103
        %v1105 = vpop.f32.mrf.mxu0
        %v1106 = vpop.f32.mrf.mxu0
        %1107 = vdwg.mxu0
        %1108 = vmatprep.subr.bf16.mxu0 0
        %1109 = vmatpush1.bf16.msra.mxu0 0
        %1110 = vmatprep.subr.bf16.mxu0 0
        %1111 = vmatpush1.bf16.msra.mxu0 0
        %1112 = vmatprep.subr.bf16.mxu0 0
        %1113 = vmatpush1.bf16.msra.mxu0 0
        %1114 = vmatprep.subr.bf16.mxu0 0
        %1115 = vmatpush1.bf16.msra.mxu0 0
        %1116 = vmatprep.subr.bf16.mxu0 0
        %1117 = vmatpush1.bf16.msra.mxu0 0
        %1118 = vmatprep.subr.bf16.mxu0 0
        %1119 = vmatpush1.bf16.msra.mxu0 0
        %1120 = vmatprep.subr.bf16.mxu0 0
        %1121 = vmatpush1.bf16.msra.mxu0 0
        %1122 = vmatprep.subr.bf16.mxu0 %v1051
        %1123 = vmatpush1.bf16.msra.mxu0 %v1050
        %1124 = vmatprep.subr.bf16.mxu0 0
        %1125 = vmatpush2.bf16.msra.mxu0 0
        %1126 = vmatprep.subr.bf16.mxu0 0
        %1127 = vmatpush2.bf16.msra.mxu0 0
        %1128 = vmatprep.subr.bf16.mxu0 0
        %1129 = vmatpush2.bf16.msra.mxu0 0
        %1130 = vmatprep.subr.bf16.mxu0 0
        %1131 = vmatpush2.bf16.msra.mxu0 0
        %1132 = vmatprep.subr.bf16.mxu0 0
        %1133 = vmatpush2.bf16.msra.mxu0 0
        %1134 = vmatprep.subr.bf16.mxu0 0
        %1135 = vmatpush2.bf16.msra.mxu0 0
        %1136 = vmatprep.subr.bf16.mxu0 0
        %1137 = vmatpush2.bf16.msra.mxu0 0
        %1138 = vmatprep.subr.bf16.mxu0 0
        %1139 = vmatpush2.bf16.msra.mxu0 0
        %1140 = vmatprep.mubr.bf16.mxu0 0
        %1141 = vmatmul.mubr.bf16.gmra.mxu0 %v1065
        %v1142 = vpop.f32.mrf.mxu0
        %v1143 = vadd.f32 %v1022, %v1142
        %v1144 = vpop.f32.mrf.mxu0
        %v1145 = vadd.f32 %v1022, %v1144
        %v1146 = vpop.f32.mrf.mxu0
        %v1147 = vpop.f32.mrf.mxu0
        %1148 = vdwg.mxu0
        %1149 = vmatprep.subr.bf16.mxu0 0
        %1150 = vmatpush1.bf16.msra.mxu0 0
        %1151 = vmatprep.subr.bf16.mxu0 0
        %1152 = vmatpush1.bf16.msra.mxu0 0
        %1153 = vmatprep.subr.bf16.mxu0 0
        %1154 = vmatpush1.bf16.msra.mxu0 0
        %1155 = vmatprep.subr.bf16.mxu0 0
        %1156 = vmatpush1.bf16.msra.mxu0 0
        %1157 = vmatprep.subr.bf16.mxu0 0
        %1158 = vmatpush1.bf16.msra.mxu0 0
        %1159 = vmatprep.subr.bf16.mxu0 0
        %1160 = vmatpush1.bf16.msra.mxu0 0
        %1161 = vmatprep.subr.bf16.mxu0 0
        %1162 = vmatpush1.bf16.msra.mxu0 0
        %1163 = vmatprep.subr.bf16.mxu0 %v1053
        %1164 = vmatpush1.bf16.msra.mxu0 %v1052
        %1165 = vmatprep.subr.bf16.mxu0 0
        %1166 = vmatpush2.bf16.msra.mxu0 0
        %1167 = vmatprep.subr.bf16.mxu0 0
        %1168 = vmatpush2.bf16.msra.mxu0 0
        %1169 = vmatprep.subr.bf16.mxu0 0
        %1170 = vmatpush2.bf16.msra.mxu0 0
        %1171 = vmatprep.subr.bf16.mxu0 0
        %1172 = vmatpush2.bf16.msra.mxu0 0
        %1173 = vmatprep.subr.bf16.mxu0 0
        %1174 = vmatpush2.bf16.msra.mxu0 0
        %1175 = vmatprep.subr.bf16.mxu0 0
        %1176 = vmatpush2.bf16.msra.mxu0 0
        %1177 = vmatprep.subr.bf16.mxu0 0
        %1178 = vmatpush2.bf16.msra.mxu0 0
        %1179 = vmatprep.subr.bf16.mxu0 0
        %1180 = vmatpush2.bf16.msra.mxu0 0
        %1181 = vmatprep.mubr.bf16.mxu0 0
        %1182 = vmatmul.mubr.bf16.gmra.mxu0 %v1065
        %v1183 = vpop.f32.mrf.mxu0
        %v1184 = vadd.f32 %v1022, %v1183
        %v1185 = vpop.f32.mrf.mxu0
        %v1186 = vadd.f32 %v1022, %v1185
        %v1187 = vpop.f32.mrf.mxu0
        %v1188 = vpop.f32.mrf.mxu0
        %1189 = vdwg.mxu0
        %1190 = vmatprep.subr.bf16.mxu0 0
        %1191 = vmatpush1.bf16.msra.mxu0 0
        %1192 = vmatprep.subr.bf16.mxu0 0
        %1193 = vmatpush1.bf16.msra.mxu0 0
        %1194 = vmatprep.subr.bf16.mxu0 0
        %1195 = vmatpush1.bf16.msra.mxu0 0
        %1196 = vmatprep.subr.bf16.mxu0 0
        %1197 = vmatpush1.bf16.msra.mxu0 0
        %1198 = vmatprep.subr.bf16.mxu0 0
        %1199 = vmatpush1.bf16.msra.mxu0 0
        %1200 = vmatprep.subr.bf16.mxu0 0
        %1201 = vmatpush1.bf16.msra.mxu0 0
        %1202 = vmatprep.subr.bf16.mxu0 0
        %1203 = vmatpush1.bf16.msra.mxu0 0
        %1204 = vmatprep.subr.bf16.mxu0 %v1055
        %1205 = vmatpush1.bf16.msra.mxu0 %v1054
        %1206 = vmatprep.subr.bf16.mxu0 0
        %1207 = vmatpush2.bf16.msra.mxu0 0
        %1208 = vmatprep.subr.bf16.mxu0 0
        %1209 = vmatpush2.bf16.msra.mxu0 0
        %1210 = vmatprep.subr.bf16.mxu0 0
        %1211 = vmatpush2.bf16.msra.mxu0 0
        %1212 = vmatprep.subr.bf16.mxu0 0
        %1213 = vmatpush2.bf16.msra.mxu0 0
        %1214 = vmatprep.subr.bf16.mxu0 0
        %1215 = vmatpush2.bf16.msra.mxu0 0
        %1216 = vmatprep.subr.bf16.mxu0 0
        %1217 = vmatpush2.bf16.msra.mxu0 0
        %1218 = vmatprep.subr.bf16.mxu0 0
        %1219 = vmatpush2.bf16.msra.mxu0 0
        %1220 = vmatprep.subr.bf16.mxu0 0
        %1221 = vmatpush2.bf16.msra.mxu0 0
        %1222 = vmatprep.mubr.bf16.mxu0 0
        %1223 = vmatmul.mubr.bf16.gmra.mxu0 %v1065
        %v1224 = vpop.f32.mrf.mxu0
        %v1225 = vadd.f32 %v1022, %v1224
        %v1226 = vpop.f32.mrf.mxu0
        %v1227 = vadd.f32 %v1022, %v1226
        %v1228 = vpop.f32.mrf.mxu0
        %v1229 = vpop.f32.mrf.mxu0
        %1230 = vdwg.mxu0
        %v1231 = vtanh.pop %v1102
        %v1232 = vtanh.pop %v1104
        %v1233 = vtanh.pop %v1143
        %v1234 = vtanh.pop %v1145
        %v1235 = vtanh.pop %v1184
        %v1236 = vtanh.pop %v1186
        %v1237 = vtanh.pop %v1225
        %v1238 = vtanh.pop %v1227
        %v1247 = vcombine.low %v1231, %v1232
        %v1248 = vcombine.low %v1233, %v1234
        %v1249 = vcombine.low %v1235, %v1236
        %v1250 = vcombine.low %v1237, %v1238
        %s1255 = scalar_lea.vmem %s246, 96 [#allocation3]
        %1256 = vst [vmem:[%s1255] sm:$0x77] %v1247
        %1257 = vst [vmem:[%s1255 + $0x8] sm:$0x77] %v1248
        %1258 = vst [vmem:[%s1255 + $0x10] sm:$0x77] %v1249
        %1259 = vst [vmem:[%s1255 + $0x18] sm:$0x77] %v1250
        %s1260 = sand.u32 %s90, 1
        %s1261 = sand.u32 %s90, 1
        %s1262 = smul.addr %s1261, 128
        %s1263 = scalar_lea.vmem [#allocation3], %s1262
        // Predicated region
        $region56: #{data_generator_forward.5} parent=50 // pred_check
          %p1264 = pneg %p100
        $region57: #{data_generator_forward.5} parent=50 // pred_check_branch
          %1266 = sbr.rel (%p1264) target = $region59
        $region58: #{data_generator_forward.5} parent=50 // pred_region
          %s1267 = smul.u32 8, %s14
          %s1268 = smul.addr %s1267, 4
          %s1269 = scalar_lea.vmem %s3, %s1268
          // Predicated region
          $region60: #{data_generator_forward.5} parent=58 // pred_check
            _
          $region61: #{data_generator_forward.5} parent=58 // pred_check_branch
            %1271 = sbr.rel (0) target = $region63
          $region62: #{data_generator_forward.5} parent=58 // pred_region
            // Predicated region
            $region64: #{data_generator_forward.5} parent=62 // pred_check
              _
            $region65: #{data_generator_forward.5} parent=62 // pred_check_branch
              %1273 = sbr.rel (0) target = $region67
            $region66: #{data_generator_forward.5} parent=62 // pred_region
              loop: start=0, step=1, limit=1
              $region68: #{data_generator_forward.5} parent=66 // loop_pre_header
                _
              $region69: #{data_generator_forward.5} parent=66 // loop_header
                %s1275 = sphi 0, %s1279
                %p1276 = scmp.ge.s32.totalorder %s1275, 1
                %s1280 = sphi %s1263, %s1263
                %s1281 = sphi %s1269, %s1269
              $region70: #{data_generator_forward.5} parent=66 // loop_header_branch
                %1278 = sbr.rel (%p1276) target = $region74
              $region71: #{data_generator_forward.5} parent=66 // loop_body
                %v1282 = vld [vmem:[%s1280] sm:$0xff]
                %1283 = vst [vmem:[%s1281] sm:$0xff] %v1282
                %v1284 = vld [vmem:[%s1280 + $0x8] sm:$0xff]
                %1285 = vst [vmem:[%s1281 + $0x8] sm:$0xff] %v1284
                %v1286 = vld [vmem:[%s1280 + $0x10] sm:$0xff]
                %1287 = vst [vmem:[%s1281 + $0x10] sm:$0xff] %v1286
                %v1288 = vld [vmem:[%s1280 + $0x18] sm:$0xff]
                %1289 = vst [vmem:[%s1281 + $0x18] sm:$0xff] %v1288
                %v1290 = vld [vmem:[%s1280 + $0x20] sm:$0xff]
                %1291 = vst [vmem:[%s1281 + $0x40] sm:$0xff] %v1290
                %v1292 = vld [vmem:[%s1280 + $0x28] sm:$0xff]
                %1293 = vst [vmem:[%s1281 + $0x48] sm:$0xff] %v1292
                %v1294 = vld [vmem:[%s1280 + $0x30] sm:$0xff]
                %1295 = vst [vmem:[%s1281 + $0x50] sm:$0xff] %v1294
                %v1296 = vld [vmem:[%s1280 + $0x38] sm:$0xff]
                %1297 = vst [vmem:[%s1281 + $0x58] sm:$0xff] %v1296
                %v1298 = vld [vmem:[%s1280 + $0x40] sm:$0xff]
                %1299 = vst [vmem:[%s1281 + $0x80] sm:$0xff] %v1298
                %v1300 = vld [vmem:[%s1280 + $0x48] sm:$0xff]
                %1301 = vst [vmem:[%s1281 + $0x88] sm:$0xff] %v1300
                %v1302 = vld [vmem:[%s1280 + $0x50] sm:$0xff]
                %1303 = vst [vmem:[%s1281 + $0x90] sm:$0xff] %v1302
                %v1304 = vld [vmem:[%s1280 + $0x58] sm:$0xff]
                %1305 = vst [vmem:[%s1281 + $0x98] sm:$0xff] %v1304
                %v1306 = vld [vmem:[%s1280 + $0x60] sm:$0xff]
                %1307 = vst [vmem:[%s1281 + $0xc0] sm:$0xff] %v1306
                %v1308 = vld [vmem:[%s1280 + $0x68] sm:$0xff]
                %1309 = vst [vmem:[%s1281 + $0xc8] sm:$0xff] %v1308
                %v1310 = vld [vmem:[%s1280 + $0x70] sm:$0xff]
                %1311 = vst [vmem:[%s1281 + $0xd0] sm:$0xff] %v1310
                %v1312 = vld [vmem:[%s1280 + $0x78] sm:$0xff]
                %1313 = vst [vmem:[%s1281 + $0xd8] sm:$0xff] %v1312
              $region72: #{data_generator_forward.5} parent=66 // loop_footer
                %s1279 = sadd.s32 1, %s1275
              $region73: #{data_generator_forward.5} parent=66 // loop_footer_branch
                %1274 = sbr.rel target = $region69
              $region74: #{data_generator_forward.5} parent=66 // loop_exit
                _
            $region67: #{data_generator_forward.5} parent=62 // pred_fallthru
              _
            // Predicated region
            $region75: #{data_generator_forward.5} parent=62 // pred_check
              _
            $region76: #{data_generator_forward.5} parent=62 // pred_check_branch
              %1315 = sbr.rel target = $region78
            $region77: #{data_generator_forward.5} parent=62 // pred_region
              _
            $region78: #{data_generator_forward.5} parent=62 // pred_fallthru
              _
          $region63: #{data_generator_forward.5} parent=58 // pred_fallthru
            _
          %1316 = vnop
        $region59: #{data_generator_forward.5} parent=50 // pred_fallthru
          _
      $region51: #{data_generator_forward.5} parent=5 // pred_fallthru
        _
      %p1317 = scmp.le.s32.totalorder 2, %s9
      // Predicated region
      $region79: #{data_generator_forward.5} parent=5 // pred_check
        %p1318 = pneg %p1317
      $region80: #{data_generator_forward.5} parent=5 // pred_check_branch
        %1320 = sbr.rel (%p1318) target = $region82
      $region81: #{data_generator_forward.5} parent=5 // pred_region
        %s1321 = ssub.s32 %s9, 2
        // Predicated region
        $region83: #{data_generator_forward.5} parent=81 // pred_check
          %p1322 = pneg %p106
        $region84: #{data_generator_forward.5} parent=81 // pred_check_branch
          %1324 = sbr.rel (%p1322) target = $region86
        $region85: #{data_generator_forward.5} parent=81 // pred_region
          %s1325 = sand.u32 %s91, 1
          %s1326 = sand.u32 %s91, 1
          %s1327 = smul.addr %s1326, 128
          %s1328 = scalar_lea.vmem [#allocation3], %s1327
        $region86: #{data_generator_forward.5} parent=81 // pred_fallthru
          _
      $region82: #{data_generator_forward.5} parent=5 // pred_fallthru
        _
    $region6: #{data_generator_forward.5} parent=1 // loop_footer
      %s13 = sadd.s32 1, %s9
    $region7: #{data_generator_forward.5} parent=1 // loop_footer_branch
      %8 = sbr.rel target = $region3
    $region8: #{data_generator_forward.5} parent=1 // loop_exit
      _

</llo_original>
